<compile_context>
chip_gen: v7x
topology: tpu7x:2x2x1
jax: 0.10.0
libtpu: 0.0.40
codegen_flags: <defaults>
</compile_context>

<pallas_src>
import numpy as np
import jax
import jax.numpy as jnp
from jax.experimental import pallas as pl
from jax.experimental.pallas import tpu as pltpu


# ---------------------------------------------------------------------------
# Fused UNetBlock kernel
# ---------------------------------------------------------------------------

def _make_unet_block_kernel(*, Cin, Co, H, W, heads, G0, G1, eps, skip_scale):
    HW = H * W
    P = W + 1                         # flat-padding margin (covers shifts up to W+1)
    HWP = HW + 2 * P
    Ch = Co // heads
    Cg0 = Cin // G0
    Cg1 = Co // G1
    att_scale = 1.0 / float(np.sqrt(Ch))

    def group_norm(x_full, load_group, gamma, beta, G, Cg, do_silu):
        # Single reduction pass per group: var = E[x^2] - mean^2.
        if G == 1:
            m = jnp.mean(x_full)
            var = jnp.mean(x_full * x_full) - m * m
            xn = (x_full - m) * jax.lax.rsqrt(var + eps)
        else:
            C = x_full.shape[0]
            ch = jax.lax.broadcasted_iota(jnp.int32, (C, 1), 0)
            mean_full = jnp.zeros((C, 1), jnp.float32)
            rstd_full = jnp.zeros((C, 1), jnp.float32)
            for g in range(G):
                xg = load_group(g)
                m = jnp.mean(xg)
                var = jnp.mean(xg * xg) - m * m
                sel = (ch >= g * Cg) & (ch < (g + 1) * Cg)
                mean_full = jnp.where(sel, m, mean_full)
                rstd_full = jnp.where(sel, jax.lax.rsqrt(var + eps), rstd_full)
            xn = (x_full - mean_full) * rstd_full
        y = xn * gamma + beta
        if do_silu:
            y = y * jax.nn.sigmoid(y)
        return y

    def conv3x3(pad_ref, w9_ref, b_ref, C):
        # pad_ref: (C, HWP) flat zero-padded activation; w9_ref: (9, Co, C).
        # Tap (kh, kw) of a padding=1 conv is a flat shift by (kh-1)*W + (kw-1)
        # of the image; reading the shifted window from the zero-padded flat
        # scratch handles rows falling off the top/bottom, and a lane mask
        # kills the row-wraparound columns whenever kw != 1.
        wpos = jax.lax.broadcasted_iota(jnp.int32, (C, HW), 1) % W
        acc = jnp.zeros((Co, HW), jnp.float32)
        for kh in range(3):
            for kw in range(3):
                dh, dw = kh - 1, kw - 1
                start = P + dh * W + dw
                xs = pad_ref[:, start:start + HW]
                if dw == -1:
                    xs = jnp.where(wpos >= 1, xs, 0.0)
                elif dw == 1:
                    xs = jnp.where(wpos <= W - 2, xs, 0.0)
                acc = acc + jnp.dot(w9_ref[kh * 3 + kw], xs,
                                    preferred_element_type=jnp.float32)
        return acc + b_ref[...]

    def kernel(x_ref,
               gn0_w_ref, gn0_b_ref,
               w0_ref, b0_ref,
               w1_ref, b1_ref,
               ws_ref, bs_ref,
               gn1_w_ref, gn1_b_ref,
               wqkv_ref, bqkv_ref,
               wproj_ref, bproj_ref,
               o_ref,
               pad0_ref, pad1_ref, xm_ref, qkv_ref):
        x = x_ref[0]                                             # (Cin, HW)

        # ---- GroupNorm0 + SiLU -> flat-padded scratch --------------------
        h = group_norm(x, lambda g: x_ref[0, g * Cg0:(g + 1) * Cg0, :],
                       gn0_w_ref[...], gn0_b_ref[...], G0, Cg0, True)
        pad0_ref[...] = jnp.zeros((Cin, HWP), jnp.float32)
        pad0_ref[:, P:P + HW] = h

        # ---- conv0 (3x3) -> flat-padded scratch for conv1 -----------------
        h0 = conv3x3(pad0_ref, w0_ref, b0_ref, Cin)              # (Co, HW)
        pad1_ref[...] = jnp.zeros((Co, HWP), jnp.float32)
        pad1_ref[:, P:P + HW] = h0

        # ---- conv1 (3x3) + skip 1x1, fused residual * skip_scale ----------
        h1 = conv3x3(pad1_ref, w1_ref, b1_ref, Co)               # (Co, HW)
        s = jnp.dot(ws_ref[...], x, preferred_element_type=jnp.float32) \
            + bs_ref[...]
        xm = (h1 + s) * skip_scale
        xm_ref[...] = xm

        # ---- GroupNorm1 + qkv 1x1 (rows pre-permuted: per-head q|k|v) -----
        hn = group_norm(xm, lambda g: xm_ref[g * Cg1:(g + 1) * Cg1, :],
                        gn1_w_ref[...], gn1_b_ref[...], G1, Cg1, False)
        qkv_ref[...] = (jnp.dot(wqkv_ref[...], hn,
                                preferred_element_type=jnp.float32)
                        + bqkv_ref[...])

        # ---- per-head attention; proj matmul accumulated across heads ----
        # Monolithic (HW, HW) logits are fine at HW=256; at production sizes
        # this loop should be KV-tiled with an online (flash) softmax.
        proj = jnp.zeros((Co, HW), jnp.float32)
        for hd in range(heads):
            base = hd * 3 * Ch
            q = qkv_ref[base:base + Ch, :]
            k = qkv_ref[base + Ch:base + 2 * Ch, :]
            v = qkv_ref[base + 2 * Ch:base + 3 * Ch, :]
            logits = jax.lax.dot_general(
                q, k * att_scale, (((0,), (0,)), ((), ())),
                preferred_element_type=jnp.float32)              # (HW, HW)
            m = jnp.max(logits, axis=-1, keepdims=True)
            p = jnp.exp(logits - m)
            denom = jnp.sum(p, axis=-1, keepdims=True)
            w_att = p * pl.reciprocal(denom, approx=True)        # EUP reciprocal
            a_h = jax.lax.dot_general(
                v, w_att, (((1,), (1,)), ((), ())),
                preferred_element_type=jnp.float32)              # (Ch, HW)
            proj = proj + jnp.dot(wproj_ref[:, hd * Ch:(hd + 1) * Ch], a_h,
                                  preferred_element_type=jnp.float32)

        # ---- proj bias + residual, final skip_scale ------------------------
        o_ref[0] = (proj + bproj_ref[...] + xm) * skip_scale

    return kernel


def unet_block_forward(x, p, *, num_heads, num_groups0, num_groups1,
                       skip_scale, eps):
    N, Cin, H, W = x.shape
    Co = p["w0"].shape[0]
    HW = H * W
    HWP = HW + 2 * (W + 1)
    heads = num_heads
    Ch = Co // heads

    # Cheap weight re-layouts (no activation-sized HBM traffic):
    #  - 3x3 weights as (9, Co, C) so the kernel indexes tap t = kh*3+kw.
    #  - qkv rows permuted so each head's q/k/v channels are contiguous.
    w0_9 = p["w0"].transpose(2, 3, 0, 1).reshape(9, Co, Cin)
    w1_9 = p["w1"].transpose(2, 3, 0, 1).reshape(9, Co, Co)
    perm = np.array([hd * 3 * Ch + c * 3 + s
                     for hd in range(heads) for s in range(3) for c in range(Ch)])
    wqkv_p = p["wqkv"][perm]
    bqkv_p = p["bqkv"][perm]

    col = lambda v: v.reshape(-1, 1)

    kernel = _make_unet_block_kernel(
        Cin=Cin, Co=Co, H=H, W=W, heads=heads, G0=num_groups0, G1=num_groups1,
        eps=float(eps), skip_scale=float(skip_scale))

    def cidx2(n):
        return (0, 0)

    def cidx3(n):
        return (0, 0, 0)

    in_specs = [
        pl.BlockSpec((1, Cin, HW), lambda n: (n, 0, 0)),      # x
        pl.BlockSpec((Cin, 1), cidx2), pl.BlockSpec((Cin, 1), cidx2),   # gn0 w/b
        pl.BlockSpec((9, Co, Cin), cidx3), pl.BlockSpec((Co, 1), cidx2),  # conv0
        pl.BlockSpec((9, Co, Co), cidx3), pl.BlockSpec((Co, 1), cidx2),   # conv1
        pl.BlockSpec((Co, Cin), cidx2), pl.BlockSpec((Co, 1), cidx2),     # skip 1x1
        pl.BlockSpec((Co, 1), cidx2), pl.BlockSpec((Co, 1), cidx2),       # gn1 w/b
        pl.BlockSpec((3 * Co, Co), cidx2), pl.BlockSpec((3 * Co, 1), cidx2),  # qkv
        pl.BlockSpec((Co, Co), cidx2), pl.BlockSpec((Co, 1), cidx2),      # proj
    ]

    out = pl.pallas_call(
        kernel,
        out_shape=jax.ShapeDtypeStruct((N, Co, HW), jnp.float32),
        grid=(N,),
        in_specs=in_specs,
        out_specs=pl.BlockSpec((1, Co, HW), lambda n: (n, 0, 0)),
        scratch_shapes=[
            pltpu.VMEM((Cin, HWP), jnp.float32),     # flat-padded conv0 input
            pltpu.VMEM((Co, HWP), jnp.float32),      # flat-padded conv1 input
            pltpu.VMEM((Co, HW), jnp.float32),       # post-skip activation xm
            pltpu.VMEM((3 * Co, HW), jnp.float32),   # packed qkv
        ],
        compiler_params=pltpu.CompilerParams(
            dimension_semantics=("parallel",)),
    )(x.reshape(N, Cin, HW),
      col(p["gn0_w"]), col(p["gn0_b"]),
      w0_9, col(p["b0"]),
      w1_9, col(p["b1"]),
      p["ws"], col(p["bs"]),
      col(p["gn1_w"]), col(p["gn1_b"]),
      wqkv_p, col(bqkv_p),
      p["wproj"], col(p["bproj"]))
    return out.reshape(N, Co, H, W)


# ---------------------------------------------------------------------------
# Pure-JAX reference (torch-equivalent semantics) for correctness check
# ---------------------------------------------------------------------------

def reference_forward(x, p, *, num_heads, num_groups0, num_groups1,
                      skip_scale, eps):
    HIGH = jax.lax.Precision.HIGHEST

    def gn(x, w, b, G):
        N, C, H, W = x.shape
        xg = x.reshape(N, G, C // G, H, W)
        m = xg.mean(axis=(2, 3, 4), keepdims=True)
        v = jnp.mean((xg - m) ** 2, axis=(2, 3, 4), keepdims=True)
        xn = ((xg - m) / jnp.sqrt(v + eps)).reshape(N, C, H, W)
        return xn * w[None, :, None, None] + b[None, :, None, None]

    def conv(x, w, b, pad):
        y = jax.lax.conv_general_dilated(
            x, w, window_strides=(1, 1), padding=[(pad, pad), (pad, pad)],
            dimension_numbers=("NCHW", "OIHW", "NCHW"), precision=HIGH)
        return y + b[None, :, None, None]

    h = jax.nn.silu(gn(x, p["gn0_w"], p["gn0_b"], num_groups0))
    h = conv(h, p["w0"], p["b0"], 1)
    h = conv(h, p["w1"], p["b1"], 1)
    s = conv(x, p["ws"][:, :, None, None], p["bs"], 0)
    xm = (h + s) * skip_scale

    hn = gn(xm, p["gn1_w"], p["gn1_b"], num_groups1)
    qkv = conv(hn, p["wqkv"][:, :, None, None], p["bqkv"], 0)
    N, C, H, W = xm.shape
    Ch = C // num_heads
    qkv_r = qkv.reshape(N * num_heads, Ch, 3, H * W)
    q, k, v = qkv_r[:, :, 0, :], qkv_r[:, :, 1, :], qkv_r[:, :, 2, :]
    logits = jnp.einsum("ncq,nck->nqk", q, k / np.sqrt(Ch), precision=HIGH)
    w_att = jax.nn.softmax(logits, axis=2)
    a = jnp.einsum("nqk,nck->ncq", w_att, v, precision=HIGH).reshape(N, C, H, W)
    xp = conv(a, p["wproj"][:, :, None, None], p["bproj"], 0)
    return (xp + xm) * skip_scale


# ---------------------------------------------------------------------------
# Main
# ---------------------------------------------------------------------------

if __name__ == "__main__":
    # UNetBlock(in_channels=4, out_channels=8, attention=True, num_heads=2,
    #           dropout=0, skip_scale=1/sqrt(2))  — up=down=False.
    in_channels, out_channels = 4, 8
    num_heads = 2
    eps = 1e-5
    skip_scale = 1.0 / np.sqrt(2.0)
    num_groups0 = min(32, in_channels // 4)    # norm0 groups
    num_groups1 = min(32, out_channels // 4)   # norm1 groups
    N, H, W = 2, 16, 16

    key = jax.random.PRNGKey(0)
    ks = jax.random.split(key, 16)

    def kaiming(k, shape, fan_in):
        return (np.sqrt(1.0 / fan_in) * jax.random.normal(k, shape)).astype(jnp.float32)

    params = {
        "gn0_w": (1.0 + 0.1 * jax.random.normal(ks[0], (in_channels,))).astype(jnp.float32),
        "gn0_b": (0.1 * jax.random.normal(ks[1], (in_channels,))).astype(jnp.float32),
        "w0": kaiming(ks[2], (out_channels, in_channels, 3, 3), in_channels * 9),
        "b0": (0.05 * jax.random.normal(ks[3], (out_channels,))).astype(jnp.float32),
        "w1": kaiming(ks[4], (out_channels, out_channels, 3, 3), out_channels * 9),
        "b1": (0.05 * jax.random.normal(ks[5], (out_channels,))).astype(jnp.float32),
        "ws": kaiming(ks[6], (out_channels, in_channels), in_channels),          # skip 1x1
        "bs": (0.05 * jax.random.normal(ks[7], (out_channels,))).astype(jnp.float32),
        "gn1_w": (1.0 + 0.1 * jax.random.normal(ks[8], (out_channels,))).astype(jnp.float32),
        "gn1_b": (0.1 * jax.random.normal(ks[9], (out_channels,))).astype(jnp.float32),
        "wqkv": kaiming(ks[10], (out_channels * 3, out_channels), out_channels),  # qkv 1x1
        "bqkv": (0.05 * jax.random.normal(ks[11], (out_channels * 3,))).astype(jnp.float32),
        "wproj": kaiming(ks[12], (out_channels, out_channels), out_channels),     # proj 1x1
        "bproj": (0.05 * jax.random.normal(ks[13], (out_channels,))).astype(jnp.float32),
    }

    x = jax.random.normal(ks[14], (N, in_channels, H, W), dtype=jnp.float32)

    fwd = jax.jit(
        lambda x, p: unet_block_forward(
            x, p, num_heads=num_heads, num_groups0=num_groups0,
            num_groups1=num_groups1, skip_scale=skip_scale, eps=eps))

    out = fwd(x, params)
    jax.block_until_ready(out)

    ref = reference_forward(
        x, params, num_heads=num_heads, num_groups0=num_groups0,
        num_groups1=num_groups1, skip_scale=skip_scale, eps=eps)
    jax.block_until_ready(ref)

    assert out.shape == (N, out_channels, H, W)
    max_err = float(jnp.max(jnp.abs(out - ref)))
    # 2e-3 budget covers the approx-reciprocal softmax + single-pass GN stats.
    assert max_err < 2e-3, f"mismatch vs reference: max abs err = {max_err}"

    print("KERNEL_OK")
</pallas_src>

<mosaic_0001>
module attributes {stable_mosaic.version = 11 : i64} {
  func.func @kernel(%arg0: i32, %arg1: memref<1x4x256xf32, #tpu.memory_space<vmem>>, %arg2: memref<4x1xf32, #tpu.memory_space<vmem>>, %arg3: memref<4x1xf32, #tpu.memory_space<vmem>>, %arg4: memref<9x8x4xf32, #tpu.memory_space<vmem>>, %arg5: memref<8x1xf32, #tpu.memory_space<vmem>>, %arg6: memref<9x8x8xf32, #tpu.memory_space<vmem>>, %arg7: memref<8x1xf32, #tpu.memory_space<vmem>>, %arg8: memref<8x4xf32, #tpu.memory_space<vmem>>, %arg9: memref<8x1xf32, #tpu.memory_space<vmem>>, %arg10: memref<8x1xf32, #tpu.memory_space<vmem>>, %arg11: memref<8x1xf32, #tpu.memory_space<vmem>>, %arg12: memref<24x8xf32, #tpu.memory_space<vmem>>, %arg13: memref<24x1xf32, #tpu.memory_space<vmem>>, %arg14: memref<8x8xf32, #tpu.memory_space<vmem>>, %arg15: memref<8x1xf32, #tpu.memory_space<vmem>>, %arg16: memref<1x8x256xf32, #tpu.memory_space<vmem>>, %arg17: memref<4x290xf32, #tpu.memory_space<vmem>>, %arg18: memref<8x290xf32, #tpu.memory_space<vmem>>, %arg19: memref<8x256xf32, #tpu.memory_space<vmem>>, %arg20: memref<24x256xf32, #tpu.memory_space<vmem>>) attributes {dimension_semantics = [#tpu.dimension_semantics<parallel>], iteration_bounds = array<i64: 2>, scalar_prefetch = 0 : i64, scratch_operands = 4 : i64, tpu.core_type = #tpu.core_type<tc>, window_params = [{transform_indices = @transform_0, window_bounds = array<i64: 1, 4, 256>}, {pipeline_mode = #tpu.pipeline_mode<synchronous>, transform_indices = @transform_1, window_bounds = array<i64: 4, 1>}, {pipeline_mode = #tpu.pipeline_mode<synchronous>, transform_indices = @transform_2, window_bounds = array<i64: 4, 1>}, {pipeline_mode = #tpu.pipeline_mode<synchronous>, transform_indices = @transform_3, window_bounds = array<i64: 9, 8, 4>}, {pipeline_mode = #tpu.pipeline_mode<synchronous>, transform_indices = @transform_4, window_bounds = array<i64: 8, 1>}, {pipeline_mode = #tpu.pipeline_mode<synchronous>, transform_indices = @transform_5, window_bounds = array<i64: 9, 8, 8>}, {pipeline_mode = #tpu.pipeline_mode<synchronous>, transform_indices = @transform_6, window_bounds = array<i64: 8, 1>}, {pipeline_mode = #tpu.pipeline_mode<synchronous>, transform_indices = @transform_7, window_bounds = array<i64: 8, 4>}, {pipeline_mode = #tpu.pipeline_mode<synchronous>, transform_indices = @transform_8, window_bounds = array<i64: 8, 1>}, {pipeline_mode = #tpu.pipeline_mode<synchronous>, transform_indices = @transform_9, window_bounds = array<i64: 8, 1>}, {pipeline_mode = #tpu.pipeline_mode<synchronous>, transform_indices = @transform_10, window_bounds = array<i64: 8, 1>}, {pipeline_mode = #tpu.pipeline_mode<synchronous>, transform_indices = @transform_11, window_bounds = array<i64: 24, 8>}, {pipeline_mode = #tpu.pipeline_mode<synchronous>, transform_indices = @transform_12, window_bounds = array<i64: 24, 1>}, {pipeline_mode = #tpu.pipeline_mode<synchronous>, transform_indices = @transform_13, window_bounds = array<i64: 8, 8>}, {pipeline_mode = #tpu.pipeline_mode<synchronous>, transform_indices = @transform_14, window_bounds = array<i64: 8, 1>}, {transform_indices = @transform_15, window_bounds = array<i64: 1, 8, 256>}]} {
    %c0 = arith.constant 0 : index
    %c0_0 = arith.constant 0 : index
    %c0_1 = arith.constant 0 : index
    %0 = vector.load %arg1[%c0, %c0_0, %c0_1] : memref<1x4x256xf32, #tpu.memory_space<vmem>>, vector<1x4x256xf32>
    %1 = vector.shape_cast %0 : vector<1x4x256xf32> to vector<4x256xf32>
    %c0_2 = arith.constant 0 : index
    %c0_3 = arith.constant 0 : index
    %2 = vector.load %arg2[%c0_2, %c0_3] : memref<4x1xf32, #tpu.memory_space<vmem>>, vector<4x1xf32>
    %c0_4 = arith.constant 0 : index
    %c0_5 = arith.constant 0 : index
    %3 = vector.load %arg3[%c0_4, %c0_5] : memref<4x1xf32, #tpu.memory_space<vmem>>, vector<4x1xf32>
    %4 = vector.shape_cast %1 : vector<4x256xf32> to vector<1x4x256xf32>
    %cst = arith.constant dense<0.000000e+00> : vector<1xf32>
    %5 = vector.multi_reduction <add>, %4, %cst [1, 2] : vector<1x4x256xf32> to vector<1xf32>
    %6 = vector.shape_cast %5 : vector<1xf32> to vector<1x1x1xf32>
    %7 = vector.extract %6[0, 0, 0] : f32 from vector<1x1x1xf32>
    %cst_6 = arith.constant 1.024000e+03 : f32
    %8 = arith.divf %7, %cst_6 : f32
    %9 = arith.mulf %1, %1 : vector<4x256xf32>
    %10 = vector.shape_cast %9 : vector<4x256xf32> to vector<1x4x256xf32>
    %cst_7 = arith.constant dense<0.000000e+00> : vector<1xf32>
    %11 = vector.multi_reduction <add>, %10, %cst_7 [1, 2] : vector<1x4x256xf32> to vector<1xf32>
    %12 = vector.shape_cast %11 : vector<1xf32> to vector<1x1x1xf32>
    %13 = vector.extract %12[0, 0, 0] : f32 from vector<1x1x1xf32>
    %cst_8 = arith.constant 1.024000e+03 : f32
    %14 = arith.divf %13, %cst_8 : f32
    %15 = arith.mulf %8, %8 : f32
    %16 = arith.subf %14, %15 : f32
    %17 = vector.broadcast %8 : f32 to vector<4x256xf32>
    %18 = arith.subf %1, %17 : vector<4x256xf32>
    %cst_9 = arith.constant 9.99999974E-6 : f32
    %19 = arith.addf %16, %cst_9 : f32
    %20 = math.rsqrt %19 : f32
    %21 = vector.broadcast %20 : f32 to vector<4x256xf32>
    %22 = arith.mulf %18, %21 : vector<4x256xf32>
    %23 = vector.broadcast %2 : vector<4x1xf32> to vector<4x256xf32>
    %24 = arith.mulf %22, %23 : vector<4x256xf32>
    %25 = vector.broadcast %3 : vector<4x1xf32> to vector<4x256xf32>
    %26 = arith.addf %24, %25 : vector<4x256xf32>
    %27 = arith.negf %26 : vector<4x256xf32>
    %28 = math.exp %27 : vector<4x256xf32>
    %cst_10 = arith.constant 1.000000e+00 : f32
    %29 = vector.broadcast %cst_10 : f32 to vector<4x256xf32>
    %30 = arith.addf %29, %28 : vector<4x256xf32>
    %31 = arith.divf %29, %30 : vector<4x256xf32>
    %32 = arith.mulf %26, %31 : vector<4x256xf32>
    %cst_11 = arith.constant 0.000000e+00 : f32
    %33 = vector.broadcast %cst_11 : f32 to vector<4x290xf32>
    %c0_12 = arith.constant 0 : index
    %c0_13 = arith.constant 0 : index
    %34 = vector.load %arg17[%c0_12, %c0_13] : memref<4x290xf32, #tpu.memory_space<vmem>>, vector<4x290xf32>
    tpu.vector_store %arg17[%c0_12, %c0_13], %33 {strides = array<i32>} : memref<4x290xf32, #tpu.memory_space<vmem>>, vector<4x290xf32>,
    %c0_14 = arith.constant 0 : index
    %c17 = arith.constant 17 : index
    %35 = vector.load %arg17[%c0_14, %c17] : memref<4x290xf32, #tpu.memory_space<vmem>>, vector<4x256xf32>
    tpu.vector_store %arg17[%c0_14, %c17], %32 {strides = array<i32>} : memref<4x290xf32, #tpu.memory_space<vmem>>, vector<4x256xf32>,
    %36 = tpu.iota {dimensions = array<i32: 1>} : vector<4x256xi32>
    %c16_i32 = arith.constant 16 : i32
    %c0_i32 = arith.constant 0 : i32
    %37 = arith.cmpi eq, %c16_i32, %c0_i32 : i32
    %c1_i32 = arith.constant 1 : i32
    %38 = arith.select %37, %c1_i32, %c16_i32 : i32
    %39 = vector.broadcast %38 : i32 to vector<4x256xi32>
    %40 = arith.remsi %36, %39 : vector<4x256xi32>
    %c0_i32_15 = arith.constant 0 : i32
    %41 = vector.broadcast %c0_i32_15 : i32 to vector<4x256xi32>
    %42 = arith.cmpi ne, %40, %41 : vector<4x256xi32>
    %c0_i32_16 = arith.constant 0 : i32
    %43 = vector.broadcast %c0_i32_16 : i32 to vector<4x256xi32>
    %44 = arith.cmpi slt, %40, %43 : vector<4x256xi32>
    %c0_i32_17 = arith.constant 0 : i32
    %45 = arith.cmpi slt, %38, %c0_i32_17 : i32
    %46 = vector.broadcast %45 : i1 to vector<4x256xi1>
    %47 = vector.broadcast %46 : vector<4x256xi1> to vector<4x256xi1>
    %48 = arith.xori %44, %47 : vector<4x256xi1>
    %49 = arith.andi %48, %42 : vector<4x256xi1>
    %50 = vector.broadcast %38 : i32 to vector<4x256xi32>
    %51 = arith.addi %40, %50 : vector<4x256xi32>
    %52 = arith.select %49, %51, %40 : vector<4x256xi1>, vector<4x256xi32>
    %cst_18 = arith.constant 0.000000e+00 : f32
    %53 = vector.broadcast %cst_18 : f32 to vector<8x256xf32>
    %c0_19 = arith.constant 0 : index
    %c0_20 = arith.constant 0 : index
    %54 = vector.load %arg17[%c0_19, %c0_20] : memref<4x290xf32, #tpu.memory_space<vmem>>, vector<4x256xf32>
    %c1_i32_21 = arith.constant 1 : i32
    %55 = vector.broadcast %c1_i32_21 : i32 to vector<4x256xi32>
    %56 = arith.cmpi sge, %52, %55 : vector<4x256xi32>
    %cst_22 = arith.constant 0.000000e+00 : f32
    %57 = vector.broadcast %cst_22 : f32 to vector<4x256xf32>
    %58 = arith.select %56, %54, %57 : vector<4x256xi1>, vector<4x256xf32>
    %c0_23 = arith.constant 0 : index
    %c0_24 = arith.constant 0 : index
    %c0_25 = arith.constant 0 : index
    %59 = vector.load %arg4[%c0_23, %c0_24, %c0_25] : memref<9x8x4xf32, #tpu.memory_space<vmem>>, vector<1x8x4xf32>
    %60 = vector.shape_cast %59 : vector<1x8x4xf32> to vector<8x4xf32>
    %cst_26 = arith.constant dense<0.000000e+00> : vector<8x256xf32>
    %61 = tpu.matmul %60, %58, %cst_26 {dimension_numbers = #tpu.dot_dimension_numbers<[1], [0], [0], [1], [0, 0, 1, 1], [], []>} : vector<8x4xf32>, vector<4x256xf32>, vector<8x256xf32> -> vector<8x256xf32>
    %62 = arith.addf %53, %61 : vector<8x256xf32>
    %c0_27 = arith.constant 0 : index
    %c1 = arith.constant 1 : index
    %63 = vector.load %arg17[%c0_27, %c1] : memref<4x290xf32, #tpu.memory_space<vmem>>, vector<4x256xf32>
    %c1_28 = arith.constant 1 : index
    %c0_29 = arith.constant 0 : index
    %c0_30 = arith.constant 0 : index
    %64 = vector.load %arg4[%c1_28, %c0_29, %c0_30] : memref<9x8x4xf32, #tpu.memory_space<vmem>>, vector<1x8x4xf32>
    %65 = vector.shape_cast %64 : vector<1x8x4xf32> to vector<8x4xf32>
    %cst_31 = arith.constant dense<0.000000e+00> : vector<8x256xf32>
    %66 = tpu.matmul %65, %63, %cst_31 {dimension_numbers = #tpu.dot_dimension_numbers<[1], [0], [0], [1], [0, 0, 1, 1], [], []>} : vector<8x4xf32>, vector<4x256xf32>, vector<8x256xf32> -> vector<8x256xf32>
    %67 = arith.addf %62, %66 : vector<8x256xf32>
    %c0_32 = arith.constant 0 : index
    %c2 = arith.constant 2 : index
    %68 = vector.load %arg17[%c0_32, %c2] : memref<4x290xf32, #tpu.memory_space<vmem>>, vector<4x256xf32>
    %c14_i32 = arith.constant 14 : i32
    %69 = vector.broadcast %c14_i32 : i32 to vector<4x256xi32>
    %70 = arith.cmpi sle, %52, %69 : vector<4x256xi32>
    %cst_33 = arith.constant 0.000000e+00 : f32
    %71 = vector.broadcast %cst_33 : f32 to vector<4x256xf32>
    %72 = arith.select %70, %68, %71 : vector<4x256xi1>, vector<4x256xf32>
    %c2_34 = arith.constant 2 : index
    %c0_35 = arith.constant 0 : index
    %c0_36 = arith.constant 0 : index
    %73 = vector.load %arg4[%c2_34, %c0_35, %c0_36] : memref<9x8x4xf32, #tpu.memory_space<vmem>>, vector<1x8x4xf32>
    %74 = vector.shape_cast %73 : vector<1x8x4xf32> to vector<8x4xf32>
    %cst_37 = arith.constant dense<0.000000e+00> : vector<8x256xf32>
    %75 = tpu.matmul %74, %72, %cst_37 {dimension_numbers = #tpu.dot_dimension_numbers<[1], [0], [0], [1], [0, 0, 1, 1], [], []>} : vector<8x4xf32>, vector<4x256xf32>, vector<8x256xf32> -> vector<8x256xf32>
    %76 = arith.addf %67, %75 : vector<8x256xf32>
    %c0_38 = arith.constant 0 : index
    %c16 = arith.constant 16 : index
    %77 = vector.load %arg17[%c0_38, %c16] : memref<4x290xf32, #tpu.memory_space<vmem>>, vector<4x256xf32>
    %c1_i32_39 = arith.constant 1 : i32
    %78 = vector.broadcast %c1_i32_39 : i32 to vector<4x256xi32>
    %79 = arith.cmpi sge, %52, %78 : vector<4x256xi32>
    %cst_40 = arith.constant 0.000000e+00 : f32
    %80 = vector.broadcast %cst_40 : f32 to vector<4x256xf32>
    %81 = arith.select %79, %77, %80 : vector<4x256xi1>, vector<4x256xf32>
    %c3 = arith.constant 3 : index
    %c0_41 = arith.constant 0 : index
    %c0_42 = arith.constant 0 : index
    %82 = vector.load %arg4[%c3, %c0_41, %c0_42] : memref<9x8x4xf32, #tpu.memory_space<vmem>>, vector<1x8x4xf32>
    %83 = vector.shape_cast %82 : vector<1x8x4xf32> to vector<8x4xf32>
    %cst_43 = arith.constant dense<0.000000e+00> : vector<8x256xf32>
    %84 = tpu.matmul %83, %81, %cst_43 {dimension_numbers = #tpu.dot_dimension_numbers<[1], [0], [0], [1], [0, 0, 1, 1], [], []>} : vector<8x4xf32>, vector<4x256xf32>, vector<8x256xf32> -> vector<8x256xf32>
    %85 = arith.addf %76, %84 : vector<8x256xf32>
    %c0_44 = arith.constant 0 : index
    %c17_45 = arith.constant 17 : index
    %86 = vector.load %arg17[%c0_44, %c17_45] : memref<4x290xf32, #tpu.memory_space<vmem>>, vector<4x256xf32>
    %c4 = arith.constant 4 : index
    %c0_46 = arith.constant 0 : index
    %c0_47 = arith.constant 0 : index
    %87 = vector.load %arg4[%c4, %c0_46, %c0_47] : memref<9x8x4xf32, #tpu.memory_space<vmem>>, vector<1x8x4xf32>
    %88 = vector.shape_cast %87 : vector<1x8x4xf32> to vector<8x4xf32>
    %cst_48 = arith.constant dense<0.000000e+00> : vector<8x256xf32>
    %89 = tpu.matmul %88, %86, %cst_48 {dimension_numbers = #tpu.dot_dimension_numbers<[1], [0], [0], [1], [0, 0, 1, 1], [], []>} : vector<8x4xf32>, vector<4x256xf32>, vector<8x256xf32> -> vector<8x256xf32>
    %90 = arith.addf %85, %89 : vector<8x256xf32>
    %c0_49 = arith.constant 0 : index
    %c18 = arith.constant 18 : index
    %91 = vector.load %arg17[%c0_49, %c18] : memref<4x290xf32, #tpu.memory_space<vmem>>, vector<4x256xf32>
    %c14_i32_50 = arith.constant 14 : i32
    %92 = vector.broadcast %c14_i32_50 : i32 to vector<4x256xi32>
    %93 = arith.cmpi sle, %52, %92 : vector<4x256xi32>
    %cst_51 = arith.constant 0.000000e+00 : f32
    %94 = vector.broadcast %cst_51 : f32 to vector<4x256xf32>
    %95 = arith.select %93, %91, %94 : vector<4x256xi1>, vector<4x256xf32>
    %c5 = arith.constant 5 : index
    %c0_52 = arith.constant 0 : index
    %c0_53 = arith.constant 0 : index
    %96 = vector.load %arg4[%c5, %c0_52, %c0_53] : memref<9x8x4xf32, #tpu.memory_space<vmem>>, vector<1x8x4xf32>
    %97 = vector.shape_cast %96 : vector<1x8x4xf32> to vector<8x4xf32>
    %cst_54 = arith.constant dense<0.000000e+00> : vector<8x256xf32>
    %98 = tpu.matmul %97, %95, %cst_54 {dimension_numbers = #tpu.dot_dimension_numbers<[1], [0], [0], [1], [0, 0, 1, 1], [], []>} : vector<8x4xf32>, vector<4x256xf32>, vector<8x256xf32> -> vector<8x256xf32>
    %99 = arith.addf %90, %98 : vector<8x256xf32>
    %c0_55 = arith.constant 0 : index
    %c32 = arith.constant 32 : index
    %100 = vector.load %arg17[%c0_55, %c32] : memref<4x290xf32, #tpu.memory_space<vmem>>, vector<4x256xf32>
    %c1_i32_56 = arith.constant 1 : i32
    %101 = vector.broadcast %c1_i32_56 : i32 to vector<4x256xi32>
    %102 = arith.cmpi sge, %52, %101 : vector<4x256xi32>
    %cst_57 = arith.constant 0.000000e+00 : f32
    %103 = vector.broadcast %cst_57 : f32 to vector<4x256xf32>
    %104 = arith.select %102, %100, %103 : vector<4x256xi1>, vector<4x256xf32>
    %c6 = arith.constant 6 : index
    %c0_58 = arith.constant 0 : index
    %c0_59 = arith.constant 0 : index
    %105 = vector.load %arg4[%c6, %c0_58, %c0_59] : memref<9x8x4xf32, #tpu.memory_space<vmem>>, vector<1x8x4xf32>
    %106 = vector.shape_cast %105 : vector<1x8x4xf32> to vector<8x4xf32>
    %cst_60 = arith.constant dense<0.000000e+00> : vector<8x256xf32>
    %107 = tpu.matmul %106, %104, %cst_60 {dimension_numbers = #tpu.dot_dimension_numbers<[1], [0], [0], [1], [0, 0, 1, 1], [], []>} : vector<8x4xf32>, vector<4x256xf32>, vector<8x256xf32> -> vector<8x256xf32>
    %108 = arith.addf %99, %107 : vector<8x256xf32>
    %c0_61 = arith.constant 0 : index
    %c33 = arith.constant 33 : index
    %109 = vector.load %arg17[%c0_61, %c33] : memref<4x290xf32, #tpu.memory_space<vmem>>, vector<4x256xf32>
    %c7 = arith.constant 7 : index
    %c0_62 = arith.constant 0 : index
    %c0_63 = arith.constant 0 : index
    %110 = vector.load %arg4[%c7, %c0_62, %c0_63] : memref<9x8x4xf32, #tpu.memory_space<vmem>>, vector<1x8x4xf32>
    %111 = vector.shape_cast %110 : vector<1x8x4xf32> to vector<8x4xf32>
    %cst_64 = arith.constant dense<0.000000e+00> : vector<8x256xf32>
    %112 = tpu.matmul %111, %109, %cst_64 {dimension_numbers = #tpu.dot_dimension_numbers<[1], [0], [0], [1], [0, 0, 1, 1], [], []>} : vector<8x4xf32>, vector<4x256xf32>, vector<8x256xf32> -> vector<8x256xf32>
    %113 = arith.addf %108, %112 : vector<8x256xf32>
    %c0_65 = arith.constant 0 : index
    %c34 = arith.constant 34 : index
    %114 = vector.load %arg17[%c0_65, %c34] : memref<4x290xf32, #tpu.memory_space<vmem>>, vector<4x256xf32>
    %c14_i32_66 = arith.constant 14 : i32
    %115 = vector.broadcast %c14_i32_66 : i32 to vector<4x256xi32>
    %116 = arith.cmpi sle, %52, %115 : vector<4x256xi32>
    %cst_67 = arith.constant 0.000000e+00 : f32
    %117 = vector.broadcast %cst_67 : f32 to vector<4x256xf32>
    %118 = arith.select %116, %114, %117 : vector<4x256xi1>, vector<4x256xf32>
    %c8 = arith.constant 8 : index
    %c0_68 = arith.constant 0 : index
    %c0_69 = arith.constant 0 : index
    %119 = vector.load %arg4[%c8, %c0_68, %c0_69] : memref<9x8x4xf32, #tpu.memory_space<vmem>>, vector<1x8x4xf32>
    %120 = vector.shape_cast %119 : vector<1x8x4xf32> to vector<8x4xf32>
    %cst_70 = arith.constant dense<0.000000e+00> : vector<8x256xf32>
    %121 = tpu.matmul %120, %118, %cst_70 {dimension_numbers = #tpu.dot_dimension_numbers<[1], [0], [0], [1], [0, 0, 1, 1], [], []>} : vector<8x4xf32>, vector<4x256xf32>, vector<8x256xf32> -> vector<8x256xf32>
    %122 = arith.addf %113, %121 : vector<8x256xf32>
    %c0_71 = arith.constant 0 : index
    %c0_72 = arith.constant 0 : index
    %123 = vector.load %arg5[%c0_71, %c0_72] : memref<8x1xf32, #tpu.memory_space<vmem>>, vector<8x1xf32>
    %124 = vector.broadcast %123 : vector<8x1xf32> to vector<8x256xf32>
    %125 = arith.addf %122, %124 : vector<8x256xf32>
    %cst_73 = arith.constant 0.000000e+00 : f32
    %126 = vector.broadcast %cst_73 : f32 to vector<8x290xf32>
    %c0_74 = arith.constant 0 : index
    %c0_75 = arith.constant 0 : index
    %127 = vector.load %arg18[%c0_74, %c0_75] : memref<8x290xf32, #tpu.memory_space<vmem>>, vector<8x290xf32>
    tpu.vector_store %arg18[%c0_74, %c0_75], %126 {strides = array<i32>} : memref<8x290xf32, #tpu.memory_space<vmem>>, vector<8x290xf32>,
    %c0_76 = arith.constant 0 : index
    %c17_77 = arith.constant 17 : index
    %128 = vector.load %arg18[%c0_76, %c17_77] : memref<8x290xf32, #tpu.memory_space<vmem>>, vector<8x256xf32>
    tpu.vector_store %arg18[%c0_76, %c17_77], %125 {strides = array<i32>} : memref<8x290xf32, #tpu.memory_space<vmem>>, vector<8x256xf32>,
    %129 = tpu.iota {dimensions = array<i32: 1>} : vector<8x256xi32>
    %c16_i32_78 = arith.constant 16 : i32
    %c0_i32_79 = arith.constant 0 : i32
    %130 = arith.cmpi eq, %c16_i32_78, %c0_i32_79 : i32
    %c1_i32_80 = arith.constant 1 : i32
    %131 = arith.select %130, %c1_i32_80, %c16_i32_78 : i32
    %132 = vector.broadcast %131 : i32 to vector<8x256xi32>
    %133 = arith.remsi %129, %132 : vector<8x256xi32>
    %c0_i32_81 = arith.constant 0 : i32
    %134 = vector.broadcast %c0_i32_81 : i32 to vector<8x256xi32>
    %135 = arith.cmpi ne, %133, %134 : vector<8x256xi32>
    %c0_i32_82 = arith.constant 0 : i32
    %136 = vector.broadcast %c0_i32_82 : i32 to vector<8x256xi32>
    %137 = arith.cmpi slt, %133, %136 : vector<8x256xi32>
    %c0_i32_83 = arith.constant 0 : i32
    %138 = arith.cmpi slt, %131, %c0_i32_83 : i32
    %139 = vector.broadcast %138 : i1 to vector<8x256xi1>
    %140 = vector.broadcast %139 : vector<8x256xi1> to vector<8x256xi1>
    %141 = arith.xori %137, %140 : vector<8x256xi1>
    %142 = arith.andi %141, %135 : vector<8x256xi1>
    %143 = vector.broadcast %131 : i32 to vector<8x256xi32>
    %144 = arith.addi %133, %143 : vector<8x256xi32>
    %145 = arith.select %142, %144, %133 : vector<8x256xi1>, vector<8x256xi32>
    %cst_84 = arith.constant 0.000000e+00 : f32
    %146 = vector.broadcast %cst_84 : f32 to vector<8x256xf32>
    %c0_85 = arith.constant 0 : index
    %c0_86 = arith.constant 0 : index
    %147 = vector.load %arg18[%c0_85, %c0_86] : memref<8x290xf32, #tpu.memory_space<vmem>>, vector<8x256xf32>
    %c1_i32_87 = arith.constant 1 : i32
    %148 = vector.broadcast %c1_i32_87 : i32 to vector<8x256xi32>
    %149 = arith.cmpi sge, %145, %148 : vector<8x256xi32>
    %cst_88 = arith.constant 0.000000e+00 : f32
    %150 = vector.broadcast %cst_88 : f32 to vector<8x256xf32>
    %151 = arith.select %149, %147, %150 : vector<8x256xi1>, vector<8x256xf32>
    %c0_89 = arith.constant 0 : index
    %c0_90 = arith.constant 0 : index
    %c0_91 = arith.constant 0 : index
    %152 = vector.load %arg6[%c0_89, %c0_90, %c0_91] : memref<9x8x8xf32, #tpu.memory_space<vmem>>, vector<1x8x8xf32>
    %153 = vector.shape_cast %152 : vector<1x8x8xf32> to vector<8x8xf32>
    %cst_92 = arith.constant dense<0.000000e+00> : vector<8x256xf32>
    %154 = tpu.matmul %153, %151, %cst_92 {dimension_numbers = #tpu.dot_dimension_numbers<[1], [0], [0], [1], [0, 0, 1, 1], [], []>} : vector<8x8xf32>, vector<8x256xf32>, vector<8x256xf32> -> vector<8x256xf32>
    %155 = arith.addf %146, %154 : vector<8x256xf32>
    %c0_93 = arith.constant 0 : index
    %c1_94 = arith.constant 1 : index
    %156 = vector.load %arg18[%c0_93, %c1_94] : memref<8x290xf32, #tpu.memory_space<vmem>>, vector<8x256xf32>
    %c1_95 = arith.constant 1 : index
    %c0_96 = arith.constant 0 : index
    %c0_97 = arith.constant 0 : index
    %157 = vector.load %arg6[%c1_95, %c0_96, %c0_97] : memref<9x8x8xf32, #tpu.memory_space<vmem>>, vector<1x8x8xf32>
    %158 = vector.shape_cast %157 : vector<1x8x8xf32> to vector<8x8xf32>
    %cst_98 = arith.constant dense<0.000000e+00> : vector<8x256xf32>
    %159 = tpu.matmul %158, %156, %cst_98 {dimension_numbers = #tpu.dot_dimension_numbers<[1], [0], [0], [1], [0, 0, 1, 1], [], []>} : vector<8x8xf32>, vector<8x256xf32>, vector<8x256xf32> -> vector<8x256xf32>
    %160 = arith.addf %155, %159 : vector<8x256xf32>
    %c0_99 = arith.constant 0 : index
    %c2_100 = arith.constant 2 : index
    %161 = vector.load %arg18[%c0_99, %c2_100] : memref<8x290xf32, #tpu.memory_space<vmem>>, vector<8x256xf32>
    %c14_i32_101 = arith.constant 14 : i32
    %162 = vector.broadcast %c14_i32_101 : i32 to vector<8x256xi32>
    %163 = arith.cmpi sle, %145, %162 : vector<8x256xi32>
    %cst_102 = arith.constant 0.000000e+00 : f32
    %164 = vector.broadcast %cst_102 : f32 to vector<8x256xf32>
    %165 = arith.select %163, %161, %164 : vector<8x256xi1>, vector<8x256xf32>
    %c2_103 = arith.constant 2 : index
    %c0_104 = arith.constant 0 : index
    %c0_105 = arith.constant 0 : index
    %166 = vector.load %arg6[%c2_103, %c0_104, %c0_105] : memref<9x8x8xf32, #tpu.memory_space<vmem>>, vector<1x8x8xf32>
    %167 = vector.shape_cast %166 : vector<1x8x8xf32> to vector<8x8xf32>
    %cst_106 = arith.constant dense<0.000000e+00> : vector<8x256xf32>
    %168 = tpu.matmul %167, %165, %cst_106 {dimension_numbers = #tpu.dot_dimension_numbers<[1], [0], [0], [1], [0, 0, 1, 1], [], []>} : vector<8x8xf32>, vector<8x256xf32>, vector<8x256xf32> -> vector<8x256xf32>
    %169 = arith.addf %160, %168 : vector<8x256xf32>
    %c0_107 = arith.constant 0 : index
    %c16_108 = arith.constant 16 : index
    %170 = vector.load %arg18[%c0_107, %c16_108] : memref<8x290xf32, #tpu.memory_space<vmem>>, vector<8x256xf32>
    %c1_i32_109 = arith.constant 1 : i32
    %171 = vector.broadcast %c1_i32_109 : i32 to vector<8x256xi32>
    %172 = arith.cmpi sge, %145, %171 : vector<8x256xi32>
    %cst_110 = arith.constant 0.000000e+00 : f32
    %173 = vector.broadcast %cst_110 : f32 to vector<8x256xf32>
    %174 = arith.select %172, %170, %173 : vector<8x256xi1>, vector<8x256xf32>
    %c3_111 = arith.constant 3 : index
    %c0_112 = arith.constant 0 : index
    %c0_113 = arith.constant 0 : index
    %175 = vector.load %arg6[%c3_111, %c0_112, %c0_113] : memref<9x8x8xf32, #tpu.memory_space<vmem>>, vector<1x8x8xf32>
    %176 = vector.shape_cast %175 : vector<1x8x8xf32> to vector<8x8xf32>
    %cst_114 = arith.constant dense<0.000000e+00> : vector<8x256xf32>
    %177 = tpu.matmul %176, %174, %cst_114 {dimension_numbers = #tpu.dot_dimension_numbers<[1], [0], [0], [1], [0, 0, 1, 1], [], []>} : vector<8x8xf32>, vector<8x256xf32>, vector<8x256xf32> -> vector<8x256xf32>
    %178 = arith.addf %169, %177 : vector<8x256xf32>
    %c0_115 = arith.constant 0 : index
    %c17_116 = arith.constant 17 : index
    %179 = vector.load %arg18[%c0_115, %c17_116] : memref<8x290xf32, #tpu.memory_space<vmem>>, vector<8x256xf32>
    %c4_117 = arith.constant 4 : index
    %c0_118 = arith.constant 0 : index
    %c0_119 = arith.constant 0 : index
    %180 = vector.load %arg6[%c4_117, %c0_118, %c0_119] : memref<9x8x8xf32, #tpu.memory_space<vmem>>, vector<1x8x8xf32>
    %181 = vector.shape_cast %180 : vector<1x8x8xf32> to vector<8x8xf32>
    %cst_120 = arith.constant dense<0.000000e+00> : vector<8x256xf32>
    %182 = tpu.matmul %181, %179, %cst_120 {dimension_numbers = #tpu.dot_dimension_numbers<[1], [0], [0], [1], [0, 0, 1, 1], [], []>} : vector<8x8xf32>, vector<8x256xf32>, vector<8x256xf32> -> vector<8x256xf32>
    %183 = arith.addf %178, %182 : vector<8x256xf32>
    %c0_121 = arith.constant 0 : index
    %c18_122 = arith.constant 18 : index
    %184 = vector.load %arg18[%c0_121, %c18_122] : memref<8x290xf32, #tpu.memory_space<vmem>>, vector<8x256xf32>
    %c14_i32_123 = arith.constant 14 : i32
    %185 = vector.broadcast %c14_i32_123 : i32 to vector<8x256xi32>
    %186 = arith.cmpi sle, %145, %185 : vector<8x256xi32>
    %cst_124 = arith.constant 0.000000e+00 : f32
    %187 = vector.broadcast %cst_124 : f32 to vector<8x256xf32>
    %188 = arith.select %186, %184, %187 : vector<8x256xi1>, vector<8x256xf32>
    %c5_125 = arith.constant 5 : index
    %c0_126 = arith.constant 0 : index
    %c0_127 = arith.constant 0 : index
    %189 = vector.load %arg6[%c5_125, %c0_126, %c0_127] : memref<9x8x8xf32, #tpu.memory_space<vmem>>, vector<1x8x8xf32>
    %190 = vector.shape_cast %189 : vector<1x8x8xf32> to vector<8x8xf32>
    %cst_128 = arith.constant dense<0.000000e+00> : vector<8x256xf32>
    %191 = tpu.matmul %190, %188, %cst_128 {dimension_numbers = #tpu.dot_dimension_numbers<[1], [0], [0], [1], [0, 0, 1, 1], [], []>} : vector<8x8xf32>, vector<8x256xf32>, vector<8x256xf32> -> vector<8x256xf32>
    %192 = arith.addf %183, %191 : vector<8x256xf32>
    %c0_129 = arith.constant 0 : index
    %c32_130 = arith.constant 32 : index
    %193 = vector.load %arg18[%c0_129, %c32_130] : memref<8x290xf32, #tpu.memory_space<vmem>>, vector<8x256xf32>
    %c1_i32_131 = arith.constant 1 : i32
    %194 = vector.broadcast %c1_i32_131 : i32 to vector<8x256xi32>
    %195 = arith.cmpi sge, %145, %194 : vector<8x256xi32>
    %cst_132 = arith.constant 0.000000e+00 : f32
    %196 = vector.broadcast %cst_132 : f32 to vector<8x256xf32>
    %197 = arith.select %195, %193, %196 : vector<8x256xi1>, vector<8x256xf32>
    %c6_133 = arith.constant 6 : index
    %c0_134 = arith.constant 0 : index
    %c0_135 = arith.constant 0 : index
    %198 = vector.load %arg6[%c6_133, %c0_134, %c0_135] : memref<9x8x8xf32, #tpu.memory_space<vmem>>, vector<1x8x8xf32>
    %199 = vector.shape_cast %198 : vector<1x8x8xf32> to vector<8x8xf32>
    %cst_136 = arith.constant dense<0.000000e+00> : vector<8x256xf32>
    %200 = tpu.matmul %199, %197, %cst_136 {dimension_numbers = #tpu.dot_dimension_numbers<[1], [0], [0], [1], [0, 0, 1, 1], [], []>} : vector<8x8xf32>, vector<8x256xf32>, vector<8x256xf32> -> vector<8x256xf32>
    %201 = arith.addf %192, %200 : vector<8x256xf32>
    %c0_137 = arith.constant 0 : index
    %c33_138 = arith.constant 33 : index
    %202 = vector.load %arg18[%c0_137, %c33_138] : memref<8x290xf32, #tpu.memory_space<vmem>>, vector<8x256xf32>
    %c7_139 = arith.constant 7 : index
    %c0_140 = arith.constant 0 : index
    %c0_141 = arith.constant 0 : index
    %203 = vector.load %arg6[%c7_139, %c0_140, %c0_141] : memref<9x8x8xf32, #tpu.memory_space<vmem>>, vector<1x8x8xf32>
    %204 = vector.shape_cast %203 : vector<1x8x8xf32> to vector<8x8xf32>
    %cst_142 = arith.constant dense<0.000000e+00> : vector<8x256xf32>
    %205 = tpu.matmul %204, %202, %cst_142 {dimension_numbers = #tpu.dot_dimension_numbers<[1], [0], [0], [1], [0, 0, 1, 1], [], []>} : vector<8x8xf32>, vector<8x256xf32>, vector<8x256xf32> -> vector<8x256xf32>
    %206 = arith.addf %201, %205 : vector<8x256xf32>
    %c0_143 = arith.constant 0 : index
    %c34_144 = arith.constant 34 : index
    %207 = vector.load %arg18[%c0_143, %c34_144] : memref<8x290xf32, #tpu.memory_space<vmem>>, vector<8x256xf32>
    %c14_i32_145 = arith.constant 14 : i32
    %208 = vector.broadcast %c14_i32_145 : i32 to vector<8x256xi32>
    %209 = arith.cmpi sle, %145, %208 : vector<8x256xi32>
    %cst_146 = arith.constant 0.000000e+00 : f32
    %210 = vector.broadcast %cst_146 : f32 to vector<8x256xf32>
    %211 = arith.select %209, %207, %210 : vector<8x256xi1>, vector<8x256xf32>
    %c8_147 = arith.constant 8 : index
    %c0_148 = arith.constant 0 : index
    %c0_149 = arith.constant 0 : index
    %212 = vector.load %arg6[%c8_147, %c0_148, %c0_149] : memref<9x8x8xf32, #tpu.memory_space<vmem>>, vector<1x8x8xf32>
    %213 = vector.shape_cast %212 : vector<1x8x8xf32> to vector<8x8xf32>
    %cst_150 = arith.constant dense<0.000000e+00> : vector<8x256xf32>
    %214 = tpu.matmul %213, %211, %cst_150 {dimension_numbers = #tpu.dot_dimension_numbers<[1], [0], [0], [1], [0, 0, 1, 1], [], []>} : vector<8x8xf32>, vector<8x256xf32>, vector<8x256xf32> -> vector<8x256xf32>
    %215 = arith.addf %206, %214 : vector<8x256xf32>
    %c0_151 = arith.constant 0 : index
    %c0_152 = arith.constant 0 : index
    %216 = vector.load %arg7[%c0_151, %c0_152] : memref<8x1xf32, #tpu.memory_space<vmem>>, vector<8x1xf32>
    %217 = vector.broadcast %216 : vector<8x1xf32> to vector<8x256xf32>
    %218 = arith.addf %215, %217 : vector<8x256xf32>
    %c0_153 = arith.constant 0 : index
    %c0_154 = arith.constant 0 : index
    %219 = vector.load %arg8[%c0_153, %c0_154] : memref<8x4xf32, #tpu.memory_space<vmem>>, vector<8x4xf32>
    %cst_155 = arith.constant dense<0.000000e+00> : vector<8x256xf32>
    %220 = tpu.matmul %219, %1, %cst_155 {dimension_numbers = #tpu.dot_dimension_numbers<[1], [0], [0], [1], [0, 0, 1, 1], [], []>} : vector<8x4xf32>, vector<4x256xf32>, vector<8x256xf32> -> vector<8x256xf32>
    %c0_156 = arith.constant 0 : index
    %c0_157 = arith.constant 0 : index
    %221 = vector.load %arg9[%c0_156, %c0_157] : memref<8x1xf32, #tpu.memory_space<vmem>>, vector<8x1xf32>
    %222 = vector.broadcast %221 : vector<8x1xf32> to vector<8x256xf32>
    %223 = arith.addf %220, %222 : vector<8x256xf32>
    %224 = arith.addf %218, %223 : vector<8x256xf32>
    %cst_158 = arith.constant 0.707106769 : f32
    %225 = vector.broadcast %cst_158 : f32 to vector<8x256xf32>
    %226 = arith.mulf %224, %225 : vector<8x256xf32>
    %c0_159 = arith.constant 0 : index
    %c0_160 = arith.constant 0 : index
    %227 = vector.load %arg19[%c0_159, %c0_160] : memref<8x256xf32, #tpu.memory_space<vmem>>, vector<8x256xf32>
    tpu.vector_store %arg19[%c0_159, %c0_160], %226 {strides = array<i32>} : memref<8x256xf32, #tpu.memory_space<vmem>>, vector<8x256xf32>,
    %c0_161 = arith.constant 0 : index
    %c0_162 = arith.constant 0 : index
    %228 = vector.load %arg10[%c0_161, %c0_162] : memref<8x1xf32, #tpu.memory_space<vmem>>, vector<8x1xf32>
    %c0_163 = arith.constant 0 : index
    %c0_164 = arith.constant 0 : index
    %229 = vector.load %arg11[%c0_163, %c0_164] : memref<8x1xf32, #tpu.memory_space<vmem>>, vector<8x1xf32>
    %230 = tpu.iota {dimensions = array<i32: 0>} : vector<8x1xi32>
    %cst_165 = arith.constant 0.000000e+00 : f32
    %231 = vector.broadcast %cst_165 : f32 to vector<8x1xf32>
    %cst_166 = arith.constant 0.000000e+00 : f32
    %232 = vector.broadcast %cst_166 : f32 to vector<8x1xf32>
    %c0_167 = arith.constant 0 : index
    %c0_168 = arith.constant 0 : index
    %233 = vector.load %arg19[%c0_167, %c0_168] : memref<8x256xf32, #tpu.memory_space<vmem>>, vector<4x256xf32>
    %234 = vector.shape_cast %233 : vector<4x256xf32> to vector<1x4x256xf32>
    %cst_169 = arith.constant dense<0.000000e+00> : vector<1xf32>
    %235 = vector.multi_reduction <add>, %234, %cst_169 [1, 2] : vector<1x4x256xf32> to vector<1xf32>
    %236 = vector.shape_cast %235 : vector<1xf32> to vector<1x1x1xf32>
    %237 = vector.extract %236[0, 0, 0] : f32 from vector<1x1x1xf32>
    %cst_170 = arith.constant 1.024000e+03 : f32
    %238 = arith.divf %237, %cst_170 : f32
    %239 = arith.mulf %233, %233 : vector<4x256xf32>
    %240 = vector.shape_cast %239 : vector<4x256xf32> to vector<1x4x256xf32>
    %cst_171 = arith.constant dense<0.000000e+00> : vector<1xf32>
    %241 = vector.multi_reduction <add>, %240, %cst_171 [1, 2] : vector<1x4x256xf32> to vector<1xf32>
    %242 = vector.shape_cast %241 : vector<1xf32> to vector<1x1x1xf32>
    %243 = vector.extract %242[0, 0, 0] : f32 from vector<1x1x1xf32>
    %cst_172 = arith.constant 1.024000e+03 : f32
    %244 = arith.divf %243, %cst_172 : f32
    %245 = arith.mulf %238, %238 : f32
    %246 = arith.subf %244, %245 : f32
    %c0_i32_173 = arith.constant 0 : i32
    %247 = vector.broadcast %c0_i32_173 : i32 to vector<8x1xi32>
    %248 = arith.cmpi sge, %230, %247 : vector<8x1xi32>
    %c4_i32 = arith.constant 4 : i32
    %249 = vector.broadcast %c4_i32 : i32 to vector<8x1xi32>
    %250 = arith.cmpi slt, %230, %249 : vector<8x1xi32>
    %251 = arith.andi %248, %250 : vector<8x1xi1>
    %252 = vector.broadcast %238 : f32 to vector<8x1xf32>
    %253 = arith.select %251, %252, %231 : vector<8x1xi1>, vector<8x1xf32>
    %cst_174 = arith.constant 9.99999974E-6 : f32
    %254 = arith.addf %246, %cst_174 : f32
    %255 = math.rsqrt %254 : f32
    %256 = vector.broadcast %255 : f32 to vector<8x1xf32>
    %257 = arith.select %251, %256, %232 : vector<8x1xi1>, vector<8x1xf32>
    %c4_175 = arith.constant 4 : index
    %c0_176 = arith.constant 0 : index
    %258 = vector.load %arg19[%c4_175, %c0_176] : memref<8x256xf32, #tpu.memory_space<vmem>>, vector<4x256xf32>
    %259 = vector.shape_cast %258 : vector<4x256xf32> to vector<1x4x256xf32>
    %cst_177 = arith.constant dense<0.000000e+00> : vector<1xf32>
    %260 = vector.multi_reduction <add>, %259, %cst_177 [1, 2] : vector<1x4x256xf32> to vector<1xf32>
    %261 = vector.shape_cast %260 : vector<1xf32> to vector<1x1x1xf32>
    %262 = vector.extract %261[0, 0, 0] : f32 from vector<1x1x1xf32>
    %cst_178 = arith.constant 1.024000e+03 : f32
    %263 = arith.divf %262, %cst_178 : f32
    %264 = arith.mulf %258, %258 : vector<4x256xf32>
    %265 = vector.shape_cast %264 : vector<4x256xf32> to vector<1x4x256xf32>
    %cst_179 = arith.constant dense<0.000000e+00> : vector<1xf32>
    %266 = vector.multi_reduction <add>, %265, %cst_179 [1, 2] : vector<1x4x256xf32> to vector<1xf32>
    %267 = vector.shape_cast %266 : vector<1xf32> to vector<1x1x1xf32>
    %268 = vector.extract %267[0, 0, 0] : f32 from vector<1x1x1xf32>
    %cst_180 = arith.constant 1.024000e+03 : f32
    %269 = arith.divf %268, %cst_180 : f32
    %270 = arith.mulf %263, %263 : f32
    %271 = arith.subf %269, %270 : f32
    %c4_i32_181 = arith.constant 4 : i32
    %272 = vector.broadcast %c4_i32_181 : i32 to vector<8x1xi32>
    %273 = arith.cmpi sge, %230, %272 : vector<8x1xi32>
    %c8_i32 = arith.constant 8 : i32
    %274 = vector.broadcast %c8_i32 : i32 to vector<8x1xi32>
    %275 = arith.cmpi slt, %230, %274 : vector<8x1xi32>
    %276 = arith.andi %273, %275 : vector<8x1xi1>
    %277 = vector.broadcast %263 : f32 to vector<8x1xf32>
    %278 = arith.select %276, %277, %253 : vector<8x1xi1>, vector<8x1xf32>
    %cst_182 = arith.constant 9.99999974E-6 : f32
    %279 = arith.addf %271, %cst_182 : f32
    %280 = math.rsqrt %279 : f32
    %281 = vector.broadcast %280 : f32 to vector<8x1xf32>
    %282 = arith.select %276, %281, %257 : vector<8x1xi1>, vector<8x1xf32>
    %283 = vector.broadcast %278 : vector<8x1xf32> to vector<8x256xf32>
    %284 = arith.subf %226, %283 : vector<8x256xf32>
    %285 = vector.broadcast %282 : vector<8x1xf32> to vector<8x256xf32>
    %286 = arith.mulf %284, %285 : vector<8x256xf32>
    %287 = vector.broadcast %228 : vector<8x1xf32> to vector<8x256xf32>
    %288 = arith.mulf %286, %287 : vector<8x256xf32>
    %289 = vector.broadcast %229 : vector<8x1xf32> to vector<8x256xf32>
    %290 = arith.addf %288, %289 : vector<8x256xf32>
    %c0_183 = arith.constant 0 : index
    %c0_184 = arith.constant 0 : index
    %291 = vector.load %arg12[%c0_183, %c0_184] : memref<24x8xf32, #tpu.memory_space<vmem>>, vector<24x8xf32>
    %cst_185 = arith.constant dense<0.000000e+00> : vector<24x256xf32>
    %292 = tpu.matmul %291, %290, %cst_185 {dimension_numbers = #tpu.dot_dimension_numbers<[1], [0], [0], [1], [0, 0, 1, 1], [], []>} : vector<24x8xf32>, vector<8x256xf32>, vector<24x256xf32> -> vector<24x256xf32>
    %c0_186 = arith.constant 0 : index
    %c0_187 = arith.constant 0 : index
    %293 = vector.load %arg13[%c0_186, %c0_187] : memref<24x1xf32, #tpu.memory_space<vmem>>, vector<24x1xf32>
    %294 = vector.broadcast %293 : vector<24x1xf32> to vector<24x256xf32>
    %295 = arith.addf %292, %294 : vector<24x256xf32>
    %c0_188 = arith.constant 0 : index
    %c0_189 = arith.constant 0 : index
    %296 = vector.load %arg20[%c0_188, %c0_189] : memref<24x256xf32, #tpu.memory_space<vmem>>, vector<24x256xf32>
    tpu.vector_store %arg20[%c0_188, %c0_189], %295 {strides = array<i32>} : memref<24x256xf32, #tpu.memory_space<vmem>>, vector<24x256xf32>,
    %cst_190 = arith.constant 0.000000e+00 : f32
    %297 = vector.broadcast %cst_190 : f32 to vector<8x256xf32>
    %c0_191 = arith.constant 0 : index
    %c0_192 = arith.constant 0 : index
    %298 = vector.load %arg20[%c0_191, %c0_192] : memref<24x256xf32, #tpu.memory_space<vmem>>, vector<4x256xf32>
    %c4_193 = arith.constant 4 : index
    %c0_194 = arith.constant 0 : index
    %299 = vector.load %arg20[%c4_193, %c0_194] : memref<24x256xf32, #tpu.memory_space<vmem>>, vector<4x256xf32>
    %c8_195 = arith.constant 8 : index
    %c0_196 = arith.constant 0 : index
    %300 = vector.load %arg20[%c8_195, %c0_196] : memref<24x256xf32, #tpu.memory_space<vmem>>, vector<4x256xf32>
    %cst_197 = arith.constant 5.000000e-01 : f32
    %301 = vector.broadcast %cst_197 : f32 to vector<4x256xf32>
    %302 = arith.mulf %299, %301 : vector<4x256xf32>
    %cst_198 = arith.constant dense<0.000000e+00> : vector<256x256xf32>
    %303 = tpu.matmul %298, %302, %cst_198 {dimension_numbers = #tpu.dot_dimension_numbers<[0], [0], [1], [1], [0, 1, 1, 1], [], []>} : vector<4x256xf32>, vector<4x256xf32>, vector<256x256xf32> -> vector<256x256xf32>
    %cst_199 = arith.constant dense<0xFF800000> : vector<256xf32>
    %304 = vector.multi_reduction <maximumf>, %303, %cst_199 [1] : vector<256x256xf32> to vector<256xf32>
    %305 = vector.shape_cast %304 : vector<256xf32> to vector<256x1xf32>
    %306 = vector.broadcast %305 : vector<256x1xf32> to vector<256x256xf32>
    %307 = arith.subf %303, %306 : vector<256x256xf32>
    %308 = math.exp %307 : vector<256x256xf32>
    %cst_200 = arith.constant dense<0.000000e+00> : vector<256xf32>
    %309 = vector.multi_reduction <add>, %308, %cst_200 [1] : vector<256x256xf32> to vector<256xf32>
    %310 = vector.shape_cast %309 : vector<256xf32> to vector<256x1xf32>
    %311 = tpu.reciprocal %310 {approx = true} : vector<256x1xf32> -> vector<256x1xf32>
    %312 = vector.broadcast %311 : vector<256x1xf32> to vector<256x256xf32>
    %313 = arith.mulf %308, %312 : vector<256x256xf32>
    %cst_201 = arith.constant dense<0.000000e+00> : vector<4x256xf32>
    %314 = tpu.matmul %300, %313, %cst_201 {dimension_numbers = #tpu.dot_dimension_numbers<[1], [1], [0], [0], [0, 0, 1, 0], [], []>} : vector<4x256xf32>, vector<256x256xf32>, vector<4x256xf32> -> vector<4x256xf32>
    %c0_202 = arith.constant 0 : index
    %c0_203 = arith.constant 0 : index
    %315 = vector.load %arg14[%c0_202, %c0_203] : memref<8x8xf32, #tpu.memory_space<vmem>>, vector<8x4xf32>
    %cst_204 = arith.constant dense<0.000000e+00> : vector<8x256xf32>
    %316 = tpu.matmul %315, %314, %cst_204 {dimension_numbers = #tpu.dot_dimension_numbers<[1], [0], [0], [1], [0, 0, 1, 1], [], []>} : vector<8x4xf32>, vector<4x256xf32>, vector<8x256xf32> -> vector<8x256xf32>
    %317 = arith.addf %297, %316 : vector<8x256xf32>
    %c12 = arith.constant 12 : index
    %c0_205 = arith.constant 0 : index
    %318 = vector.load %arg20[%c12, %c0_205] : memref<24x256xf32, #tpu.memory_space<vmem>>, vector<4x256xf32>
    %c16_206 = arith.constant 16 : index
    %c0_207 = arith.constant 0 : index
    %319 = vector.load %arg20[%c16_206, %c0_207] : memref<24x256xf32, #tpu.memory_space<vmem>>, vector<4x256xf32>
    %c20 = arith.constant 20 : index
    %c0_208 = arith.constant 0 : index
    %320 = vector.load %arg20[%c20, %c0_208] : memref<24x256xf32, #tpu.memory_space<vmem>>, vector<4x256xf32>
    %cst_209 = arith.constant 5.000000e-01 : f32
    %321 = vector.broadcast %cst_209 : f32 to vector<4x256xf32>
    %322 = arith.mulf %319, %321 : vector<4x256xf32>
    %cst_210 = arith.constant dense<0.000000e+00> : vector<256x256xf32>
    %323 = tpu.matmul %318, %322, %cst_210 {dimension_numbers = #tpu.dot_dimension_numbers<[0], [0], [1], [1], [0, 1, 1, 1], [], []>} : vector<4x256xf32>, vector<4x256xf32>, vector<256x256xf32> -> vector<256x256xf32>
    %cst_211 = arith.constant dense<0xFF800000> : vector<256xf32>
    %324 = vector.multi_reduction <maximumf>, %323, %cst_211 [1] : vector<256x256xf32> to vector<256xf32>
    %325 = vector.shape_cast %324 : vector<256xf32> to vector<256x1xf32>
    %326 = vector.broadcast %325 : vector<256x1xf32> to vector<256x256xf32>
    %327 = arith.subf %323, %326 : vector<256x256xf32>
    %328 = math.exp %327 : vector<256x256xf32>
    %cst_212 = arith.constant dense<0.000000e+00> : vector<256xf32>
    %329 = vector.multi_reduction <add>, %328, %cst_212 [1] : vector<256x256xf32> to vector<256xf32>
    %330 = vector.shape_cast %329 : vector<256xf32> to vector<256x1xf32>
    %331 = tpu.reciprocal %330 {approx = true} : vector<256x1xf32> -> vector<256x1xf32>
    %332 = vector.broadcast %331 : vector<256x1xf32> to vector<256x256xf32>
    %333 = arith.mulf %328, %332 : vector<256x256xf32>
    %cst_213 = arith.constant dense<0.000000e+00> : vector<4x256xf32>
    %334 = tpu.matmul %320, %333, %cst_213 {dimension_numbers = #tpu.dot_dimension_numbers<[1], [1], [0], [0], [0, 0, 1, 0], [], []>} : vector<4x256xf32>, vector<256x256xf32>, vector<4x256xf32> -> vector<4x256xf32>
    %c0_214 = arith.constant 0 : index
    %c4_215 = arith.constant 4 : index
    %335 = vector.load %arg14[%c0_214, %c4_215] : memref<8x8xf32, #tpu.memory_space<vmem>>, vector<8x4xf32>
    %cst_216 = arith.constant dense<0.000000e+00> : vector<8x256xf32>
    %336 = tpu.matmul %335, %334, %cst_216 {dimension_numbers = #tpu.dot_dimension_numbers<[1], [0], [0], [1], [0, 0, 1, 1], [], []>} : vector<8x4xf32>, vector<4x256xf32>, vector<8x256xf32> -> vector<8x256xf32>
    %337 = arith.addf %317, %336 : vector<8x256xf32>
    %c0_217 = arith.constant 0 : index
    %c0_218 = arith.constant 0 : index
    %338 = vector.load %arg15[%c0_217, %c0_218] : memref<8x1xf32, #tpu.memory_space<vmem>>, vector<8x1xf32>
    %339 = vector.broadcast %338 : vector<8x1xf32> to vector<8x256xf32>
    %340 = arith.addf %337, %339 : vector<8x256xf32>
    %341 = arith.addf %340, %226 : vector<8x256xf32>
    %cst_219 = arith.constant 0.707106769 : f32
    %342 = vector.broadcast %cst_219 : f32 to vector<8x256xf32>
    %343 = arith.mulf %341, %342 : vector<8x256xf32>
    %c0_220 = arith.constant 0 : index
    %c0_221 = arith.constant 0 : index
    %c0_222 = arith.constant 0 : index
    %344 = vector.load %arg16[%c0_220, %c0_221, %c0_222] : memref<1x8x256xf32, #tpu.memory_space<vmem>>, vector<1x8x256xf32>
    %345 = vector.shape_cast %344 : vector<1x8x256xf32> to vector<8x256xf32>
    %346 = vector.shape_cast %343 : vector<8x256xf32> to vector<1x8x256xf32>
    tpu.vector_store %arg16[%c0_220, %c0_221, %c0_222], %346 {strides = array<i32>} : memref<1x8x256xf32, #tpu.memory_space<vmem>>, vector<1x8x256xf32>,
    return
  }
  func.func @transform_0(%arg0: i32) -> (i32, i32, i32) {
    %c0_i32 = arith.constant 0 : i32
    %c0_i32_0 = arith.constant 0 : i32
    %c0_i32_1 = arith.constant 0 : i32
    return %arg0, %c0_i32, %c0_i32_0 : i32, i32, i32
  }
  func.func @transform_1(%arg0: i32) -> (i32, i32) {
    %c0_i32 = arith.constant 0 : i32
    %c0_i32_0 = arith.constant 0 : i32
    %c0_i32_1 = arith.constant 0 : i32
    return %c0_i32, %c0_i32_0 : i32, i32
  }
  func.func @transform_2(%arg0: i32) -> (i32, i32) {
    %c0_i32 = arith.constant 0 : i32
    %c0_i32_0 = arith.constant 0 : i32
    %c0_i32_1 = arith.constant 0 : i32
    return %c0_i32, %c0_i32_0 : i32, i32
  }
  func.func @transform_3(%arg0: i32) -> (i32, i32, i32) {
    %c0_i32 = arith.constant 0 : i32
    %c0_i32_0 = arith.constant 0 : i32
    %c0_i32_1 = arith.constant 0 : i32
    %c0_i32_2 = arith.constant 0 : i32
    return %c0_i32, %c0_i32_0, %c0_i32_1 : i32, i32, i32
  }
  func.func @transform_4(%arg0: i32) -> (i32, i32) {
    %c0_i32 = arith.constant 0 : i32
    %c0_i32_0 = arith.constant 0 : i32
    %c0_i32_1 = arith.constant 0 : i32
    return %c0_i32, %c0_i32_0 : i32, i32
  }
  func.func @transform_5(%arg0: i32) -> (i32, i32, i32) {
    %c0_i32 = arith.constant 0 : i32
    %c0_i32_0 = arith.constant 0 : i32
    %c0_i32_1 = arith.constant 0 : i32
    %c0_i32_2 = arith.constant 0 : i32
    return %c0_i32, %c0_i32_0, %c0_i32_1 : i32, i32, i32
  }
  func.func @transform_6(%arg0: i32) -> (i32, i32) {
    %c0_i32 = arith.constant 0 : i32
    %c0_i32_0 = arith.constant 0 : i32
    %c0_i32_1 = arith.constant 0 : i32
    return %c0_i32, %c0_i32_0 : i32, i32
  }
  func.func @transform_7(%arg0: i32) -> (i32, i32) {
    %c0_i32 = arith.constant 0 : i32
    %c0_i32_0 = arith.constant 0 : i32
    %c0_i32_1 = arith.constant 0 : i32
    return %c0_i32, %c0_i32_0 : i32, i32
  }
  func.func @transform_8(%arg0: i32) -> (i32, i32) {
    %c0_i32 = arith.constant 0 : i32
    %c0_i32_0 = arith.constant 0 : i32
    %c0_i32_1 = arith.constant 0 : i32
    return %c0_i32, %c0_i32_0 : i32, i32
  }
  func.func @transform_9(%arg0: i32) -> (i32, i32) {
    %c0_i32 = arith.constant 0 : i32
    %c0_i32_0 = arith.constant 0 : i32
    %c0_i32_1 = arith.constant 0 : i32
    return %c0_i32, %c0_i32_0 : i32, i32
  }
  func.func @transform_10(%arg0: i32) -> (i32, i32) {
    %c0_i32 = arith.constant 0 : i32
    %c0_i32_0 = arith.constant 0 : i32
    %c0_i32_1 = arith.constant 0 : i32
    return %c0_i32, %c0_i32_0 : i32, i32
  }
  func.func @transform_11(%arg0: i32) -> (i32, i32) {
    %c0_i32 = arith.constant 0 : i32
    %c0_i32_0 = arith.constant 0 : i32
    %c0_i32_1 = arith.constant 0 : i32
    return %c0_i32, %c0_i32_0 : i32, i32
  }
  func.func @transform_12(%arg0: i32) -> (i32, i32) {
    %c0_i32 = arith.constant 0 : i32
    %c0_i32_0 = arith.constant 0 : i32
    %c0_i32_1 = arith.constant 0 : i32
    return %c0_i32, %c0_i32_0 : i32, i32
  }
  func.func @transform_13(%arg0: i32) -> (i32, i32) {
    %c0_i32 = arith.constant 0 : i32
    %c0_i32_0 = arith.constant 0 : i32
    %c0_i32_1 = arith.constant 0 : i32
    return %c0_i32, %c0_i32_0 : i32, i32
  }
  func.func @transform_14(%arg0: i32) -> (i32, i32) {
    %c0_i32 = arith.constant 0 : i32
    %c0_i32_0 = arith.constant 0 : i32
    %c0_i32_1 = arith.constant 0 : i32
    return %c0_i32, %c0_i32_0 : i32, i32
  }
  func.func @transform_15(%arg0: i32) -> (i32, i32, i32) {
    %c0_i32 = arith.constant 0 : i32
    %c0_i32_0 = arith.constant 0 : i32
    %c0_i32_1 = arith.constant 0 : i32
    return %arg0, %c0_i32, %c0_i32_0 : i32, i32, i32
  }
}

</mosaic_0001>

<llo_original>
// kernel: _lambda_.1
$region0: #{_lambda_.1}
  #allocation0 [shape = 'u32[]', space=smem, size = 0x4, offset = 0x4, fixed_abs, tag = 'smem constant byte address 0x4 - core index']
  #allocation1 [shape = 'u32[144,128]{1,0:T(1,128)}', space=vmem, size = 0x12000, scoped, tag = 'internal scratch']
  #allocation2 [shape = 'f32[4,290]{1,0:T(4,128)}', space=vmem, size = 0x1800, scoped, tag = 'scratch operand']
  #allocation3 [shape = 'f32[8,290]{1,0:T(8,128)}', space=vmem, size = 0x3000, scoped, tag = 'scratch operand']
  #allocation4 [shape = 'f32[8,256]{1,0:T(8,128)}', space=vmem, size = 0x2000, scoped, tag = 'scratch operand']
  #allocation5 [shape = 'f32[24,256]{1,0:T(8,128)}', space=vmem, size = 0x6000, scoped, tag = 'scratch operand']
  %s0 = inlined_call_operand.vmem [shape: f32[2,4,256], index: 0, kind: input, shape index: {}]
  %s1 = inlined_call_operand.vmem [shape: f32[4,1], index: 1, kind: input, shape index: {}]
  %s2 = inlined_call_operand.vmem [shape: f32[4,1], index: 2, kind: input, shape index: {}]
  %s3 = inlined_call_operand.vmem [shape: f32[9,8,4], index: 3, kind: input, shape index: {}]
  %s4 = inlined_call_operand.vmem [shape: f32[8,1], index: 4, kind: input, shape index: {}]
  %s5 = inlined_call_operand.vmem [shape: f32[9,8,8], index: 5, kind: input, shape index: {}]
  %s6 = inlined_call_operand.vmem [shape: f32[8,1], index: 6, kind: input, shape index: {}]
  %s7 = inlined_call_operand.vmem [shape: f32[8,4], index: 7, kind: input, shape index: {}]
  %s8 = inlined_call_operand.vmem [shape: f32[8,1], index: 8, kind: input, shape index: {}]
  %s9 = inlined_call_operand.vmem [shape: f32[8,1], index: 9, kind: input, shape index: {}]
  %s10 = inlined_call_operand.vmem [shape: f32[8,1], index: 10, kind: input, shape index: {}]
  %s11 = inlined_call_operand.vmem [shape: f32[24,8], index: 11, kind: input, shape index: {}]
  %s12 = inlined_call_operand.vmem [shape: f32[24,1], index: 12, kind: input, shape index: {}]
  %s13 = inlined_call_operand.vmem [shape: f32[8,8], index: 13, kind: input, shape index: {}]
  %s14 = inlined_call_operand.vmem [shape: f32[8,1], index: 14, kind: input, shape index: {}]
  %s15 = inlined_call_operand.vmem [shape: f32[2,8,256], index: 15, kind: output, shape index: {}]
  %s16 = sld [smem:[#allocation0]]
  $region93: #{_lambda_.1} parent=0
    _
  %s18 = ssub.s32 1, %s16
  %s19 = scalar_select 0, %s18, %s16
  loop: start=0, step=1, limit=4
  $region2: #{_lambda_.1} parent=0 // loop_pre_header
    _
  $region3: #{_lambda_.1} parent=0 // loop_header
    %s21 = sphi 0, %s25
    %p22 = scmp.ge.s32.totalorder %s21, 4
    %s31 = sphi 0, %s33
    %s34 = sphi 0, %s31
    %s35 = sphi 0, %s34
    %s51 = sphi 0, %s35
    %s55 = sphi 0, %s55
    %s57 = sphi 0, %s55
    %s58 = sphi 0, %s57
    %s72 = sphi 0, %s58
    %s76 = sphi 0, %s76
    %s78 = sphi 0, %s76
    %s79 = sphi 0, %s78
    %s93 = sphi 0, %s79
    %s97 = sphi 0, %s97
    %s99 = sphi 0, %s97
    %s100 = sphi 0, %s99
    %s114 = sphi 0, %s100
    %s118 = sphi 0, %s118
    %s120 = sphi 0, %s118
    %s121 = sphi 0, %s120
    %s135 = sphi 0, %s121
    %s139 = sphi 0, %s139
    %s141 = sphi 0, %s139
    %s142 = sphi 0, %s141
    %s156 = sphi 0, %s142
    %s160 = sphi 0, %s160
    %s162 = sphi 0, %s160
    %s163 = sphi 0, %s162
    %s177 = sphi 0, %s163
    %s181 = sphi 0, %s181
    %s183 = sphi 0, %s181
    %s184 = sphi 0, %s183
    %s198 = sphi 0, %s184
    %s202 = sphi 0, %s202
    %s204 = sphi 0, %s202
    %s205 = sphi 0, %s204
    %s219 = sphi 0, %s205
    %s223 = sphi 0, %s223
    %s225 = sphi 0, %s223
    %s226 = sphi 0, %s225
    %s240 = sphi 0, %s226
    %s244 = sphi 0, %s244
    %s246 = sphi 0, %s244
    %s247 = sphi 0, %s246
    %s261 = sphi 0, %s247
    %s265 = sphi 0, %s265
    %s267 = sphi 0, %s265
    %s268 = sphi 0, %s267
    %s282 = sphi 0, %s268
    %s286 = sphi 0, %s286
    %s288 = sphi 0, %s286
    %s289 = sphi 0, %s288
    %s303 = sphi 0, %s289
    %s307 = sphi 0, %s307
    %s309 = sphi 0, %s307
    %s310 = sphi 0, %s309
    %s324 = sphi 0, %s310
    %s328 = sphi 0, %s328
    %s330 = sphi 0, %s328
    %s331 = sphi 0, %s330
    %s345 = sphi 0, %s331
    %s351 = sphi 0, %s353
    %s354 = sphi 0, %s351
    %s355 = sphi 0, %s354
    %s371 = sphi 0, %s355
  $region4: #{_lambda_.1} parent=0 // loop_header_branch
    %24 = sbr.rel (%p22) target = $region8
  $region5: #{_lambda_.1} parent=0 // loop_body
    %s26 = ssub.s32 %s21, 1
    %s27 = ssub.s32 %s21, 2
    %s28 = sadd.s32 %s21, 1
    %s29 = ssub.s32 %s21, %s28
    %p30 = scmp.eq.s32.totalorder %s29, 0
    %s32 = sadd.s32 %s31, 1
    %s33 = scalar_select %p30, %s31, %s32
    %p36 = pneg %p30
    %p37 = scmp.eq.s32.totalorder %s21, 1
    %p38 = por %p36, %p37
    %p39 = scmp.ne.s32.totalorder %s31, %s34
    %p40 = scmp.eq.s32.totalorder %s21, 0
    %p41 = por %p39, %p40
    %p42 = scmp.ne.s32.totalorder %s31, %s34
    %p43 = scmp.eq.s32.totalorder %s26, 1
    %p44 = por %p42, %p43
    %p45 = scmp.ne.s32.totalorder %s34, %s35
    %p46 = scmp.eq.s32.totalorder %s26, 0
    %p47 = por %p45, %p46
    %p48 = scmp.ne.s32.totalorder %s34, %s35
    %p49 = scmp.eq.s32.totalorder %s27, 1
    %p50 = por %p48, %p49
    %p52 = scmp.ne.s32.totalorder %s35, %s51
    %p53 = scmp.eq.s32.totalorder %s27, 0
    %p54 = por %p52, %p53
    %s56 = sadd.s32 %s55, 1
    %p59 = scmp.eq.s32.totalorder %s21, 1
    %p60 = scmp.ne.s32.totalorder %s55, %s57
    %p61 = scmp.eq.s32.totalorder %s21, 0
    %p62 = por %p60, %p61
    %p63 = scmp.ne.s32.totalorder %s55, %s57
    %p64 = scmp.eq.s32.totalorder %s26, 1
    %p65 = por %p63, %p64
    %p66 = scmp.ne.s32.totalorder %s57, %s58
    %p67 = scmp.eq.s32.totalorder %s26, 0
    %p68 = por %p66, %p67
    %p69 = scmp.ne.s32.totalorder %s57, %s58
    %p70 = scmp.eq.s32.totalorder %s27, 1
    %p71 = por %p69, %p70
    %p73 = scmp.ne.s32.totalorder %s58, %s72
    %p74 = scmp.eq.s32.totalorder %s27, 0
    %p75 = por %p73, %p74
    %s77 = sadd.s32 %s76, 1
    %p80 = scmp.eq.s32.totalorder %s21, 1
    %p81 = scmp.ne.s32.totalorder %s76, %s78
    %p82 = scmp.eq.s32.totalorder %s21, 0
    %p83 = por %p81, %p82
    %p84 = scmp.ne.s32.totalorder %s76, %s78
    %p85 = scmp.eq.s32.totalorder %s26, 1
    %p86 = por %p84, %p85
    %p87 = scmp.ne.s32.totalorder %s78, %s79
    %p88 = scmp.eq.s32.totalorder %s26, 0
    %p89 = por %p87, %p88
    %p90 = scmp.ne.s32.totalorder %s78, %s79
    %p91 = scmp.eq.s32.totalorder %s27, 1
    %p92 = por %p90, %p91
    %p94 = scmp.ne.s32.totalorder %s79, %s93
    %p95 = scmp.eq.s32.totalorder %s27, 0
    %p96 = por %p94, %p95
    %s98 = sadd.s32 %s97, 1
    %p101 = scmp.eq.s32.totalorder %s21, 1
    %p102 = scmp.ne.s32.totalorder %s97, %s99
    %p103 = scmp.eq.s32.totalorder %s21, 0
    %p104 = por %p102, %p103
    %p105 = scmp.ne.s32.totalorder %s97, %s99
    %p106 = scmp.eq.s32.totalorder %s26, 1
    %p107 = por %p105, %p106
    %p108 = scmp.ne.s32.totalorder %s99, %s100
    %p109 = scmp.eq.s32.totalorder %s26, 0
    %p110 = por %p108, %p109
    %p111 = scmp.ne.s32.totalorder %s99, %s100
    %p112 = scmp.eq.s32.totalorder %s27, 1
    %p113 = por %p111, %p112
    %p115 = scmp.ne.s32.totalorder %s100, %s114
    %p116 = scmp.eq.s32.totalorder %s27, 0
    %p117 = por %p115, %p116
    %s119 = sadd.s32 %s118, 1
    %p122 = scmp.eq.s32.totalorder %s21, 1
    %p123 = scmp.ne.s32.totalorder %s118, %s120
    %p124 = scmp.eq.s32.totalorder %s21, 0
    %p125 = por %p123, %p124
    %p126 = scmp.ne.s32.totalorder %s118, %s120
    %p127 = scmp.eq.s32.totalorder %s26, 1
    %p128 = por %p126, %p127
    %p129 = scmp.ne.s32.totalorder %s120, %s121
    %p130 = scmp.eq.s32.totalorder %s26, 0
    %p131 = por %p129, %p130
    %p132 = scmp.ne.s32.totalorder %s120, %s121
    %p133 = scmp.eq.s32.totalorder %s27, 1
    %p134 = por %p132, %p133
    %p136 = scmp.ne.s32.totalorder %s121, %s135
    %p137 = scmp.eq.s32.totalorder %s27, 0
    %p138 = por %p136, %p137
    %s140 = sadd.s32 %s139, 1
    %p143 = scmp.eq.s32.totalorder %s21, 1
    %p144 = scmp.ne.s32.totalorder %s139, %s141
    %p145 = scmp.eq.s32.totalorder %s21, 0
    %p146 = por %p144, %p145
    %p147 = scmp.ne.s32.totalorder %s139, %s141
    %p148 = scmp.eq.s32.totalorder %s26, 1
    %p149 = por %p147, %p148
    %p150 = scmp.ne.s32.totalorder %s141, %s142
    %p151 = scmp.eq.s32.totalorder %s26, 0
    %p152 = por %p150, %p151
    %p153 = scmp.ne.s32.totalorder %s141, %s142
    %p154 = scmp.eq.s32.totalorder %s27, 1
    %p155 = por %p153, %p154
    %p157 = scmp.ne.s32.totalorder %s142, %s156
    %p158 = scmp.eq.s32.totalorder %s27, 0
    %p159 = por %p157, %p158
    %s161 = sadd.s32 %s160, 1
    %p164 = scmp.eq.s32.totalorder %s21, 1
    %p165 = scmp.ne.s32.totalorder %s160, %s162
    %p166 = scmp.eq.s32.totalorder %s21, 0
    %p167 = por %p165, %p166
    %p168 = scmp.ne.s32.totalorder %s160, %s162
    %p169 = scmp.eq.s32.totalorder %s26, 1
    %p170 = por %p168, %p169
    %p171 = scmp.ne.s32.totalorder %s162, %s163
    %p172 = scmp.eq.s32.totalorder %s26, 0
    %p173 = por %p171, %p172
    %p174 = scmp.ne.s32.totalorder %s162, %s163
    %p175 = scmp.eq.s32.totalorder %s27, 1
    %p176 = por %p174, %p175
    %p178 = scmp.ne.s32.totalorder %s163, %s177
    %p179 = scmp.eq.s32.totalorder %s27, 0
    %p180 = por %p178, %p179
    %s182 = sadd.s32 %s181, 1
    %p185 = scmp.eq.s32.totalorder %s21, 1
    %p186 = scmp.ne.s32.totalorder %s181, %s183
    %p187 = scmp.eq.s32.totalorder %s21, 0
    %p188 = por %p186, %p187
    %p189 = scmp.ne.s32.totalorder %s181, %s183
    %p190 = scmp.eq.s32.totalorder %s26, 1
    %p191 = por %p189, %p190
    %p192 = scmp.ne.s32.totalorder %s183, %s184
    %p193 = scmp.eq.s32.totalorder %s26, 0
    %p194 = por %p192, %p193
    %p195 = scmp.ne.s32.totalorder %s183, %s184
    %p196 = scmp.eq.s32.totalorder %s27, 1
    %p197 = por %p195, %p196
    %p199 = scmp.ne.s32.totalorder %s184, %s198
    %p200 = scmp.eq.s32.totalorder %s27, 0
    %p201 = por %p199, %p200
    %s203 = sadd.s32 %s202, 1
    %p206 = scmp.eq.s32.totalorder %s21, 1
    %p207 = scmp.ne.s32.totalorder %s202, %s204
    %p208 = scmp.eq.s32.totalorder %s21, 0
    %p209 = por %p207, %p208
    %p210 = scmp.ne.s32.totalorder %s202, %s204
    %p211 = scmp.eq.s32.totalorder %s26, 1
    %p212 = por %p210, %p211
    %p213 = scmp.ne.s32.totalorder %s204, %s205
    %p214 = scmp.eq.s32.totalorder %s26, 0
    %p215 = por %p213, %p214
    %p216 = scmp.ne.s32.totalorder %s204, %s205
    %p217 = scmp.eq.s32.totalorder %s27, 1
    %p218 = por %p216, %p217
    %p220 = scmp.ne.s32.totalorder %s205, %s219
    %p221 = scmp.eq.s32.totalorder %s27, 0
    %p222 = por %p220, %p221
    %s224 = sadd.s32 %s223, 1
    %p227 = scmp.eq.s32.totalorder %s21, 1
    %p228 = scmp.ne.s32.totalorder %s223, %s225
    %p229 = scmp.eq.s32.totalorder %s21, 0
    %p230 = por %p228, %p229
    %p231 = scmp.ne.s32.totalorder %s223, %s225
    %p232 = scmp.eq.s32.totalorder %s26, 1
    %p233 = por %p231, %p232
    %p234 = scmp.ne.s32.totalorder %s225, %s226
    %p235 = scmp.eq.s32.totalorder %s26, 0
    %p236 = por %p234, %p235
    %p237 = scmp.ne.s32.totalorder %s225, %s226
    %p238 = scmp.eq.s32.totalorder %s27, 1
    %p239 = por %p237, %p238
    %p241 = scmp.ne.s32.totalorder %s226, %s240
    %p242 = scmp.eq.s32.totalorder %s27, 0
    %p243 = por %p241, %p242
    %s245 = sadd.s32 %s244, 1
    %p248 = scmp.eq.s32.totalorder %s21, 1
    %p249 = scmp.ne.s32.totalorder %s244, %s246
    %p250 = scmp.eq.s32.totalorder %s21, 0
    %p251 = por %p249, %p250
    %p252 = scmp.ne.s32.totalorder %s244, %s246
    %p253 = scmp.eq.s32.totalorder %s26, 1
    %p254 = por %p252, %p253
    %p255 = scmp.ne.s32.totalorder %s246, %s247
    %p256 = scmp.eq.s32.totalorder %s26, 0
    %p257 = por %p255, %p256
    %p258 = scmp.ne.s32.totalorder %s246, %s247
    %p259 = scmp.eq.s32.totalorder %s27, 1
    %p260 = por %p258, %p259
    %p262 = scmp.ne.s32.totalorder %s247, %s261
    %p263 = scmp.eq.s32.totalorder %s27, 0
    %p264 = por %p262, %p263
    %s266 = sadd.s32 %s265, 1
    %p269 = scmp.eq.s32.totalorder %s21, 1
    %p270 = scmp.ne.s32.totalorder %s265, %s267
    %p271 = scmp.eq.s32.totalorder %s21, 0
    %p272 = por %p270, %p271
    %p273 = scmp.ne.s32.totalorder %s265, %s267
    %p274 = scmp.eq.s32.totalorder %s26, 1
    %p275 = por %p273, %p274
    %p276 = scmp.ne.s32.totalorder %s267, %s268
    %p277 = scmp.eq.s32.totalorder %s26, 0
    %p278 = por %p276, %p277
    %p279 = scmp.ne.s32.totalorder %s267, %s268
    %p280 = scmp.eq.s32.totalorder %s27, 1
    %p281 = por %p279, %p280
    %p283 = scmp.ne.s32.totalorder %s268, %s282
    %p284 = scmp.eq.s32.totalorder %s27, 0
    %p285 = por %p283, %p284
    %s287 = sadd.s32 %s286, 1
    %p290 = scmp.eq.s32.totalorder %s21, 1
    %p291 = scmp.ne.s32.totalorder %s286, %s288
    %p292 = scmp.eq.s32.totalorder %s21, 0
    %p293 = por %p291, %p292
    %p294 = scmp.ne.s32.totalorder %s286, %s288
    %p295 = scmp.eq.s32.totalorder %s26, 1
    %p296 = por %p294, %p295
    %p297 = scmp.ne.s32.totalorder %s288, %s289
    %p298 = scmp.eq.s32.totalorder %s26, 0
    %p299 = por %p297, %p298
    %p300 = scmp.ne.s32.totalorder %s288, %s289
    %p301 = scmp.eq.s32.totalorder %s27, 1
    %p302 = por %p300, %p301
    %p304 = scmp.ne.s32.totalorder %s289, %s303
    %p305 = scmp.eq.s32.totalorder %s27, 0
    %p306 = por %p304, %p305
    %s308 = sadd.s32 %s307, 1
    %p311 = scmp.eq.s32.totalorder %s21, 1
    %p312 = scmp.ne.s32.totalorder %s307, %s309
    %p313 = scmp.eq.s32.totalorder %s21, 0
    %p314 = por %p312, %p313
    %p315 = scmp.ne.s32.totalorder %s307, %s309
    %p316 = scmp.eq.s32.totalorder %s26, 1
    %p317 = por %p315, %p316
    %p318 = scmp.ne.s32.totalorder %s309, %s310
    %p319 = scmp.eq.s32.totalorder %s26, 0
    %p320 = por %p318, %p319
    %p321 = scmp.ne.s32.totalorder %s309, %s310
    %p322 = scmp.eq.s32.totalorder %s27, 1
    %p323 = por %p321, %p322
    %p325 = scmp.ne.s32.totalorder %s310, %s324
    %p326 = scmp.eq.s32.totalorder %s27, 0
    %p327 = por %p325, %p326
    %s329 = sadd.s32 %s328, 1
    %p332 = scmp.eq.s32.totalorder %s21, 1
    %p333 = scmp.ne.s32.totalorder %s328, %s330
    %p334 = scmp.eq.s32.totalorder %s21, 0
    %p335 = por %p333, %p334
    %p336 = scmp.ne.s32.totalorder %s328, %s330
    %p337 = scmp.eq.s32.totalorder %s26, 1
    %p338 = por %p336, %p337
    %p339 = scmp.ne.s32.totalorder %s330, %s331
    %p340 = scmp.eq.s32.totalorder %s26, 0
    %p341 = por %p339, %p340
    %p342 = scmp.ne.s32.totalorder %s330, %s331
    %p343 = scmp.eq.s32.totalorder %s27, 1
    %p344 = por %p342, %p343
    %p346 = scmp.ne.s32.totalorder %s331, %s345
    %p347 = scmp.eq.s32.totalorder %s27, 0
    %p348 = por %p346, %p347
    %s349 = ssub.s32 %s21, %s28
    %p350 = scmp.eq.s32.totalorder %s349, 0
    %s352 = sadd.s32 %s351, 1
    %s353 = scalar_select %p350, %s351, %s352
    %p356 = pneg %p350
    %p357 = scmp.eq.s32.totalorder %s21, 1
    %p358 = por %p356, %p357
    %p359 = scmp.ne.s32.totalorder %s351, %s354
    %p360 = scmp.eq.s32.totalorder %s21, 0
    %p361 = por %p359, %p360
    %p362 = scmp.ne.s32.totalorder %s351, %s354
    %p363 = scmp.eq.s32.totalorder %s26, 1
    %p364 = por %p362, %p363
    %p365 = scmp.ne.s32.totalorder %s354, %s355
    %p366 = scmp.eq.s32.totalorder %s26, 0
    %p367 = por %p365, %p366
    %p368 = scmp.ne.s32.totalorder %s354, %s355
    %p369 = scmp.eq.s32.totalorder %s27, 1
    %p370 = por %p368, %p369
    %p372 = scmp.ne.s32.totalorder %s355, %s371
    %p373 = scmp.eq.s32.totalorder %s27, 0
    %p374 = por %p372, %p373
    %p375 = scmp.le.s32.totalorder 1, %s21
    %p376 = scmp.lt.s32.totalorder %s21, 3
    %p377 = pnand %p375, %p376
    %p378 = pneg %p377
    // Predicated region
    $region9: #{_lambda_.1} parent=5 // pred_check
      _
    $region10: #{_lambda_.1} parent=5 // pred_check_branch
      %380 = sbr.rel (%p377) target = $region12
    $region11: #{_lambda_.1} parent=5 // pred_region
      %s381 = ssub.s32 %s21, 1
      // Predicated region
      $region13: #{_lambda_.1} parent=11 // pred_check
        %p382 = pneg %p68
      $region14: #{_lambda_.1} parent=11 // pred_check_branch
        %384 = sbr.rel (%p382) target = $region16
      $region15: #{_lambda_.1} parent=11 // pred_region
        _
      $region16: #{_lambda_.1} parent=11 // pred_fallthru
        _
      // Predicated region
      $region17: #{_lambda_.1} parent=11 // pred_check
        %p385 = pneg %p89
      $region18: #{_lambda_.1} parent=11 // pred_check_branch
        %387 = sbr.rel (%p385) target = $region20
      $region19: #{_lambda_.1} parent=11 // pred_region
        _
      $region20: #{_lambda_.1} parent=11 // pred_fallthru
        _
      // Predicated region
      $region21: #{_lambda_.1} parent=11 // pred_check
        %p388 = pneg %p110
      $region22: #{_lambda_.1} parent=11 // pred_check_branch
        %390 = sbr.rel (%p388) target = $region24
      $region23: #{_lambda_.1} parent=11 // pred_region
        _
      $region24: #{_lambda_.1} parent=11 // pred_fallthru
        _
      // Predicated region
      $region25: #{_lambda_.1} parent=11 // pred_check
        %p391 = pneg %p131
      $region26: #{_lambda_.1} parent=11 // pred_check_branch
        %393 = sbr.rel (%p391) target = $region28
      $region27: #{_lambda_.1} parent=11 // pred_region
        _
      $region28: #{_lambda_.1} parent=11 // pred_fallthru
        _
      // Predicated region
      $region29: #{_lambda_.1} parent=11 // pred_check
        %p394 = pneg %p152
      $region30: #{_lambda_.1} parent=11 // pred_check_branch
        %396 = sbr.rel (%p394) target = $region32
      $region31: #{_lambda_.1} parent=11 // pred_region
        _
      $region32: #{_lambda_.1} parent=11 // pred_fallthru
        _
      // Predicated region
      $region33: #{_lambda_.1} parent=11 // pred_check
        %p397 = pneg %p173
      $region34: #{_lambda_.1} parent=11 // pred_check_branch
        %399 = sbr.rel (%p397) target = $region36
      $region35: #{_lambda_.1} parent=11 // pred_region
        _
      $region36: #{_lambda_.1} parent=11 // pred_fallthru
        _
      // Predicated region
      $region37: #{_lambda_.1} parent=11 // pred_check
        %p400 = pneg %p194
      $region38: #{_lambda_.1} parent=11 // pred_check_branch
        %402 = sbr.rel (%p400) target = $region40
      $region39: #{_lambda_.1} parent=11 // pred_region
        _
      $region40: #{_lambda_.1} parent=11 // pred_fallthru
        _
      // Predicated region
      $region41: #{_lambda_.1} parent=11 // pred_check
        %p403 = pneg %p215
      $region42: #{_lambda_.1} parent=11 // pred_check_branch
        %405 = sbr.rel (%p403) target = $region44
      $region43: #{_lambda_.1} parent=11 // pred_region
        _
      $region44: #{_lambda_.1} parent=11 // pred_fallthru
        _
      // Predicated region
      $region45: #{_lambda_.1} parent=11 // pred_check
        %p406 = pneg %p236
      $region46: #{_lambda_.1} parent=11 // pred_check_branch
        %408 = sbr.rel (%p406) target = $region48
      $region47: #{_lambda_.1} parent=11 // pred_region
        _
      $region48: #{_lambda_.1} parent=11 // pred_fallthru
        _
      // Predicated region
      $region49: #{_lambda_.1} parent=11 // pred_check
        %p409 = pneg %p257
      $region50: #{_lambda_.1} parent=11 // pred_check_branch
        %411 = sbr.rel (%p409) target = $region52
      $region51: #{_lambda_.1} parent=11 // pred_region
        _
      $region52: #{_lambda_.1} parent=11 // pred_fallthru
        _
      // Predicated region
      $region53: #{_lambda_.1} parent=11 // pred_check
        %p412 = pneg %p278
      $region54: #{_lambda_.1} parent=11 // pred_check_branch
        %414 = sbr.rel (%p412) target = $region56
      $region55: #{_lambda_.1} parent=11 // pred_region
        _
      $region56: #{_lambda_.1} parent=11 // pred_fallthru
        _
      // Predicated region
      $region57: #{_lambda_.1} parent=11 // pred_check
        %p415 = pneg %p299
      $region58: #{_lambda_.1} parent=11 // pred_check_branch
        %417 = sbr.rel (%p415) target = $region60
      $region59: #{_lambda_.1} parent=11 // pred_region
        _
      $region60: #{_lambda_.1} parent=11 // pred_fallthru
        _
      // Predicated region
      $region61: #{_lambda_.1} parent=11 // pred_check
        %p418 = pneg %p320
      $region62: #{_lambda_.1} parent=11 // pred_check_branch
        %420 = sbr.rel (%p418) target = $region64
      $region63: #{_lambda_.1} parent=11 // pred_region
        _
      $region64: #{_lambda_.1} parent=11 // pred_fallthru
        _
      // Predicated region
      $region65: #{_lambda_.1} parent=11 // pred_check
        %p421 = pneg %p341
      $region66: #{_lambda_.1} parent=11 // pred_check_branch
        %423 = sbr.rel (%p421) target = $region68
      $region67: #{_lambda_.1} parent=11 // pred_region
        _
      $region68: #{_lambda_.1} parent=11 // pred_fallthru
        _
    $region12: #{_lambda_.1} parent=5 // pred_fallthru
      _
    %p424 = scmp.lt.s32.totalorder %s21, 2
    // Predicated region
    $region69: #{_lambda_.1} parent=5 // pred_check
      %p425 = pneg %p424
    $region70: #{_lambda_.1} parent=5 // pred_check_branch
      %427 = sbr.rel (%p425) target = $region72
    $region71: #{_lambda_.1} parent=5 // pred_region
      // Predicated region
      $region73: #{_lambda_.1} parent=71 // pred_check
        %p428 = pneg %p41
      $region74: #{_lambda_.1} parent=71 // pred_check_branch
        %430 = sbr.rel (%p428) target = $region76
      $region75: #{_lambda_.1} parent=71 // pred_region
        %p431 = scmp.lt.s32.totalorder %s21, 1
        %s432 = scalar_select %p431, %s21, 1
        %s433 = smul.addr %s432, 2
        %s434 = smul.addr %s433, 4
        %s435 = scalar_lea.vmem %s0, %s434
      $region76: #{_lambda_.1} parent=71 // pred_fallthru
        _
    $region72: #{_lambda_.1} parent=5 // pred_fallthru
      _
    %p436 = scmp.le.s32.totalorder 1, %s21
    %p437 = scmp.lt.s32.totalorder %s21, 3
    %p438 = pnand %p436, %p437
    %p439 = pneg %p438
    // Predicated region
    $region77: #{_lambda_.1} parent=5 // pred_check
      _
    $region78: #{_lambda_.1} parent=5 // pred_check_branch
      %441 = sbr.rel (%p438) target = $region80
    $region79: #{_lambda_.1} parent=5 // pred_region
      %s442 = ssub.s32 %s21, 1
      %p443 = scmp.lt.s32.totalorder %s26, 1
      %s444 = scalar_select %p443, %s26, 1
      %s445 = smul.addr %s444, 2
      %s446 = smul.addr %s445, 4
      %s447 = scalar_lea.vmem %s0, %s446
      %p448 = pneg %p47
      %p449 = pneg %p44
      %p450 = pneg %p68
      %p451 = pneg %p65
      %p452 = pneg %p89
      %p453 = pneg %p86
      %p454 = pneg %p110
      %p455 = pneg %p107
      %p456 = pneg %p131
      %p457 = pneg %p128
      %p458 = pneg %p152
      %p459 = pneg %p149
      %p460 = pneg %p173
      %p461 = pneg %p170
      %p462 = pneg %p194
      %p463 = pneg %p191
      %p464 = pneg %p215
      %p465 = pneg %p212
      %p466 = pneg %p236
      %p467 = pneg %p233
      %p468 = pneg %p257
      %p469 = pneg %p254
      %p470 = pneg %p278
      %p471 = pneg %p275
      %p472 = pneg %p299
      %p473 = pneg %p296
      %p474 = pneg %p320
      %p475 = pneg %p317
      %p476 = pneg %p341
      %p477 = pneg %p338
      %p478 = pneg %p367
      %p479 = pneg %p364
      %p480 = scmp.lt.s32.totalorder %s26, 1
      %s481 = scalar_select %p480, %s26, 1
      %s482 = smul.addr %s481, 2
      %s483 = smul.addr %s482, 8
      %s484 = scalar_lea.vmem %s15, %s483
      %p485 = scmp.lt.s32.totalorder %s26, 1
      %s486 = scalar_select %p485, %s26, 1
      %s487 = smul.addr %s486, 2
      %s488 = smul.addr %s487, 4
      %s489 = scalar_lea.vmem %s0, %s488
      %p490 = scmp.lt.s32.totalorder %s26, 1
      %s491 = scalar_select %p490, %s26, 1
      %s492 = smul.addr %s491, 2
      %s493 = smul.addr %s492, 8
      %s494 = scalar_lea.vmem %s15, %s493
      %v495 = vld [vmem:[%s489] sm:$0xff]
      %v496 = vld [vmem:[%s1] sm:$0xf]
      %v497 = vld [vmem:[%s2] sm:$0xf]
      %v499 = vcombine.high %v495, %v495
      %vm501 = vcmask 1043456
      %v502 = vsel %vm501, %v495, 0.0
      %v503 = vsel %vm501, %v499, 0.0
      %v504 = vadd.f32 %v502, %v503
      %505 = vadd.xlane.f32.xlu0 %v504
      %v506 = vpop.xlane.xlu0 %505
      %v507 = vrot.slane %v506, 4
      %v508 = vadd.f32 %v506, %v507
      %v509 = vrot.slane %v508, 2
      %v510 = vadd.f32 %v508, %v509
      %v511 = vrot.slane %v510, 1
      %v512 = vadd.f32 %v510, %v511
      %s513 = vtos %v512
      %v514 = vrcp.pop 1024.0
      %s515 = vtos %v514
      %s516 = smul.f32 %s513, %s515
      %v517 = vmul.f32 %v495, %v495
      %v519 = vcombine.high %v517, %v517
      %v521 = vsel %vm501, %v517, 0.0
      %v522 = vsel %vm501, %v519, 0.0
      %v523 = vadd.f32 %v521, %v522
      %524 = vadd.xlane.f32.xlu0 %v523
      %v525 = vpop.xlane.xlu0 %524
      %v526 = vrot.slane %v525, 4
      %v527 = vadd.f32 %v525, %v526
      %v528 = vrot.slane %v527, 2
      %v529 = vadd.f32 %v527, %v528
      %v530 = vrot.slane %v529, 1
      %v531 = vadd.f32 %v529, %v530
      %s532 = vtos %v531
      %v533 = vrcp.pop 1024.0
      %s534 = vtos %v533
      %s535 = smul.f32 %s532, %s534
      %s536 = smul.f32 %s516, %s516
      %s537 = ssub.f32 %s535, %s536
      %v538 = vstv %s516
      %v539 = vsub.f32 %v495, %v538
      %s540 = sadd.f32 %s537, 1e-05
      %v541 = vstv %s540
      %v542 = vrsqrt.pop %v541
      %s543 = vtos %v542
      %v544 = vstv %s543
      %v545 = vmul.f32 %v539, %v544
      %547 = vset.pattern.permute.xlu0 0
      %548 = vperm.xlu0 %547, %v496
      %v549 = vpop.permute.xlu0 %548
      %v551 = vunpack.c.l.s4 839922192
      %v552 = vunpack.c.0.s8 %v551
      %v553 = vlaneseq
      %v554 = vshrl.u32 %v553, 7
      %v555 = vsub.s32 %v552, %v554
      %v556 = vrot.slane %v549, %v555
      %v558 = vmul.f32 %v545, %v556
      %560 = vset.pattern.permute.xlu0 0
      %561 = vperm.xlu0 %560, %v497
      %v562 = vpop.permute.xlu0 %561
      %v564 = vunpack.c.l.s4 839922192
      %v565 = vunpack.c.0.s8 %v564
      %v566 = vlaneseq
      %v567 = vshrl.u32 %v566, 7
      %v568 = vsub.s32 %v565, %v567
      %v569 = vrot.slane %v562, %v568
      %v571 = vadd.f32 %v558, %v569
      %v572 = vxor.u32 %v571, 2147483648
      %v573 = vmul.f32 %v572, 1.442695
      %v574 = vpow.pop %v573
      %v575 = vadd.f32 %v574, 1.0
      %v576 = vrcp.pop %v575
      %v577 = vmul.f32 1.0, %v576
      %v578 = vmul.f32 %v571, %v577
      %579 = vst [vmem:[#allocation2] sm:$0xff] 0.0
      %vm580 = vcmask 273408
      %581 = vst.msk [vmem:[#allocation2 + $0x8] sm:$0xf] %vm580, 0.0
      %583 = vrot.lane.b32.xlu0 %v578, 17
      %v584 = vpop.permute.xlu0 %583
      %v585 = vrot.slane %v584, 4
      %vm586 = vcmask 138240
      %v587 = vsel %vm586, %v585, %v584
      %vm590 = vcmask 1043592
      %vm591 = vcmask 1047556
      %vm592 = vmor %vm591, %vm590
      %593 = vst.msk [vmem:[#allocation2] sm:$0xff] %vm592, %v587
      %vm594 = vcmask 134144
      %595 = vst.msk [vmem:[#allocation2 + $0x8] sm:$0xf] %vm594, %v585
      %v596 = vlaneseq
      %v597 = vand.u32 %v596, 127
      %v598 = vadd.s32 %v597, 128
      %vm599 = vcmp.lt.s32.totalorder %v597, 0
      %v600 = vsub.s32 0, %v597
      %v601 = vsel %vm599, %v600, %v597
      %v602 = vshrl.u32 %v601, 4
      %v603 = vand.u32 %v601, 15
      %v604 = vsub.s32 0, %v603
      %v605 = vsel %vm599, %v604, %v603
      %vm606 = vcmp.lt.s32.totalorder %v598, 0
      %v607 = vsub.s32 0, %v598
      %v608 = vsel %vm606, %v607, %v598
      %v609 = vshrl.u32 %v608, 4
      %v610 = vand.u32 %v608, 15
      %v611 = vsub.s32 0, %v610
      %v612 = vsel %vm606, %v611, %v610
      %vm613 = vcmp.ne.s32.totalorder %v605, 0
      %vm614 = vcmp.ne.s32.totalorder %v612, 0
      %vm615 = vcmp.lt.s32.totalorder %v605, 0
      %vm616 = vcmp.lt.s32.totalorder %v612, 0
      %vm617 = vmand %vm615, %vm613
      %vm618 = vmand %vm616, %vm614
      %v619 = vadd.s32 %v605, 16
      %v620 = vadd.s32 %v612, 16
      %v621 = vsel %vm617, %v619, %v605
      %v622 = vsel %vm618, %v620, %v612
      %v623 = vld [vmem:[#allocation2] sm:$0xff]
      %vm624 = vcmp.ge.s32.totalorder %v621, 1
      %vm625 = vcmp.ge.s32.totalorder %v622, 1
      %v627 = vcombine.high %v623, %v623
      %v629 = vsel %vm624, %v623, 0.0
      %v630 = vsel %vm625, %v627, 0.0
      %v631 = vld [vmem:[%s3] sm:$0xff]
      %v632 = vld [vmem:[#allocation2 + $0x8] sm:$0xf]
      %s633 = scalar_lea.vmem %s3, 8
      %v634 = vld [vmem:[%s633] sm:$0xff]
      %636 = vrot.lane.b32.xlu0 %v623, 127
      %v637 = vpop.permute.xlu0 %636
      %638 = vrot.lane.b32.xlu0 %v627, 127
      %v639 = vpop.permute.xlu0 %638
      %640 = vrot.lane.b32.xlu0 %v632, 127
      %v641 = vpop.permute.xlu0 %640
      %vm642 = vcmask 1039360
      %v643 = vsel %vm642, %v637, %v639
      %v644 = vsel %vm642, %v639, %v641
      %vm645 = vcmask 31744
      %v647 = vsel %vm645, %v634, 0
      %v649 = vsel %vm501, %v643, 0
      %v651 = vsel %vm501, %v644, 0
      %653 = vmatprep.subr.mxu0 %v651
      %654 = vmatpush1.msra.mxu0 %v649
      %655 = vmatprep.subr.mxu0 0.0
      %656 = vmatpush1.msra.mxu0 0.0
      %657 = vmatprep.subr.mxu0 0.0
      %658 = vmatpush1.msra.mxu0 0.0
      %659 = vmatprep.subr.mxu0 0.0
      %660 = vmatpush1.msra.mxu0 0.0
      %661 = vmatprep.subr.mxu0 0.0
      %662 = vmatpush1.msra.mxu0 0.0
      %663 = vmatprep.subr.mxu0 0.0
      %664 = vmatpush1.msra.mxu0 0.0
      %665 = vmatprep.subr.mxu0 0.0
      %666 = vmatpush1.msra.mxu0 0.0
      %667 = vmatprep.subr.mxu0 0.0
      %668 = vmatpush1.msra.mxu0 0.0
      %669 = vmatprep.subr.mxu0 0.0
      %670 = vmatpush1.msra.mxu0 0.0
      %671 = vmatprep.subr.mxu0 0.0
      %672 = vmatpush1.msra.mxu0 0.0
      %673 = vmatprep.subr.mxu0 0.0
      %674 = vmatpush1.msra.mxu0 0.0
      %675 = vmatprep.subr.mxu0 0.0
      %676 = vmatpush1.msra.mxu0 0.0
      %677 = vmatprep.subr.mxu0 0.0
      %678 = vmatpush1.msra.mxu0 0.0
      %679 = vmatprep.subr.mxu0 0.0
      %680 = vmatpush1.msra.mxu0 0.0
      %681 = vmatprep.subr.mxu0 0.0
      %682 = vmatpush1.msra.mxu0 0.0
      %683 = vmatprep.subr.mxu0 0.0
      %684 = vmatpush1.msra.mxu0 0.0
      %685 = vmatprep.subr.mxu0 0.0
      %686 = vmatpush1.msra.mxu0 0.0
      %687 = vmatprep.subr.mxu0 0.0
      %688 = vmatpush1.msra.mxu0 0.0
      %689 = vmatprep.subr.mxu0 0.0
      %690 = vmatpush1.msra.mxu0 0.0
      %691 = vmatprep.subr.mxu0 0.0
      %692 = vmatpush1.msra.mxu0 0.0
      %693 = vmatprep.subr.mxu0 0.0
      %694 = vmatpush1.msra.mxu0 0.0
      %695 = vmatprep.subr.mxu0 0.0
      %696 = vmatpush1.msra.mxu0 0.0
      %697 = vmatprep.subr.mxu0 0.0
      %698 = vmatpush1.msra.mxu0 0.0
      %699 = vmatprep.subr.mxu0 0.0
      %700 = vmatpush1.msra.mxu0 0.0
      %701 = vmatprep.subr.mxu0 0.0
      %702 = vmatpush1.msra.mxu0 0.0
      %703 = vmatprep.subr.mxu0 0.0
      %704 = vmatpush1.msra.mxu0 0.0
      %705 = vmatprep.subr.mxu0 0.0
      %706 = vmatpush1.msra.mxu0 0.0
      %707 = vmatprep.subr.mxu0 0.0
      %708 = vmatpush1.msra.mxu0 0.0
      %709 = vmatprep.subr.mxu0 0.0
      %710 = vmatpush1.msra.mxu0 0.0
      %711 = vmatprep.subr.mxu0 0.0
      %712 = vmatpush1.msra.mxu0 0.0
      %713 = vmatprep.subr.mxu0 0.0
      %714 = vmatpush1.msra.mxu0 0.0
      %715 = vmatprep.subr.mxu0 0.0
      %716 = vmatpush1.msra.mxu0 0.0
      %717 = vmatprep.mubr.f32.mxu0 0.0
      %718 = vmatmul.mubr.f32.gmra.mrb[0].mxu0 %v647
      %v719 = vpop.f32.mrb[0].mxu0
      %v720 = vadd.f32 0.0, %v719
      %v721 = vpop.f32.mrb[0].mxu0
      %v722 = vadd.f32 0.0, %v721
      %723 = vdwg.mxu0
      %v725 = vsel %vm645, %v631, 0
      %v728 = vsel %vm501, %v629, 0
      %v731 = vsel %vm501, %v630, 0
      %733 = vmatprep.subr.mxu0 %v731
      %734 = vmatpush1.msra.mxu0 %v728
      %735 = vmatprep.subr.mxu0 0.0
      %736 = vmatpush1.msra.mxu0 0.0
      %737 = vmatprep.subr.mxu0 0.0
      %738 = vmatpush1.msra.mxu0 0.0
      %739 = vmatprep.subr.mxu0 0.0
      %740 = vmatpush1.msra.mxu0 0.0
      %741 = vmatprep.subr.mxu0 0.0
      %742 = vmatpush1.msra.mxu0 0.0
      %743 = vmatprep.subr.mxu0 0.0
      %744 = vmatpush1.msra.mxu0 0.0
      %745 = vmatprep.subr.mxu0 0.0
      %746 = vmatpush1.msra.mxu0 0.0
      %747 = vmatprep.subr.mxu0 0.0
      %748 = vmatpush1.msra.mxu0 0.0
      %749 = vmatprep.subr.mxu0 0.0
      %750 = vmatpush1.msra.mxu0 0.0
      %751 = vmatprep.subr.mxu0 0.0
      %752 = vmatpush1.msra.mxu0 0.0
      %753 = vmatprep.subr.mxu0 0.0
      %754 = vmatpush1.msra.mxu0 0.0
      %755 = vmatprep.subr.mxu0 0.0
      %756 = vmatpush1.msra.mxu0 0.0
      %757 = vmatprep.subr.mxu0 0.0
      %758 = vmatpush1.msra.mxu0 0.0
      %759 = vmatprep.subr.mxu0 0.0
      %760 = vmatpush1.msra.mxu0 0.0
      %761 = vmatprep.subr.mxu0 0.0
      %762 = vmatpush1.msra.mxu0 0.0
      %763 = vmatprep.subr.mxu0 0.0
      %764 = vmatpush1.msra.mxu0 0.0
      %765 = vmatprep.subr.mxu0 0.0
      %766 = vmatpush1.msra.mxu0 0.0
      %767 = vmatprep.subr.mxu0 0.0
      %768 = vmatpush1.msra.mxu0 0.0
      %769 = vmatprep.subr.mxu0 0.0
      %770 = vmatpush1.msra.mxu0 0.0
      %771 = vmatprep.subr.mxu0 0.0
      %772 = vmatpush1.msra.mxu0 0.0
      %773 = vmatprep.subr.mxu0 0.0
      %774 = vmatpush1.msra.mxu0 0.0
      %775 = vmatprep.subr.mxu0 0.0
      %776 = vmatpush1.msra.mxu0 0.0
      %777 = vmatprep.subr.mxu0 0.0
      %778 = vmatpush1.msra.mxu0 0.0
      %779 = vmatprep.subr.mxu0 0.0
      %780 = vmatpush1.msra.mxu0 0.0
      %781 = vmatprep.subr.mxu0 0.0
      %782 = vmatpush1.msra.mxu0 0.0
      %783 = vmatprep.subr.mxu0 0.0
      %784 = vmatpush1.msra.mxu0 0.0
      %785 = vmatprep.subr.mxu0 0.0
      %786 = vmatpush1.msra.mxu0 0.0
      %787 = vmatprep.subr.mxu0 0.0
      %788 = vmatpush1.msra.mxu0 0.0
      %789 = vmatprep.subr.mxu0 0.0
      %790 = vmatpush1.msra.mxu0 0.0
      %791 = vmatprep.subr.mxu0 0.0
      %792 = vmatpush1.msra.mxu0 0.0
      %793 = vmatprep.subr.mxu0 0.0
      %794 = vmatpush1.msra.mxu0 0.0
      %795 = vmatprep.subr.mxu0 0.0
      %796 = vmatpush1.msra.mxu0 0.0
      %797 = vmatprep.mubr.f32.mxu0 0.0
      %798 = vmatmul.mubr.f32.gmra.mrb[0].mxu0 %v725
      %v799 = vpop.f32.mrb[0].mxu0
      %v800 = vadd.f32 %v720, %v799
      %v801 = vpop.f32.mrb[0].mxu0
      %v802 = vadd.f32 %v722, %v801
      %803 = vdwg.mxu0
      %v804 = vld [vmem:[#allocation2] sm:$0xff]
      %v805 = vld [vmem:[#allocation2 + $0x8] sm:$0xf]
      %vm806 = vcmp.le.s32.totalorder %v621, 14
      %vm807 = vcmp.le.s32.totalorder %v622, 14
      %v810 = vcombine.high %v804, %v804
      %811 = vrot.lane.b32.xlu0 %v804, 126
      %v812 = vpop.permute.xlu0 %811
      %813 = vrot.lane.b32.xlu0 %v810, 126
      %v814 = vpop.permute.xlu0 %813
      %815 = vrot.lane.b32.xlu0 %v805, 126
      %v816 = vpop.permute.xlu0 %815
      %vm817 = vcmask 1031168
      %v818 = vsel %vm817, %v812, %v814
      %v819 = vsel %vm817, %v814, %v816
      %v822 = vsel %vm806, %v818, 0.0
      %v823 = vsel %vm807, %v819, 0.0
      %s824 = scalar_lea.vmem %s3, 16
      %v825 = vld [vmem:[%s824] sm:$0xff]
      %v827 = vsel %vm645, %v825, 0
      %v830 = vsel %vm501, %v822, 0
      %v833 = vsel %vm501, %v823, 0
      %835 = vmatprep.subr.mxu0 %v833
      %836 = vmatpush1.msra.mxu0 %v830
      %837 = vmatprep.subr.mxu0 0.0
      %838 = vmatpush1.msra.mxu0 0.0
      %839 = vmatprep.subr.mxu0 0.0
      %840 = vmatpush1.msra.mxu0 0.0
      %841 = vmatprep.subr.mxu0 0.0
      %842 = vmatpush1.msra.mxu0 0.0
      %843 = vmatprep.subr.mxu0 0.0
      %844 = vmatpush1.msra.mxu0 0.0
      %845 = vmatprep.subr.mxu0 0.0
      %846 = vmatpush1.msra.mxu0 0.0
      %847 = vmatprep.subr.mxu0 0.0
      %848 = vmatpush1.msra.mxu0 0.0
      %849 = vmatprep.subr.mxu0 0.0
      %850 = vmatpush1.msra.mxu0 0.0
      %851 = vmatprep.subr.mxu0 0.0
      %852 = vmatpush1.msra.mxu0 0.0
      %853 = vmatprep.subr.mxu0 0.0
      %854 = vmatpush1.msra.mxu0 0.0
      %855 = vmatprep.subr.mxu0 0.0
      %856 = vmatpush1.msra.mxu0 0.0
      %857 = vmatprep.subr.mxu0 0.0
      %858 = vmatpush1.msra.mxu0 0.0
      %859 = vmatprep.subr.mxu0 0.0
      %860 = vmatpush1.msra.mxu0 0.0
      %861 = vmatprep.subr.mxu0 0.0
      %862 = vmatpush1.msra.mxu0 0.0
      %863 = vmatprep.subr.mxu0 0.0
      %864 = vmatpush1.msra.mxu0 0.0
      %865 = vmatprep.subr.mxu0 0.0
      %866 = vmatpush1.msra.mxu0 0.0
      %867 = vmatprep.subr.mxu0 0.0
      %868 = vmatpush1.msra.mxu0 0.0
      %869 = vmatprep.subr.mxu0 0.0
      %870 = vmatpush1.msra.mxu0 0.0
      %871 = vmatprep.subr.mxu0 0.0
      %872 = vmatpush1.msra.mxu0 0.0
      %873 = vmatprep.subr.mxu0 0.0
      %874 = vmatpush1.msra.mxu0 0.0
      %875 = vmatprep.subr.mxu0 0.0
      %876 = vmatpush1.msra.mxu0 0.0
      %877 = vmatprep.subr.mxu0 0.0
      %878 = vmatpush1.msra.mxu0 0.0
      %879 = vmatprep.subr.mxu0 0.0
      %880 = vmatpush1.msra.mxu0 0.0
      %881 = vmatprep.subr.mxu0 0.0
      %882 = vmatpush1.msra.mxu0 0.0
      %883 = vmatprep.subr.mxu0 0.0
      %884 = vmatpush1.msra.mxu0 0.0
      %885 = vmatprep.subr.mxu0 0.0
      %886 = vmatpush1.msra.mxu0 0.0
      %887 = vmatprep.subr.mxu0 0.0
      %888 = vmatpush1.msra.mxu0 0.0
      %889 = vmatprep.subr.mxu0 0.0
      %890 = vmatpush1.msra.mxu0 0.0
      %891 = vmatprep.subr.mxu0 0.0
      %892 = vmatpush1.msra.mxu0 0.0
      %893 = vmatprep.subr.mxu0 0.0
      %894 = vmatpush1.msra.mxu0 0.0
      %895 = vmatprep.subr.mxu0 0.0
      %896 = vmatpush1.msra.mxu0 0.0
      %897 = vmatprep.subr.mxu0 0.0
      %898 = vmatpush1.msra.mxu0 0.0
      %899 = vmatprep.mubr.f32.mxu0 0.0
      %900 = vmatmul.mubr.f32.gmra.mrb[0].mxu0 %v827
      %v901 = vpop.f32.mrb[0].mxu0
      %v902 = vadd.f32 0.0, %v901
      %v903 = vpop.f32.mrb[0].mxu0
      %v904 = vadd.f32 0.0, %v903
      %905 = vdwg.mxu0
      %v906 = vadd.f32 %v800, %v902
      %v907 = vadd.f32 %v802, %v904
      %v908 = vld [vmem:[#allocation2] sm:$0xff]
      %v909 = vld [vmem:[#allocation2 + $0x8] sm:$0xf]
      %v912 = vcombine.high %v908, %v908
      %913 = vrot.lane.b32.xlu0 %v908, 112
      %v914 = vpop.permute.xlu0 %913
      %915 = vrot.lane.b32.xlu0 %v912, 112
      %v916 = vpop.permute.xlu0 %915
      %917 = vrot.lane.b32.xlu0 %v909, 112
      %v918 = vpop.permute.xlu0 %917
      %vm919 = vcmask 916480
      %v920 = vsel %vm919, %v914, %v916
      %v921 = vsel %vm919, %v916, %v918
      %v924 = vsel %vm624, %v920, 0.0
      %v925 = vsel %vm625, %v921, 0.0
      %s926 = scalar_lea.vmem %s3, 24
      %v927 = vld [vmem:[%s926] sm:$0xff]
      %v929 = vsel %vm645, %v927, 0
      %v932 = vsel %vm501, %v924, 0
      %v935 = vsel %vm501, %v925, 0
      %937 = vmatprep.subr.mxu0 %v935
      %938 = vmatpush1.msra.mxu0 %v932
      %939 = vmatprep.subr.mxu0 0.0
      %940 = vmatpush1.msra.mxu0 0.0
      %941 = vmatprep.subr.mxu0 0.0
      %942 = vmatpush1.msra.mxu0 0.0
      %943 = vmatprep.subr.mxu0 0.0
      %944 = vmatpush1.msra.mxu0 0.0
      %945 = vmatprep.subr.mxu0 0.0
      %946 = vmatpush1.msra.mxu0 0.0
      %947 = vmatprep.subr.mxu0 0.0
      %948 = vmatpush1.msra.mxu0 0.0
      %949 = vmatprep.subr.mxu0 0.0
      %950 = vmatpush1.msra.mxu0 0.0
      %951 = vmatprep.subr.mxu0 0.0
      %952 = vmatpush1.msra.mxu0 0.0
      %953 = vmatprep.subr.mxu0 0.0
      %954 = vmatpush1.msra.mxu0 0.0
      %955 = vmatprep.subr.mxu0 0.0
      %956 = vmatpush1.msra.mxu0 0.0
      %957 = vmatprep.subr.mxu0 0.0
      %958 = vmatpush1.msra.mxu0 0.0
      %959 = vmatprep.subr.mxu0 0.0
      %960 = vmatpush1.msra.mxu0 0.0
      %961 = vmatprep.subr.mxu0 0.0
      %962 = vmatpush1.msra.mxu0 0.0
      %963 = vmatprep.subr.mxu0 0.0
      %964 = vmatpush1.msra.mxu0 0.0
      %965 = vmatprep.subr.mxu0 0.0
      %966 = vmatpush1.msra.mxu0 0.0
      %967 = vmatprep.subr.mxu0 0.0
      %968 = vmatpush1.msra.mxu0 0.0
      %969 = vmatprep.subr.mxu0 0.0
      %970 = vmatpush1.msra.mxu0 0.0
      %971 = vmatprep.subr.mxu0 0.0
      %972 = vmatpush1.msra.mxu0 0.0
      %973 = vmatprep.subr.mxu0 0.0
      %974 = vmatpush1.msra.mxu0 0.0
      %975 = vmatprep.subr.mxu0 0.0
      %976 = vmatpush1.msra.mxu0 0.0
      %977 = vmatprep.subr.mxu0 0.0
      %978 = vmatpush1.msra.mxu0 0.0
      %979 = vmatprep.subr.mxu0 0.0
      %980 = vmatpush1.msra.mxu0 0.0
      %981 = vmatprep.subr.mxu0 0.0
      %982 = vmatpush1.msra.mxu0 0.0
      %983 = vmatprep.subr.mxu0 0.0
      %984 = vmatpush1.msra.mxu0 0.0
      %985 = vmatprep.subr.mxu0 0.0
      %986 = vmatpush1.msra.mxu0 0.0
      %987 = vmatprep.subr.mxu0 0.0
      %988 = vmatpush1.msra.mxu0 0.0
      %989 = vmatprep.subr.mxu0 0.0
      %990 = vmatpush1.msra.mxu0 0.0
      %991 = vmatprep.subr.mxu0 0.0
      %992 = vmatpush1.msra.mxu0 0.0
      %993 = vmatprep.subr.mxu0 0.0
      %994 = vmatpush1.msra.mxu0 0.0
      %995 = vmatprep.subr.mxu0 0.0
      %996 = vmatpush1.msra.mxu0 0.0
      %997 = vmatprep.subr.mxu0 0.0
      %998 = vmatpush1.msra.mxu0 0.0
      %999 = vmatprep.subr.mxu0 0.0
      %1000 = vmatpush1.msra.mxu0 0.0
      %1001 = vmatprep.mubr.f32.mxu0 0.0
      %1002 = vmatmul.mubr.f32.gmra.mrb[0].mxu0 %v929
      %v1003 = vpop.f32.mrb[0].mxu0
      %v1004 = vadd.f32 0.0, %v1003
      %v1005 = vpop.f32.mrb[0].mxu0
      %v1006 = vadd.f32 0.0, %v1005
      %1007 = vdwg.mxu0
      %v1008 = vadd.f32 %v906, %v1004
      %v1009 = vadd.f32 %v907, %v1006
      %v1010 = vld [vmem:[#allocation2] sm:$0xff]
      %v1011 = vld [vmem:[#allocation2 + $0x8] sm:$0xf]
      %s1012 = scalar_lea.vmem %s3, 32
      %v1013 = vld [vmem:[%s1012] sm:$0xff]
      %v1016 = vcombine.high %v1010, %v1010
      %1017 = vrot.lane.b32.xlu0 %v1010, 111
      %v1018 = vpop.permute.xlu0 %1017
      %1019 = vrot.lane.b32.xlu0 %v1016, 111
      %v1020 = vpop.permute.xlu0 %1019
      %1021 = vrot.lane.b32.xlu0 %v1011, 111
      %v1022 = vpop.permute.xlu0 %1021
      %vm1023 = vcmask 908288
      %v1024 = vsel %vm1023, %v1018, %v1020
      %v1025 = vsel %vm1023, %v1020, %v1022
      %v1027 = vsel %vm645, %v1013, 0
      %v1029 = vsel %vm501, %v1024, 0
      %v1031 = vsel %vm501, %v1025, 0
      %1033 = vmatprep.subr.mxu0 %v1031
      %1034 = vmatpush1.msra.mxu0 %v1029
      %1035 = vmatprep.subr.mxu0 0.0
      %1036 = vmatpush1.msra.mxu0 0.0
      %1037 = vmatprep.subr.mxu0 0.0
      %1038 = vmatpush1.msra.mxu0 0.0
      %1039 = vmatprep.subr.mxu0 0.0
      %1040 = vmatpush1.msra.mxu0 0.0
      %1041 = vmatprep.subr.mxu0 0.0
      %1042 = vmatpush1.msra.mxu0 0.0
      %1043 = vmatprep.subr.mxu0 0.0
      %1044 = vmatpush1.msra.mxu0 0.0
      %1045 = vmatprep.subr.mxu0 0.0
      %1046 = vmatpush1.msra.mxu0 0.0
      %1047 = vmatprep.subr.mxu0 0.0
      %1048 = vmatpush1.msra.mxu0 0.0
      %1049 = vmatprep.subr.mxu0 0.0
      %1050 = vmatpush1.msra.mxu0 0.0
      %1051 = vmatprep.subr.mxu0 0.0
      %1052 = vmatpush1.msra.mxu0 0.0
      %1053 = vmatprep.subr.mxu0 0.0
      %1054 = vmatpush1.msra.mxu0 0.0
      %1055 = vmatprep.subr.mxu0 0.0
      %1056 = vmatpush1.msra.mxu0 0.0
      %1057 = vmatprep.subr.mxu0 0.0
      %1058 = vmatpush1.msra.mxu0 0.0
      %1059 = vmatprep.subr.mxu0 0.0
      %1060 = vmatpush1.msra.mxu0 0.0
      %1061 = vmatprep.subr.mxu0 0.0
      %1062 = vmatpush1.msra.mxu0 0.0
      %1063 = vmatprep.subr.mxu0 0.0
      %1064 = vmatpush1.msra.mxu0 0.0
      %1065 = vmatprep.subr.mxu0 0.0
      %1066 = vmatpush1.msra.mxu0 0.0
      %1067 = vmatprep.subr.mxu0 0.0
      %1068 = vmatpush1.msra.mxu0 0.0
      %1069 = vmatprep.subr.mxu0 0.0
      %1070 = vmatpush1.msra.mxu0 0.0
      %1071 = vmatprep.subr.mxu0 0.0
      %1072 = vmatpush1.msra.mxu0 0.0
      %1073 = vmatprep.subr.mxu0 0.0
      %1074 = vmatpush1.msra.mxu0 0.0
      %1075 = vmatprep.subr.mxu0 0.0
      %1076 = vmatpush1.msra.mxu0 0.0
      %1077 = vmatprep.subr.mxu0 0.0
      %1078 = vmatpush1.msra.mxu0 0.0
      %1079 = vmatprep.subr.mxu0 0.0
      %1080 = vmatpush1.msra.mxu0 0.0
      %1081 = vmatprep.subr.mxu0 0.0
      %1082 = vmatpush1.msra.mxu0 0.0
      %1083 = vmatprep.subr.mxu0 0.0
      %1084 = vmatpush1.msra.mxu0 0.0
      %1085 = vmatprep.subr.mxu0 0.0
      %1086 = vmatpush1.msra.mxu0 0.0
      %1087 = vmatprep.subr.mxu0 0.0
      %1088 = vmatpush1.msra.mxu0 0.0
      %1089 = vmatprep.subr.mxu0 0.0
      %1090 = vmatpush1.msra.mxu0 0.0
      %1091 = vmatprep.subr.mxu0 0.0
      %1092 = vmatpush1.msra.mxu0 0.0
      %1093 = vmatprep.subr.mxu0 0.0
      %1094 = vmatpush1.msra.mxu0 0.0
      %1095 = vmatprep.subr.mxu0 0.0
      %1096 = vmatpush1.msra.mxu0 0.0
      %1097 = vmatprep.mubr.f32.mxu0 0.0
      %1098 = vmatmul.mubr.f32.gmra.mrb[0].mxu0 %v1027
      %v1099 = vpop.f32.mrb[0].mxu0
      %v1100 = vadd.f32 0.0, %v1099
      %v1101 = vpop.f32.mrb[0].mxu0
      %v1102 = vadd.f32 0.0, %v1101
      %1103 = vdwg.mxu0
      %v1104 = vadd.f32 %v1008, %v1100
      %v1105 = vadd.f32 %v1009, %v1102
      %v1106 = vld [vmem:[#allocation2] sm:$0xff]
      %v1107 = vld [vmem:[#allocation2 + $0x8] sm:$0xf]
      %v1110 = vcombine.high %v1106, %v1106
      %1111 = vrot.lane.b32.xlu0 %v1106, 110
      %v1112 = vpop.permute.xlu0 %1111
      %1113 = vrot.lane.b32.xlu0 %v1110, 110
      %v1114 = vpop.permute.xlu0 %1113
      %1115 = vrot.lane.b32.xlu0 %v1107, 110
      %v1116 = vpop.permute.xlu0 %1115
      %vm1117 = vcmask 900096
      %v1118 = vsel %vm1117, %v1112, %v1114
      %v1119 = vsel %vm1117, %v1114, %v1116
      %v1122 = vsel %vm806, %v1118, 0.0
      %v1123 = vsel %vm807, %v1119, 0.0
      %s1124 = scalar_lea.vmem %s3, 40
      %v1125 = vld [vmem:[%s1124] sm:$0xff]
      %v1127 = vsel %vm645, %v1125, 0
      %v1130 = vsel %vm501, %v1122, 0
      %v1133 = vsel %vm501, %v1123, 0
      %1135 = vmatprep.subr.mxu0 %v1133
      %1136 = vmatpush1.msra.mxu0 %v1130
      %1137 = vmatprep.subr.mxu0 0.0
      %1138 = vmatpush1.msra.mxu0 0.0
      %1139 = vmatprep.subr.mxu0 0.0
      %1140 = vmatpush1.msra.mxu0 0.0
      %1141 = vmatprep.subr.mxu0 0.0
      %1142 = vmatpush1.msra.mxu0 0.0
      %1143 = vmatprep.subr.mxu0 0.0
      %1144 = vmatpush1.msra.mxu0 0.0
      %1145 = vmatprep.subr.mxu0 0.0
      %1146 = vmatpush1.msra.mxu0 0.0
      %1147 = vmatprep.subr.mxu0 0.0
      %1148 = vmatpush1.msra.mxu0 0.0
      %1149 = vmatprep.subr.mxu0 0.0
      %1150 = vmatpush1.msra.mxu0 0.0
      %1151 = vmatprep.subr.mxu0 0.0
      %1152 = vmatpush1.msra.mxu0 0.0
      %1153 = vmatprep.subr.mxu0 0.0
      %1154 = vmatpush1.msra.mxu0 0.0
      %1155 = vmatprep.subr.mxu0 0.0
      %1156 = vmatpush1.msra.mxu0 0.0
      %1157 = vmatprep.subr.mxu0 0.0
      %1158 = vmatpush1.msra.mxu0 0.0
      %1159 = vmatprep.subr.mxu0 0.0
      %1160 = vmatpush1.msra.mxu0 0.0
      %1161 = vmatprep.subr.mxu0 0.0
      %1162 = vmatpush1.msra.mxu0 0.0
      %1163 = vmatprep.subr.mxu0 0.0
      %1164 = vmatpush1.msra.mxu0 0.0
      %1165 = vmatprep.subr.mxu0 0.0
      %1166 = vmatpush1.msra.mxu0 0.0
      %1167 = vmatprep.subr.mxu0 0.0
      %1168 = vmatpush1.msra.mxu0 0.0
      %1169 = vmatprep.subr.mxu0 0.0
      %1170 = vmatpush1.msra.mxu0 0.0
      %1171 = vmatprep.subr.mxu0 0.0
      %1172 = vmatpush1.msra.mxu0 0.0
      %1173 = vmatprep.subr.mxu0 0.0
      %1174 = vmatpush1.msra.mxu0 0.0
      %1175 = vmatprep.subr.mxu0 0.0
      %1176 = vmatpush1.msra.mxu0 0.0
      %1177 = vmatprep.subr.mxu0 0.0
      %1178 = vmatpush1.msra.mxu0 0.0
      %1179 = vmatprep.subr.mxu0 0.0
      %1180 = vmatpush1.msra.mxu0 0.0
      %1181 = vmatprep.subr.mxu0 0.0
      %1182 = vmatpush1.msra.mxu0 0.0
      %1183 = vmatprep.subr.mxu0 0.0
      %1184 = vmatpush1.msra.mxu0 0.0
      %1185 = vmatprep.subr.mxu0 0.0
      %1186 = vmatpush1.msra.mxu0 0.0
      %1187 = vmatprep.subr.mxu0 0.0
      %1188 = vmatpush1.msra.mxu0 0.0
      %1189 = vmatprep.subr.mxu0 0.0
      %1190 = vmatpush1.msra.mxu0 0.0
      %1191 = vmatprep.subr.mxu0 0.0
      %1192 = vmatpush1.msra.mxu0 0.0
      %1193 = vmatprep.subr.mxu0 0.0
      %1194 = vmatpush1.msra.mxu0 0.0
      %1195 = vmatprep.subr.mxu0 0.0
      %1196 = vmatpush1.msra.mxu0 0.0
      %1197 = vmatprep.subr.mxu0 0.0
      %1198 = vmatpush1.msra.mxu0 0.0
      %1199 = vmatprep.mubr.f32.mxu0 0.0
      %1200 = vmatmul.mubr.f32.gmra.mrb[0].mxu0 %v1127
      %v1201 = vpop.f32.mrb[0].mxu0
      %v1202 = vadd.f32 0.0, %v1201
      %v1203 = vpop.f32.mrb[0].mxu0
      %v1204 = vadd.f32 0.0, %v1203
      %1205 = vdwg.mxu0
      %v1206 = vadd.f32 %v1104, %v1202
      %v1207 = vadd.f32 %v1105, %v1204
      %v1208 = vld [vmem:[#allocation2] sm:$0xff]
      %v1209 = vld [vmem:[#allocation2 + $0x8] sm:$0xf]
      %v1212 = vcombine.high %v1208, %v1208
      %1213 = vrot.lane.b32.xlu0 %v1208, 96
      %v1214 = vpop.permute.xlu0 %1213
      %1215 = vrot.lane.b32.xlu0 %v1212, 96
      %v1216 = vpop.permute.xlu0 %1215
      %1217 = vrot.lane.b32.xlu0 %v1209, 96
      %v1218 = vpop.permute.xlu0 %1217
      %vm1219 = vcmask 785408
      %v1220 = vsel %vm1219, %v1214, %v1216
      %v1221 = vsel %vm1219, %v1216, %v1218
      %v1224 = vsel %vm624, %v1220, 0.0
      %v1225 = vsel %vm625, %v1221, 0.0
      %s1226 = scalar_lea.vmem %s3, 48
      %v1227 = vld [vmem:[%s1226] sm:$0xff]
      %v1229 = vsel %vm645, %v1227, 0
      %v1232 = vsel %vm501, %v1224, 0
      %v1235 = vsel %vm501, %v1225, 0
      %1237 = vmatprep.subr.mxu0 %v1235
      %1238 = vmatpush1.msra.mxu0 %v1232
      %1239 = vmatprep.subr.mxu0 0.0
      %1240 = vmatpush1.msra.mxu0 0.0
      %1241 = vmatprep.subr.mxu0 0.0
      %1242 = vmatpush1.msra.mxu0 0.0
      %1243 = vmatprep.subr.mxu0 0.0
      %1244 = vmatpush1.msra.mxu0 0.0
      %1245 = vmatprep.subr.mxu0 0.0
      %1246 = vmatpush1.msra.mxu0 0.0
      %1247 = vmatprep.subr.mxu0 0.0
      %1248 = vmatpush1.msra.mxu0 0.0
      %1249 = vmatprep.subr.mxu0 0.0
      %1250 = vmatpush1.msra.mxu0 0.0
      %1251 = vmatprep.subr.mxu0 0.0
      %1252 = vmatpush1.msra.mxu0 0.0
      %1253 = vmatprep.subr.mxu0 0.0
      %1254 = vmatpush1.msra.mxu0 0.0
      %1255 = vmatprep.subr.mxu0 0.0
      %1256 = vmatpush1.msra.mxu0 0.0
      %1257 = vmatprep.subr.mxu0 0.0
      %1258 = vmatpush1.msra.mxu0 0.0
      %1259 = vmatprep.subr.mxu0 0.0
      %1260 = vmatpush1.msra.mxu0 0.0
      %1261 = vmatprep.subr.mxu0 0.0
      %1262 = vmatpush1.msra.mxu0 0.0
      %1263 = vmatprep.subr.mxu0 0.0
      %1264 = vmatpush1.msra.mxu0 0.0
      %1265 = vmatprep.subr.mxu0 0.0
      %1266 = vmatpush1.msra.mxu0 0.0
      %1267 = vmatprep.subr.mxu0 0.0
      %1268 = vmatpush1.msra.mxu0 0.0
      %1269 = vmatprep.subr.mxu0 0.0
      %1270 = vmatpush1.msra.mxu0 0.0
      %1271 = vmatprep.subr.mxu0 0.0
      %1272 = vmatpush1.msra.mxu0 0.0
      %1273 = vmatprep.subr.mxu0 0.0
      %1274 = vmatpush1.msra.mxu0 0.0
      %1275 = vmatprep.subr.mxu0 0.0
      %1276 = vmatpush1.msra.mxu0 0.0
      %1277 = vmatprep.subr.mxu0 0.0
      %1278 = vmatpush1.msra.mxu0 0.0
      %1279 = vmatprep.subr.mxu0 0.0
      %1280 = vmatpush1.msra.mxu0 0.0
      %1281 = vmatprep.subr.mxu0 0.0
      %1282 = vmatpush1.msra.mxu0 0.0
      %1283 = vmatprep.subr.mxu0 0.0
      %1284 = vmatpush1.msra.mxu0 0.0
      %1285 = vmatprep.subr.mxu0 0.0
      %1286 = vmatpush1.msra.mxu0 0.0
      %1287 = vmatprep.subr.mxu0 0.0
      %1288 = vmatpush1.msra.mxu0 0.0
      %1289 = vmatprep.subr.mxu0 0.0
      %1290 = vmatpush1.msra.mxu0 0.0
      %1291 = vmatprep.subr.mxu0 0.0
      %1292 = vmatpush1.msra.mxu0 0.0
      %1293 = vmatprep.subr.mxu0 0.0
      %1294 = vmatpush1.msra.mxu0 0.0
      %1295 = vmatprep.subr.mxu0 0.0
      %1296 = vmatpush1.msra.mxu0 0.0
      %1297 = vmatprep.subr.mxu0 0.0
      %1298 = vmatpush1.msra.mxu0 0.0
      %1299 = vmatprep.subr.mxu0 0.0
      %1300 = vmatpush1.msra.mxu0 0.0
      %1301 = vmatprep.mubr.f32.mxu0 0.0
      %1302 = vmatmul.mubr.f32.gmra.mrb[0].mxu0 %v1229
      %v1303 = vpop.f32.mrb[0].mxu0
      %v1304 = vadd.f32 0.0, %v1303
      %v1305 = vpop.f32.mrb[0].mxu0
      %v1306 = vadd.f32 0.0, %v1305
      %1307 = vdwg.mxu0
      %v1308 = vadd.f32 %v1206, %v1304
      %v1309 = vadd.f32 %v1207, %v1306
      %v1310 = vld [vmem:[#allocation2] sm:$0xff]
      %v1311 = vld [vmem:[#allocation2 + $0x8] sm:$0xf]
      %s1312 = scalar_lea.vmem %s3, 56
      %v1313 = vld [vmem:[%s1312] sm:$0xff]
      %v1316 = vcombine.high %v1310, %v1310
      %1317 = vrot.lane.b32.xlu0 %v1310, 95
      %v1318 = vpop.permute.xlu0 %1317
      %1319 = vrot.lane.b32.xlu0 %v1316, 95
      %v1320 = vpop.permute.xlu0 %1319
      %1321 = vrot.lane.b32.xlu0 %v1311, 95
      %v1322 = vpop.permute.xlu0 %1321
      %vm1323 = vcmask 777216
      %v1324 = vsel %vm1323, %v1318, %v1320
      %v1325 = vsel %vm1323, %v1320, %v1322
      %v1327 = vsel %vm645, %v1313, 0
      %v1329 = vsel %vm501, %v1324, 0
      %v1331 = vsel %vm501, %v1325, 0
      %1333 = vmatprep.subr.mxu0 %v1331
      %1334 = vmatpush1.msra.mxu0 %v1329
      %1335 = vmatprep.subr.mxu0 0.0
      %1336 = vmatpush1.msra.mxu0 0.0
      %1337 = vmatprep.subr.mxu0 0.0
      %1338 = vmatpush1.msra.mxu0 0.0
      %1339 = vmatprep.subr.mxu0 0.0
      %1340 = vmatpush1.msra.mxu0 0.0
      %1341 = vmatprep.subr.mxu0 0.0
      %1342 = vmatpush1.msra.mxu0 0.0
      %1343 = vmatprep.subr.mxu0 0.0
      %1344 = vmatpush1.msra.mxu0 0.0
      %1345 = vmatprep.subr.mxu0 0.0
      %1346 = vmatpush1.msra.mxu0 0.0
      %1347 = vmatprep.subr.mxu0 0.0
      %1348 = vmatpush1.msra.mxu0 0.0
      %1349 = vmatprep.subr.mxu0 0.0
      %1350 = vmatpush1.msra.mxu0 0.0
      %1351 = vmatprep.subr.mxu0 0.0
      %1352 = vmatpush1.msra.mxu0 0.0
      %1353 = vmatprep.subr.mxu0 0.0
      %1354 = vmatpush1.msra.mxu0 0.0
      %1355 = vmatprep.subr.mxu0 0.0
      %1356 = vmatpush1.msra.mxu0 0.0
      %1357 = vmatprep.subr.mxu0 0.0
      %1358 = vmatpush1.msra.mxu0 0.0
      %1359 = vmatprep.subr.mxu0 0.0
      %1360 = vmatpush1.msra.mxu0 0.0
      %1361 = vmatprep.subr.mxu0 0.0
      %1362 = vmatpush1.msra.mxu0 0.0
      %1363 = vmatprep.subr.mxu0 0.0
      %1364 = vmatpush1.msra.mxu0 0.0
      %1365 = vmatprep.subr.mxu0 0.0
      %1366 = vmatpush1.msra.mxu0 0.0
      %1367 = vmatprep.subr.mxu0 0.0
      %1368 = vmatpush1.msra.mxu0 0.0
      %1369 = vmatprep.subr.mxu0 0.0
      %1370 = vmatpush1.msra.mxu0 0.0
      %1371 = vmatprep.subr.mxu0 0.0
      %1372 = vmatpush1.msra.mxu0 0.0
      %1373 = vmatprep.subr.mxu0 0.0
      %1374 = vmatpush1.msra.mxu0 0.0
      %1375 = vmatprep.subr.mxu0 0.0
      %1376 = vmatpush1.msra.mxu0 0.0
      %1377 = vmatprep.subr.mxu0 0.0
      %1378 = vmatpush1.msra.mxu0 0.0
      %1379 = vmatprep.subr.mxu0 0.0
      %1380 = vmatpush1.msra.mxu0 0.0
      %1381 = vmatprep.subr.mxu0 0.0
      %1382 = vmatpush1.msra.mxu0 0.0
      %1383 = vmatprep.subr.mxu0 0.0
      %1384 = vmatpush1.msra.mxu0 0.0
      %1385 = vmatprep.subr.mxu0 0.0
      %1386 = vmatpush1.msra.mxu0 0.0
      %1387 = vmatprep.subr.mxu0 0.0
      %1388 = vmatpush1.msra.mxu0 0.0
      %1389 = vmatprep.subr.mxu0 0.0
      %1390 = vmatpush1.msra.mxu0 0.0
      %1391 = vmatprep.subr.mxu0 0.0
      %1392 = vmatpush1.msra.mxu0 0.0
      %1393 = vmatprep.subr.mxu0 0.0
      %1394 = vmatpush1.msra.mxu0 0.0
      %1395 = vmatprep.subr.mxu0 0.0
      %1396 = vmatpush1.msra.mxu0 0.0
      %1397 = vmatprep.mubr.f32.mxu0 0.0
      %1398 = vmatmul.mubr.f32.gmra.mrb[0].mxu0 %v1327
      %v1399 = vpop.f32.mrb[0].mxu0
      %v1400 = vadd.f32 0.0, %v1399
      %v1401 = vpop.f32.mrb[0].mxu0
      %v1402 = vadd.f32 0.0, %v1401
      %1403 = vdwg.mxu0
      %v1404 = vadd.f32 %v1308, %v1400
      %v1405 = vadd.f32 %v1309, %v1402
      %v1406 = vld [vmem:[#allocation2] sm:$0xff]
      %v1407 = vld [vmem:[#allocation2 + $0x8] sm:$0xf]
      %v1410 = vcombine.high %v1406, %v1406
      %1411 = vrot.lane.b32.xlu0 %v1406, 94
      %v1412 = vpop.permute.xlu0 %1411
      %1413 = vrot.lane.b32.xlu0 %v1410, 94
      %v1414 = vpop.permute.xlu0 %1413
      %1415 = vrot.lane.b32.xlu0 %v1407, 94
      %v1416 = vpop.permute.xlu0 %1415
      %vm1417 = vcmask 769024
      %v1418 = vsel %vm1417, %v1412, %v1414
      %v1419 = vsel %vm1417, %v1414, %v1416
      %v1422 = vsel %vm806, %v1418, 0.0
      %v1423 = vsel %vm807, %v1419, 0.0
      %s1424 = scalar_lea.vmem %s3, 64
      %v1425 = vld [vmem:[%s1424] sm:$0xff]
      %v1427 = vsel %vm645, %v1425, 0
      %v1430 = vsel %vm501, %v1422, 0
      %v1433 = vsel %vm501, %v1423, 0
      %1435 = vmatprep.subr.mxu0 %v1433
      %1436 = vmatpush1.msra.mxu0 %v1430
      %1437 = vmatprep.subr.mxu0 0.0
      %1438 = vmatpush1.msra.mxu0 0.0
      %1439 = vmatprep.subr.mxu0 0.0
      %1440 = vmatpush1.msra.mxu0 0.0
      %1441 = vmatprep.subr.mxu0 0.0
      %1442 = vmatpush1.msra.mxu0 0.0
      %1443 = vmatprep.subr.mxu0 0.0
      %1444 = vmatpush1.msra.mxu0 0.0
      %1445 = vmatprep.subr.mxu0 0.0
      %1446 = vmatpush1.msra.mxu0 0.0
      %1447 = vmatprep.subr.mxu0 0.0
      %1448 = vmatpush1.msra.mxu0 0.0
      %1449 = vmatprep.subr.mxu0 0.0
      %1450 = vmatpush1.msra.mxu0 0.0
      %1451 = vmatprep.subr.mxu0 0.0
      %1452 = vmatpush1.msra.mxu0 0.0
      %1453 = vmatprep.subr.mxu0 0.0
      %1454 = vmatpush1.msra.mxu0 0.0
      %1455 = vmatprep.subr.mxu0 0.0
      %1456 = vmatpush1.msra.mxu0 0.0
      %1457 = vmatprep.subr.mxu0 0.0
      %1458 = vmatpush1.msra.mxu0 0.0
      %1459 = vmatprep.subr.mxu0 0.0
      %1460 = vmatpush1.msra.mxu0 0.0
      %1461 = vmatprep.subr.mxu0 0.0
      %1462 = vmatpush1.msra.mxu0 0.0
      %1463 = vmatprep.subr.mxu0 0.0
      %1464 = vmatpush1.msra.mxu0 0.0
      %1465 = vmatprep.subr.mxu0 0.0
      %1466 = vmatpush1.msra.mxu0 0.0
      %1467 = vmatprep.subr.mxu0 0.0
      %1468 = vmatpush1.msra.mxu0 0.0
      %1469 = vmatprep.subr.mxu0 0.0
      %1470 = vmatpush1.msra.mxu0 0.0
      %1471 = vmatprep.subr.mxu0 0.0
      %1472 = vmatpush1.msra.mxu0 0.0
      %1473 = vmatprep.subr.mxu0 0.0
      %1474 = vmatpush1.msra.mxu0 0.0
      %1475 = vmatprep.subr.mxu0 0.0
      %1476 = vmatpush1.msra.mxu0 0.0
      %1477 = vmatprep.subr.mxu0 0.0
      %1478 = vmatpush1.msra.mxu0 0.0
      %1479 = vmatprep.subr.mxu0 0.0
      %1480 = vmatpush1.msra.mxu0 0.0
      %1481 = vmatprep.subr.mxu0 0.0
      %1482 = vmatpush1.msra.mxu0 0.0
      %1483 = vmatprep.subr.mxu0 0.0
      %1484 = vmatpush1.msra.mxu0 0.0
      %1485 = vmatprep.subr.mxu0 0.0
      %1486 = vmatpush1.msra.mxu0 0.0
      %1487 = vmatprep.subr.mxu0 0.0
      %1488 = vmatpush1.msra.mxu0 0.0
      %1489 = vmatprep.subr.mxu0 0.0
      %1490 = vmatpush1.msra.mxu0 0.0
      %1491 = vmatprep.subr.mxu0 0.0
      %1492 = vmatpush1.msra.mxu0 0.0
      %1493 = vmatprep.subr.mxu0 0.0
      %1494 = vmatpush1.msra.mxu0 0.0
      %1495 = vmatprep.subr.mxu0 0.0
      %1496 = vmatpush1.msra.mxu0 0.0
      %1497 = vmatprep.subr.mxu0 0.0
      %1498 = vmatpush1.msra.mxu0 0.0
      %1499 = vmatprep.mubr.f32.mxu0 0.0
      %1500 = vmatmul.mubr.f32.gmra.mrb[0].mxu0 %v1427
      %v1501 = vpop.f32.mrb[0].mxu0
      %v1502 = vadd.f32 0.0, %v1501
      %v1503 = vpop.f32.mrb[0].mxu0
      %v1504 = vadd.f32 0.0, %v1503
      %1505 = vdwg.mxu0
      %v1506 = vadd.f32 %v1404, %v1502
      %v1507 = vadd.f32 %v1405, %v1504
      %v1508 = vld [vmem:[%s4] sm:$0xff]
      %1510 = vset.pattern.permute.xlu0 0
      %1511 = vperm.xlu0 %1510, %v1508
      %v1512 = vpop.permute.xlu0 %1511
      %v1514 = vadd.f32 %v1506, %v1512
      %v1515 = vadd.f32 %v1507, %v1512
      %1516 = vst [vmem:[#allocation3] sm:$0xff] 0.0
      %1517 = vst [vmem:[#allocation3 + $0x8] sm:$0xff] 0.0
      %vm1518 = vcmask 277504
      %1519 = vst.msk [vmem:[#allocation3 + $0x10] sm:$0xff] %vm1518, 0.0
      %1522 = vrot.lane.b32.xlu0 %v1514, 17
      %v1523 = vpop.permute.xlu0 %1522
      %1524 = vrot.lane.b32.xlu0 %v1515, 17
      %v1525 = vpop.permute.xlu0 %1524
      %v1526 = vsel %vm586, %v1523, %v1525
      %vm1530 = vcmask 1047688
      %1531 = vst.msk [vmem:[#allocation3] sm:$0xff] %vm1530, %v1523
      %1532 = vst [vmem:[#allocation3 + $0x8] sm:$0xff] %v1526
      %1533 = vst.msk [vmem:[#allocation3 + $0x10] sm:$0xff] %vm586, %v1525
      %v1534 = vld [vmem:[#allocation3] sm:$0xff]
      %v1535 = vld [vmem:[#allocation3 + $0x8] sm:$0xff]
      %v1536 = vsel %vm624, %v1534, 0.0
      %v1537 = vsel %vm625, %v1535, 0.0
      %v1538 = vld [vmem:[%s5] sm:$0xff]
      %v1539 = vld [vmem:[#allocation3 + $0x10] sm:$0xff]
      %s1540 = scalar_lea.vmem %s5, 8
      %v1541 = vld [vmem:[%s1540] sm:$0xff]
      %1545 = vrot.lane.b32.xlu0 %v1534, 127
      %v1546 = vpop.permute.xlu0 %1545
      %1547 = vrot.lane.b32.xlu0 %v1535, 127
      %v1548 = vpop.permute.xlu0 %1547
      %1549 = vrot.lane.b32.xlu0 %v1539, 127
      %v1550 = vpop.permute.xlu0 %1549
      %v1551 = vsel %vm642, %v1546, %v1548
      %v1552 = vsel %vm642, %v1548, %v1550
      %vm1555 = vcmask 64512
      %v1557 = vsel %vm1555, %v1541, 0
      %1559 = vmatprep.subr.mxu0 %v1552
      %1560 = vmatpush1.msra.mxu0 %v1551
      %1561 = vmatprep.subr.mxu0 0.0
      %1562 = vmatpush1.msra.mxu0 0.0
      %1563 = vmatprep.subr.mxu0 0.0
      %1564 = vmatpush1.msra.mxu0 0.0
      %1565 = vmatprep.subr.mxu0 0.0
      %1566 = vmatpush1.msra.mxu0 0.0
      %1567 = vmatprep.subr.mxu0 0.0
      %1568 = vmatpush1.msra.mxu0 0.0
      %1569 = vmatprep.subr.mxu0 0.0
      %1570 = vmatpush1.msra.mxu0 0.0
      %1571 = vmatprep.subr.mxu0 0.0
      %1572 = vmatpush1.msra.mxu0 0.0
      %1573 = vmatprep.subr.mxu0 0.0
      %1574 = vmatpush1.msra.mxu0 0.0
      %1575 = vmatprep.subr.mxu0 0.0
      %1576 = vmatpush1.msra.mxu0 0.0
      %1577 = vmatprep.subr.mxu0 0.0
      %1578 = vmatpush1.msra.mxu0 0.0
      %1579 = vmatprep.subr.mxu0 0.0
      %1580 = vmatpush1.msra.mxu0 0.0
      %1581 = vmatprep.subr.mxu0 0.0
      %1582 = vmatpush1.msra.mxu0 0.0
      %1583 = vmatprep.subr.mxu0 0.0
      %1584 = vmatpush1.msra.mxu0 0.0
      %1585 = vmatprep.subr.mxu0 0.0
      %1586 = vmatpush1.msra.mxu0 0.0
      %1587 = vmatprep.subr.mxu0 0.0
      %1588 = vmatpush1.msra.mxu0 0.0
      %1589 = vmatprep.subr.mxu0 0.0
      %1590 = vmatpush1.msra.mxu0 0.0
      %1591 = vmatprep.subr.mxu0 0.0
      %1592 = vmatpush1.msra.mxu0 0.0
      %1593 = vmatprep.subr.mxu0 0.0
      %1594 = vmatpush1.msra.mxu0 0.0
      %1595 = vmatprep.subr.mxu0 0.0
      %1596 = vmatpush1.msra.mxu0 0.0
      %1597 = vmatprep.subr.mxu0 0.0
      %1598 = vmatpush1.msra.mxu0 0.0
      %1599 = vmatprep.subr.mxu0 0.0
      %1600 = vmatpush1.msra.mxu0 0.0
      %1601 = vmatprep.subr.mxu0 0.0
      %1602 = vmatpush1.msra.mxu0 0.0
      %1603 = vmatprep.subr.mxu0 0.0
      %1604 = vmatpush1.msra.mxu0 0.0
      %1605 = vmatprep.subr.mxu0 0.0
      %1606 = vmatpush1.msra.mxu0 0.0
      %1607 = vmatprep.subr.mxu0 0.0
      %1608 = vmatpush1.msra.mxu0 0.0
      %1609 = vmatprep.subr.mxu0 0.0
      %1610 = vmatpush1.msra.mxu0 0.0
      %1611 = vmatprep.subr.mxu0 0.0
      %1612 = vmatpush1.msra.mxu0 0.0
      %1613 = vmatprep.subr.mxu0 0.0
      %1614 = vmatpush1.msra.mxu0 0.0
      %1615 = vmatprep.subr.mxu0 0.0
      %1616 = vmatpush1.msra.mxu0 0.0
      %1617 = vmatprep.subr.mxu0 0.0
      %1618 = vmatpush1.msra.mxu0 0.0
      %1619 = vmatprep.subr.mxu0 0.0
      %1620 = vmatpush1.msra.mxu0 0.0
      %1621 = vmatprep.subr.mxu0 0.0
      %1622 = vmatpush1.msra.mxu0 0.0
      %1623 = vmatprep.mubr.f32.mxu0 0.0
      %1624 = vmatmul.mubr.f32.gmra.mrb[0].mxu0 %v1557
      %v1625 = vpop.f32.mrb[0].mxu0
      %v1626 = vadd.f32 0.0, %v1625
      %v1627 = vpop.f32.mrb[0].mxu0
      %v1628 = vadd.f32 0.0, %v1627
      %1629 = vdwg.mxu0
      %v1631 = vsel %vm1555, %v1538, 0
      %1633 = vmatprep.subr.mxu0 %v1537
      %1634 = vmatpush1.msra.mxu0 %v1536
      %1635 = vmatprep.subr.mxu0 0.0
      %1636 = vmatpush1.msra.mxu0 0.0
      %1637 = vmatprep.subr.mxu0 0.0
      %1638 = vmatpush1.msra.mxu0 0.0
      %1639 = vmatprep.subr.mxu0 0.0
      %1640 = vmatpush1.msra.mxu0 0.0
      %1641 = vmatprep.subr.mxu0 0.0
      %1642 = vmatpush1.msra.mxu0 0.0
      %1643 = vmatprep.subr.mxu0 0.0
      %1644 = vmatpush1.msra.mxu0 0.0
      %1645 = vmatprep.subr.mxu0 0.0
      %1646 = vmatpush1.msra.mxu0 0.0
      %1647 = vmatprep.subr.mxu0 0.0
      %1648 = vmatpush1.msra.mxu0 0.0
      %1649 = vmatprep.subr.mxu0 0.0
      %1650 = vmatpush1.msra.mxu0 0.0
      %1651 = vmatprep.subr.mxu0 0.0
      %1652 = vmatpush1.msra.mxu0 0.0
      %1653 = vmatprep.subr.mxu0 0.0
      %1654 = vmatpush1.msra.mxu0 0.0
      %1655 = vmatprep.subr.mxu0 0.0
      %1656 = vmatpush1.msra.mxu0 0.0
      %1657 = vmatprep.subr.mxu0 0.0
      %1658 = vmatpush1.msra.mxu0 0.0
      %1659 = vmatprep.subr.mxu0 0.0
      %1660 = vmatpush1.msra.mxu0 0.0
      %1661 = vmatprep.subr.mxu0 0.0
      %1662 = vmatpush1.msra.mxu0 0.0
      %1663 = vmatprep.subr.mxu0 0.0
      %1664 = vmatpush1.msra.mxu0 0.0
      %1665 = vmatprep.subr.mxu0 0.0
      %1666 = vmatpush1.msra.mxu0 0.0
      %1667 = vmatprep.subr.mxu0 0.0
      %1668 = vmatpush1.msra.mxu0 0.0
      %1669 = vmatprep.subr.mxu0 0.0
      %1670 = vmatpush1.msra.mxu0 0.0
      %1671 = vmatprep.subr.mxu0 0.0
      %1672 = vmatpush1.msra.mxu0 0.0
      %1673 = vmatprep.subr.mxu0 0.0
      %1674 = vmatpush1.msra.mxu0 0.0
      %1675 = vmatprep.subr.mxu0 0.0
      %1676 = vmatpush1.msra.mxu0 0.0
      %1677 = vmatprep.subr.mxu0 0.0
      %1678 = vmatpush1.msra.mxu0 0.0
      %1679 = vmatprep.subr.mxu0 0.0
      %1680 = vmatpush1.msra.mxu0 0.0
      %1681 = vmatprep.subr.mxu0 0.0
      %1682 = vmatpush1.msra.mxu0 0.0
      %1683 = vmatprep.subr.mxu0 0.0
      %1684 = vmatpush1.msra.mxu0 0.0
      %1685 = vmatprep.subr.mxu0 0.0
      %1686 = vmatpush1.msra.mxu0 0.0
      %1687 = vmatprep.subr.mxu0 0.0
      %1688 = vmatpush1.msra.mxu0 0.0
      %1689 = vmatprep.subr.mxu0 0.0
      %1690 = vmatpush1.msra.mxu0 0.0
      %1691 = vmatprep.subr.mxu0 0.0
      %1692 = vmatpush1.msra.mxu0 0.0
      %1693 = vmatprep.subr.mxu0 0.0
      %1694 = vmatpush1.msra.mxu0 0.0
      %1695 = vmatprep.subr.mxu0 0.0
      %1696 = vmatpush1.msra.mxu0 0.0
      %1697 = vmatprep.mubr.f32.mxu0 0.0
      %1698 = vmatmul.mubr.f32.gmra.mrb[0].mxu0 %v1631
      %v1699 = vpop.f32.mrb[0].mxu0
      %v1700 = vadd.f32 %v1626, %v1699
      %v1701 = vpop.f32.mrb[0].mxu0
      %v1702 = vadd.f32 %v1628, %v1701
      %1703 = vdwg.mxu0
      %1704 = vrot.lane.b32.xlu0 %v1534, 126
      %v1705 = vpop.permute.xlu0 %1704
      %1706 = vrot.lane.b32.xlu0 %v1535, 126
      %v1707 = vpop.permute.xlu0 %1706
      %1708 = vrot.lane.b32.xlu0 %v1539, 126
      %v1709 = vpop.permute.xlu0 %1708
      %v1710 = vsel %vm817, %v1705, %v1707
      %v1711 = vsel %vm817, %v1707, %v1709
      %v1714 = vsel %vm806, %v1710, 0.0
      %v1715 = vsel %vm807, %v1711, 0.0
      %s1716 = scalar_lea.vmem %s5, 16
      %v1717 = vld [vmem:[%s1716] sm:$0xff]
      %v1719 = vsel %vm1555, %v1717, 0
      %1721 = vmatprep.subr.mxu0 %v1715
      %1722 = vmatpush1.msra.mxu0 %v1714
      %1723 = vmatprep.subr.mxu0 0.0
      %1724 = vmatpush1.msra.mxu0 0.0
      %1725 = vmatprep.subr.mxu0 0.0
      %1726 = vmatpush1.msra.mxu0 0.0
      %1727 = vmatprep.subr.mxu0 0.0
      %1728 = vmatpush1.msra.mxu0 0.0
      %1729 = vmatprep.subr.mxu0 0.0
      %1730 = vmatpush1.msra.mxu0 0.0
      %1731 = vmatprep.subr.mxu0 0.0
      %1732 = vmatpush1.msra.mxu0 0.0
      %1733 = vmatprep.subr.mxu0 0.0
      %1734 = vmatpush1.msra.mxu0 0.0
      %1735 = vmatprep.subr.mxu0 0.0
      %1736 = vmatpush1.msra.mxu0 0.0
      %1737 = vmatprep.subr.mxu0 0.0
      %1738 = vmatpush1.msra.mxu0 0.0
      %1739 = vmatprep.subr.mxu0 0.0
      %1740 = vmatpush1.msra.mxu0 0.0
      %1741 = vmatprep.subr.mxu0 0.0
      %1742 = vmatpush1.msra.mxu0 0.0
      %1743 = vmatprep.subr.mxu0 0.0
      %1744 = vmatpush1.msra.mxu0 0.0
      %1745 = vmatprep.subr.mxu0 0.0
      %1746 = vmatpush1.msra.mxu0 0.0
      %1747 = vmatprep.subr.mxu0 0.0
      %1748 = vmatpush1.msra.mxu0 0.0
      %1749 = vmatprep.subr.mxu0 0.0
      %1750 = vmatpush1.msra.mxu0 0.0
      %1751 = vmatprep.subr.mxu0 0.0
      %1752 = vmatpush1.msra.mxu0 0.0
      %1753 = vmatprep.subr.mxu0 0.0
      %1754 = vmatpush1.msra.mxu0 0.0
      %1755 = vmatprep.subr.mxu0 0.0
      %1756 = vmatpush1.msra.mxu0 0.0
      %1757 = vmatprep.subr.mxu0 0.0
      %1758 = vmatpush1.msra.mxu0 0.0
      %1759 = vmatprep.subr.mxu0 0.0
      %1760 = vmatpush1.msra.mxu0 0.0
      %1761 = vmatprep.subr.mxu0 0.0
      %1762 = vmatpush1.msra.mxu0 0.0
      %1763 = vmatprep.subr.mxu0 0.0
      %1764 = vmatpush1.msra.mxu0 0.0
      %1765 = vmatprep.subr.mxu0 0.0
      %1766 = vmatpush1.msra.mxu0 0.0
      %1767 = vmatprep.subr.mxu0 0.0
      %1768 = vmatpush1.msra.mxu0 0.0
      %1769 = vmatprep.subr.mxu0 0.0
      %1770 = vmatpush1.msra.mxu0 0.0
      %1771 = vmatprep.subr.mxu0 0.0
      %1772 = vmatpush1.msra.mxu0 0.0
      %1773 = vmatprep.subr.mxu0 0.0
      %1774 = vmatpush1.msra.mxu0 0.0
      %1775 = vmatprep.subr.mxu0 0.0
      %1776 = vmatpush1.msra.mxu0 0.0
      %1777 = vmatprep.subr.mxu0 0.0
      %1778 = vmatpush1.msra.mxu0 0.0
      %1779 = vmatprep.subr.mxu0 0.0
      %1780 = vmatpush1.msra.mxu0 0.0
      %1781 = vmatprep.subr.mxu0 0.0
      %1782 = vmatpush1.msra.mxu0 0.0
      %1783 = vmatprep.subr.mxu0 0.0
      %1784 = vmatpush1.msra.mxu0 0.0
      %1785 = vmatprep.mubr.f32.mxu0 0.0
      %1786 = vmatmul.mubr.f32.gmra.mrb[0].mxu0 %v1719
      %v1787 = vpop.f32.mrb[0].mxu0
      %v1788 = vadd.f32 0.0, %v1787
      %v1789 = vpop.f32.mrb[0].mxu0
      %v1790 = vadd.f32 0.0, %v1789
      %1791 = vdwg.mxu0
      %v1792 = vadd.f32 %v1700, %v1788
      %v1793 = vadd.f32 %v1702, %v1790
      %1794 = vrot.lane.b32.xlu0 %v1534, 112
      %v1795 = vpop.permute.xlu0 %1794
      %1796 = vrot.lane.b32.xlu0 %v1535, 112
      %v1797 = vpop.permute.xlu0 %1796
      %1798 = vrot.lane.b32.xlu0 %v1539, 112
      %v1799 = vpop.permute.xlu0 %1798
      %v1800 = vsel %vm919, %v1795, %v1797
      %v1801 = vsel %vm919, %v1797, %v1799
      %v1804 = vsel %vm624, %v1800, 0.0
      %v1805 = vsel %vm625, %v1801, 0.0
      %s1806 = scalar_lea.vmem %s5, 24
      %v1807 = vld [vmem:[%s1806] sm:$0xff]
      %v1809 = vsel %vm1555, %v1807, 0
      %1811 = vmatprep.subr.mxu0 %v1805
      %1812 = vmatpush1.msra.mxu0 %v1804
      %1813 = vmatprep.subr.mxu0 0.0
      %1814 = vmatpush1.msra.mxu0 0.0
      %1815 = vmatprep.subr.mxu0 0.0
      %1816 = vmatpush1.msra.mxu0 0.0
      %1817 = vmatprep.subr.mxu0 0.0
      %1818 = vmatpush1.msra.mxu0 0.0
      %1819 = vmatprep.subr.mxu0 0.0
      %1820 = vmatpush1.msra.mxu0 0.0
      %1821 = vmatprep.subr.mxu0 0.0
      %1822 = vmatpush1.msra.mxu0 0.0
      %1823 = vmatprep.subr.mxu0 0.0
      %1824 = vmatpush1.msra.mxu0 0.0
      %1825 = vmatprep.subr.mxu0 0.0
      %1826 = vmatpush1.msra.mxu0 0.0
      %1827 = vmatprep.subr.mxu0 0.0
      %1828 = vmatpush1.msra.mxu0 0.0
      %1829 = vmatprep.subr.mxu0 0.0
      %1830 = vmatpush1.msra.mxu0 0.0
      %1831 = vmatprep.subr.mxu0 0.0
      %1832 = vmatpush1.msra.mxu0 0.0
      %1833 = vmatprep.subr.mxu0 0.0
      %1834 = vmatpush1.msra.mxu0 0.0
      %1835 = vmatprep.subr.mxu0 0.0
      %1836 = vmatpush1.msra.mxu0 0.0
      %1837 = vmatprep.subr.mxu0 0.0
      %1838 = vmatpush1.msra.mxu0 0.0
      %1839 = vmatprep.subr.mxu0 0.0
      %1840 = vmatpush1.msra.mxu0 0.0
      %1841 = vmatprep.subr.mxu0 0.0
      %1842 = vmatpush1.msra.mxu0 0.0
      %1843 = vmatprep.subr.mxu0 0.0
      %1844 = vmatpush1.msra.mxu0 0.0
      %1845 = vmatprep.subr.mxu0 0.0
      %1846 = vmatpush1.msra.mxu0 0.0
      %1847 = vmatprep.subr.mxu0 0.0
      %1848 = vmatpush1.msra.mxu0 0.0
      %1849 = vmatprep.subr.mxu0 0.0
      %1850 = vmatpush1.msra.mxu0 0.0
      %1851 = vmatprep.subr.mxu0 0.0
      %1852 = vmatpush1.msra.mxu0 0.0
      %1853 = vmatprep.subr.mxu0 0.0
      %1854 = vmatpush1.msra.mxu0 0.0
      %1855 = vmatprep.subr.mxu0 0.0
      %1856 = vmatpush1.msra.mxu0 0.0
      %1857 = vmatprep.subr.mxu0 0.0
      %1858 = vmatpush1.msra.mxu0 0.0
      %1859 = vmatprep.subr.mxu0 0.0
      %1860 = vmatpush1.msra.mxu0 0.0
      %1861 = vmatprep.subr.mxu0 0.0
      %1862 = vmatpush1.msra.mxu0 0.0
      %1863 = vmatprep.subr.mxu0 0.0
      %1864 = vmatpush1.msra.mxu0 0.0
      %1865 = vmatprep.subr.mxu0 0.0
      %1866 = vmatpush1.msra.mxu0 0.0
      %1867 = vmatprep.subr.mxu0 0.0
      %1868 = vmatpush1.msra.mxu0 0.0
      %1869 = vmatprep.subr.mxu0 0.0
      %1870 = vmatpush1.msra.mxu0 0.0
      %1871 = vmatprep.subr.mxu0 0.0
      %1872 = vmatpush1.msra.mxu0 0.0
      %1873 = vmatprep.subr.mxu0 0.0
      %1874 = vmatpush1.msra.mxu0 0.0
      %1875 = vmatprep.mubr.f32.mxu0 0.0
      %1876 = vmatmul.mubr.f32.gmra.mrb[0].mxu0 %v1809
      %v1877 = vpop.f32.mrb[0].mxu0
      %v1878 = vadd.f32 0.0, %v1877
      %v1879 = vpop.f32.mrb[0].mxu0
      %v1880 = vadd.f32 0.0, %v1879
      %1881 = vdwg.mxu0
      %v1882 = vadd.f32 %v1792, %v1878
      %v1883 = vadd.f32 %v1793, %v1880
      %s1884 = scalar_lea.vmem %s5, 32
      %v1885 = vld [vmem:[%s1884] sm:$0xff]
      %1886 = vrot.lane.b32.xlu0 %v1534, 111
      %v1887 = vpop.permute.xlu0 %1886
      %1888 = vrot.lane.b32.xlu0 %v1535, 111
      %v1889 = vpop.permute.xlu0 %1888
      %1890 = vrot.lane.b32.xlu0 %v1539, 111
      %v1891 = vpop.permute.xlu0 %1890
      %v1892 = vsel %vm1023, %v1887, %v1889
      %v1893 = vsel %vm1023, %v1889, %v1891
      %v1897 = vsel %vm1555, %v1885, 0
      %1899 = vmatprep.subr.mxu0 %v1893
      %1900 = vmatpush1.msra.mxu0 %v1892
      %1901 = vmatprep.subr.mxu0 0.0
      %1902 = vmatpush1.msra.mxu0 0.0
      %1903 = vmatprep.subr.mxu0 0.0
      %1904 = vmatpush1.msra.mxu0 0.0
      %1905 = vmatprep.subr.mxu0 0.0
      %1906 = vmatpush1.msra.mxu0 0.0
      %1907 = vmatprep.subr.mxu0 0.0
      %1908 = vmatpush1.msra.mxu0 0.0
      %1909 = vmatprep.subr.mxu0 0.0
      %1910 = vmatpush1.msra.mxu0 0.0
      %1911 = vmatprep.subr.mxu0 0.0
      %1912 = vmatpush1.msra.mxu0 0.0
      %1913 = vmatprep.subr.mxu0 0.0
      %1914 = vmatpush1.msra.mxu0 0.0
      %1915 = vmatprep.subr.mxu0 0.0
      %1916 = vmatpush1.msra.mxu0 0.0
      %1917 = vmatprep.subr.mxu0 0.0
      %1918 = vmatpush1.msra.mxu0 0.0
      %1919 = vmatprep.subr.mxu0 0.0
      %1920 = vmatpush1.msra.mxu0 0.0
      %1921 = vmatprep.subr.mxu0 0.0
      %1922 = vmatpush1.msra.mxu0 0.0
      %1923 = vmatprep.subr.mxu0 0.0
      %1924 = vmatpush1.msra.mxu0 0.0
      %1925 = vmatprep.subr.mxu0 0.0
      %1926 = vmatpush1.msra.mxu0 0.0
      %1927 = vmatprep.subr.mxu0 0.0
      %1928 = vmatpush1.msra.mxu0 0.0
      %1929 = vmatprep.subr.mxu0 0.0
      %1930 = vmatpush1.msra.mxu0 0.0
      %1931 = vmatprep.subr.mxu0 0.0
      %1932 = vmatpush1.msra.mxu0 0.0
      %1933 = vmatprep.subr.mxu0 0.0
      %1934 = vmatpush1.msra.mxu0 0.0
      %1935 = vmatprep.subr.mxu0 0.0
      %1936 = vmatpush1.msra.mxu0 0.0
      %1937 = vmatprep.subr.mxu0 0.0
      %1938 = vmatpush1.msra.mxu0 0.0
      %1939 = vmatprep.subr.mxu0 0.0
      %1940 = vmatpush1.msra.mxu0 0.0
      %1941 = vmatprep.subr.mxu0 0.0
      %1942 = vmatpush1.msra.mxu0 0.0
      %1943 = vmatprep.subr.mxu0 0.0
      %1944 = vmatpush1.msra.mxu0 0.0
      %1945 = vmatprep.subr.mxu0 0.0
      %1946 = vmatpush1.msra.mxu0 0.0
      %1947 = vmatprep.subr.mxu0 0.0
      %1948 = vmatpush1.msra.mxu0 0.0
      %1949 = vmatprep.subr.mxu0 0.0
      %1950 = vmatpush1.msra.mxu0 0.0
      %1951 = vmatprep.subr.mxu0 0.0
      %1952 = vmatpush1.msra.mxu0 0.0
      %1953 = vmatprep.subr.mxu0 0.0
      %1954 = vmatpush1.msra.mxu0 0.0
      %1955 = vmatprep.subr.mxu0 0.0
      %1956 = vmatpush1.msra.mxu0 0.0
      %1957 = vmatprep.subr.mxu0 0.0
      %1958 = vmatpush1.msra.mxu0 0.0
      %1959 = vmatprep.subr.mxu0 0.0
      %1960 = vmatpush1.msra.mxu0 0.0
      %1961 = vmatprep.subr.mxu0 0.0
      %1962 = vmatpush1.msra.mxu0 0.0
      %1963 = vmatprep.mubr.f32.mxu0 0.0
      %1964 = vmatmul.mubr.f32.gmra.mrb[0].mxu0 %v1897
      %v1965 = vpop.f32.mrb[0].mxu0
      %v1966 = vadd.f32 0.0, %v1965
      %v1967 = vpop.f32.mrb[0].mxu0
      %v1968 = vadd.f32 0.0, %v1967
      %1969 = vdwg.mxu0
      %v1970 = vadd.f32 %v1882, %v1966
      %v1971 = vadd.f32 %v1883, %v1968
      %1972 = vrot.lane.b32.xlu0 %v1534, 110
      %v1973 = vpop.permute.xlu0 %1972
      %1974 = vrot.lane.b32.xlu0 %v1535, 110
      %v1975 = vpop.permute.xlu0 %1974
      %1976 = vrot.lane.b32.xlu0 %v1539, 110
      %v1977 = vpop.permute.xlu0 %1976
      %v1978 = vsel %vm1117, %v1973, %v1975
      %v1979 = vsel %vm1117, %v1975, %v1977
      %v1982 = vsel %vm806, %v1978, 0.0
      %v1983 = vsel %vm807, %v1979, 0.0
      %s1984 = scalar_lea.vmem %s5, 40
      %v1985 = vld [vmem:[%s1984] sm:$0xff]
      %v1987 = vsel %vm1555, %v1985, 0
      %1989 = vmatprep.subr.mxu0 %v1983
      %1990 = vmatpush1.msra.mxu0 %v1982
      %1991 = vmatprep.subr.mxu0 0.0
      %1992 = vmatpush1.msra.mxu0 0.0
      %1993 = vmatprep.subr.mxu0 0.0
      %1994 = vmatpush1.msra.mxu0 0.0
      %1995 = vmatprep.subr.mxu0 0.0
      %1996 = vmatpush1.msra.mxu0 0.0
      %1997 = vmatprep.subr.mxu0 0.0
      %1998 = vmatpush1.msra.mxu0 0.0
      %1999 = vmatprep.subr.mxu0 0.0
      %2000 = vmatpush1.msra.mxu0 0.0
      %2001 = vmatprep.subr.mxu0 0.0
      %2002 = vmatpush1.msra.mxu0 0.0
      %2003 = vmatprep.subr.mxu0 0.0
      %2004 = vmatpush1.msra.mxu0 0.0
      %2005 = vmatprep.subr.mxu0 0.0
      %2006 = vmatpush1.msra.mxu0 0.0
      %2007 = vmatprep.subr.mxu0 0.0
      %2008 = vmatpush1.msra.mxu0 0.0
      %2009 = vmatprep.subr.mxu0 0.0
      %2010 = vmatpush1.msra.mxu0 0.0
      %2011 = vmatprep.subr.mxu0 0.0
      %2012 = vmatpush1.msra.mxu0 0.0
      %2013 = vmatprep.subr.mxu0 0.0
      %2014 = vmatpush1.msra.mxu0 0.0
      %2015 = vmatprep.subr.mxu0 0.0
      %2016 = vmatpush1.msra.mxu0 0.0
      %2017 = vmatprep.subr.mxu0 0.0
      %2018 = vmatpush1.msra.mxu0 0.0
      %2019 = vmatprep.subr.mxu0 0.0
      %2020 = vmatpush1.msra.mxu0 0.0
      %2021 = vmatprep.subr.mxu0 0.0
      %2022 = vmatpush1.msra.mxu0 0.0
      %2023 = vmatprep.subr.mxu0 0.0
      %2024 = vmatpush1.msra.mxu0 0.0
      %2025 = vmatprep.subr.mxu0 0.0
      %2026 = vmatpush1.msra.mxu0 0.0
      %2027 = vmatprep.subr.mxu0 0.0
      %2028 = vmatpush1.msra.mxu0 0.0
      %2029 = vmatprep.subr.mxu0 0.0
      %2030 = vmatpush1.msra.mxu0 0.0
      %2031 = vmatprep.subr.mxu0 0.0
      %2032 = vmatpush1.msra.mxu0 0.0
      %2033 = vmatprep.subr.mxu0 0.0
      %2034 = vmatpush1.msra.mxu0 0.0
      %2035 = vmatprep.subr.mxu0 0.0
      %2036 = vmatpush1.msra.mxu0 0.0
      %2037 = vmatprep.subr.mxu0 0.0
      %2038 = vmatpush1.msra.mxu0 0.0
      %2039 = vmatprep.subr.mxu0 0.0
      %2040 = vmatpush1.msra.mxu0 0.0
      %2041 = vmatprep.subr.mxu0 0.0
      %2042 = vmatpush1.msra.mxu0 0.0
      %2043 = vmatprep.subr.mxu0 0.0
      %2044 = vmatpush1.msra.mxu0 0.0
      %2045 = vmatprep.subr.mxu0 0.0
      %2046 = vmatpush1.msra.mxu0 0.0
      %2047 = vmatprep.subr.mxu0 0.0
      %2048 = vmatpush1.msra.mxu0 0.0
      %2049 = vmatprep.subr.mxu0 0.0
      %2050 = vmatpush1.msra.mxu0 0.0
      %2051 = vmatprep.subr.mxu0 0.0
      %2052 = vmatpush1.msra.mxu0 0.0
      %2053 = vmatprep.mubr.f32.mxu0 0.0
      %2054 = vmatmul.mubr.f32.gmra.mrb[0].mxu0 %v1987
      %v2055 = vpop.f32.mrb[0].mxu0
      %v2056 = vadd.f32 0.0, %v2055
      %v2057 = vpop.f32.mrb[0].mxu0
      %v2058 = vadd.f32 0.0, %v2057
      %2059 = vdwg.mxu0
      %v2060 = vadd.f32 %v1970, %v2056
      %v2061 = vadd.f32 %v1971, %v2058
      %2062 = vrot.lane.b32.xlu0 %v1534, 96
      %v2063 = vpop.permute.xlu0 %2062
      %2064 = vrot.lane.b32.xlu0 %v1535, 96
      %v2065 = vpop.permute.xlu0 %2064
      %2066 = vrot.lane.b32.xlu0 %v1539, 96
      %v2067 = vpop.permute.xlu0 %2066
      %v2068 = vsel %vm1219, %v2063, %v2065
      %v2069 = vsel %vm1219, %v2065, %v2067
      %v2072 = vsel %vm624, %v2068, 0.0
      %v2073 = vsel %vm625, %v2069, 0.0
      %s2074 = scalar_lea.vmem %s5, 48
      %v2075 = vld [vmem:[%s2074] sm:$0xff]
      %v2077 = vsel %vm1555, %v2075, 0
      %2079 = vmatprep.subr.mxu0 %v2073
      %2080 = vmatpush1.msra.mxu0 %v2072
      %2081 = vmatprep.subr.mxu0 0.0
      %2082 = vmatpush1.msra.mxu0 0.0
      %2083 = vmatprep.subr.mxu0 0.0
      %2084 = vmatpush1.msra.mxu0 0.0
      %2085 = vmatprep.subr.mxu0 0.0
      %2086 = vmatpush1.msra.mxu0 0.0
      %2087 = vmatprep.subr.mxu0 0.0
      %2088 = vmatpush1.msra.mxu0 0.0
      %2089 = vmatprep.subr.mxu0 0.0
      %2090 = vmatpush1.msra.mxu0 0.0
      %2091 = vmatprep.subr.mxu0 0.0
      %2092 = vmatpush1.msra.mxu0 0.0
      %2093 = vmatprep.subr.mxu0 0.0
      %2094 = vmatpush1.msra.mxu0 0.0
      %2095 = vmatprep.subr.mxu0 0.0
      %2096 = vmatpush1.msra.mxu0 0.0
      %2097 = vmatprep.subr.mxu0 0.0
      %2098 = vmatpush1.msra.mxu0 0.0
      %2099 = vmatprep.subr.mxu0 0.0
      %2100 = vmatpush1.msra.mxu0 0.0
      %2101 = vmatprep.subr.mxu0 0.0
      %2102 = vmatpush1.msra.mxu0 0.0
      %2103 = vmatprep.subr.mxu0 0.0
      %2104 = vmatpush1.msra.mxu0 0.0
      %2105 = vmatprep.subr.mxu0 0.0
      %2106 = vmatpush1.msra.mxu0 0.0
      %2107 = vmatprep.subr.mxu0 0.0
      %2108 = vmatpush1.msra.mxu0 0.0
      %2109 = vmatprep.subr.mxu0 0.0
      %2110 = vmatpush1.msra.mxu0 0.0
      %2111 = vmatprep.subr.mxu0 0.0
      %2112 = vmatpush1.msra.mxu0 0.0
      %2113 = vmatprep.subr.mxu0 0.0
      %2114 = vmatpush1.msra.mxu0 0.0
      %2115 = vmatprep.subr.mxu0 0.0
      %2116 = vmatpush1.msra.mxu0 0.0
      %2117 = vmatprep.subr.mxu0 0.0
      %2118 = vmatpush1.msra.mxu0 0.0
      %2119 = vmatprep.subr.mxu0 0.0
      %2120 = vmatpush1.msra.mxu0 0.0
      %2121 = vmatprep.subr.mxu0 0.0
      %2122 = vmatpush1.msra.mxu0 0.0
      %2123 = vmatprep.subr.mxu0 0.0
      %2124 = vmatpush1.msra.mxu0 0.0
      %2125 = vmatprep.subr.mxu0 0.0
      %2126 = vmatpush1.msra.mxu0 0.0
      %2127 = vmatprep.subr.mxu0 0.0
      %2128 = vmatpush1.msra.mxu0 0.0
      %2129 = vmatprep.subr.mxu0 0.0
      %2130 = vmatpush1.msra.mxu0 0.0
      %2131 = vmatprep.subr.mxu0 0.0
      %2132 = vmatpush1.msra.mxu0 0.0
      %2133 = vmatprep.subr.mxu0 0.0
      %2134 = vmatpush1.msra.mxu0 0.0
      %2135 = vmatprep.subr.mxu0 0.0
      %2136 = vmatpush1.msra.mxu0 0.0
      %2137 = vmatprep.subr.mxu0 0.0
      %2138 = vmatpush1.msra.mxu0 0.0
      %2139 = vmatprep.subr.mxu0 0.0
      %2140 = vmatpush1.msra.mxu0 0.0
      %2141 = vmatprep.subr.mxu0 0.0
      %2142 = vmatpush1.msra.mxu0 0.0
      %2143 = vmatprep.mubr.f32.mxu0 0.0
      %2144 = vmatmul.mubr.f32.gmra.mrb[0].mxu0 %v2077
      %v2145 = vpop.f32.mrb[0].mxu0
      %v2146 = vadd.f32 0.0, %v2145
      %v2147 = vpop.f32.mrb[0].mxu0
      %v2148 = vadd.f32 0.0, %v2147
      %2149 = vdwg.mxu0
      %v2150 = vadd.f32 %v2060, %v2146
      %v2151 = vadd.f32 %v2061, %v2148
      %s2152 = scalar_lea.vmem %s5, 56
      %v2153 = vld [vmem:[%s2152] sm:$0xff]
      %2154 = vrot.lane.b32.xlu0 %v1534, 95
      %v2155 = vpop.permute.xlu0 %2154
      %2156 = vrot.lane.b32.xlu0 %v1535, 95
      %v2157 = vpop.permute.xlu0 %2156
      %2158 = vrot.lane.b32.xlu0 %v1539, 95
      %v2159 = vpop.permute.xlu0 %2158
      %v2160 = vsel %vm1323, %v2155, %v2157
      %v2161 = vsel %vm1323, %v2157, %v2159
      %v2165 = vsel %vm1555, %v2153, 0
      %2167 = vmatprep.subr.mxu0 %v2161
      %2168 = vmatpush1.msra.mxu0 %v2160
      %2169 = vmatprep.subr.mxu0 0.0
      %2170 = vmatpush1.msra.mxu0 0.0
      %2171 = vmatprep.subr.mxu0 0.0
      %2172 = vmatpush1.msra.mxu0 0.0
      %2173 = vmatprep.subr.mxu0 0.0
      %2174 = vmatpush1.msra.mxu0 0.0
      %2175 = vmatprep.subr.mxu0 0.0
      %2176 = vmatpush1.msra.mxu0 0.0
      %2177 = vmatprep.subr.mxu0 0.0
      %2178 = vmatpush1.msra.mxu0 0.0
      %2179 = vmatprep.subr.mxu0 0.0
      %2180 = vmatpush1.msra.mxu0 0.0
      %2181 = vmatprep.subr.mxu0 0.0
      %2182 = vmatpush1.msra.mxu0 0.0
      %2183 = vmatprep.subr.mxu0 0.0
      %2184 = vmatpush1.msra.mxu0 0.0
      %2185 = vmatprep.subr.mxu0 0.0
      %2186 = vmatpush1.msra.mxu0 0.0
      %2187 = vmatprep.subr.mxu0 0.0
      %2188 = vmatpush1.msra.mxu0 0.0
      %2189 = vmatprep.subr.mxu0 0.0
      %2190 = vmatpush1.msra.mxu0 0.0
      %2191 = vmatprep.subr.mxu0 0.0
      %2192 = vmatpush1.msra.mxu0 0.0
      %2193 = vmatprep.subr.mxu0 0.0
      %2194 = vmatpush1.msra.mxu0 0.0
      %2195 = vmatprep.subr.mxu0 0.0
      %2196 = vmatpush1.msra.mxu0 0.0
      %2197 = vmatprep.subr.mxu0 0.0
      %2198 = vmatpush1.msra.mxu0 0.0
      %2199 = vmatprep.subr.mxu0 0.0
      %2200 = vmatpush1.msra.mxu0 0.0
      %2201 = vmatprep.subr.mxu0 0.0
      %2202 = vmatpush1.msra.mxu0 0.0
      %2203 = vmatprep.subr.mxu0 0.0
      %2204 = vmatpush1.msra.mxu0 0.0
      %2205 = vmatprep.subr.mxu0 0.0
      %2206 = vmatpush1.msra.mxu0 0.0
      %2207 = vmatprep.subr.mxu0 0.0
      %2208 = vmatpush1.msra.mxu0 0.0
      %2209 = vmatprep.subr.mxu0 0.0
      %2210 = vmatpush1.msra.mxu0 0.0
      %2211 = vmatprep.subr.mxu0 0.0
      %2212 = vmatpush1.msra.mxu0 0.0
      %2213 = vmatprep.subr.mxu0 0.0
      %2214 = vmatpush1.msra.mxu0 0.0
      %2215 = vmatprep.subr.mxu0 0.0
      %2216 = vmatpush1.msra.mxu0 0.0
      %2217 = vmatprep.subr.mxu0 0.0
      %2218 = vmatpush1.msra.mxu0 0.0
      %2219 = vmatprep.subr.mxu0 0.0
      %2220 = vmatpush1.msra.mxu0 0.0
      %2221 = vmatprep.subr.mxu0 0.0
      %2222 = vmatpush1.msra.mxu0 0.0
      %2223 = vmatprep.subr.mxu0 0.0
      %2224 = vmatpush1.msra.mxu0 0.0
      %2225 = vmatprep.subr.mxu0 0.0
      %2226 = vmatpush1.msra.mxu0 0.0
      %2227 = vmatprep.subr.mxu0 0.0
      %2228 = vmatpush1.msra.mxu0 0.0
      %2229 = vmatprep.subr.mxu0 0.0
      %2230 = vmatpush1.msra.mxu0 0.0
      %2231 = vmatprep.mubr.f32.mxu0 0.0
      %2232 = vmatmul.mubr.f32.gmra.mrb[0].mxu0 %v2165
      %v2233 = vpop.f32.mrb[0].mxu0
      %v2234 = vadd.f32 0.0, %v2233
      %v2235 = vpop.f32.mrb[0].mxu0
      %v2236 = vadd.f32 0.0, %v2235
      %2237 = vdwg.mxu0
      %v2238 = vadd.f32 %v2150, %v2234
      %v2239 = vadd.f32 %v2151, %v2236
      %2240 = vrot.lane.b32.xlu0 %v1534, 94
      %v2241 = vpop.permute.xlu0 %2240
      %2242 = vrot.lane.b32.xlu0 %v1535, 94
      %v2243 = vpop.permute.xlu0 %2242
      %2244 = vrot.lane.b32.xlu0 %v1539, 94
      %v2245 = vpop.permute.xlu0 %2244
      %v2246 = vsel %vm1417, %v2241, %v2243
      %v2247 = vsel %vm1417, %v2243, %v2245
      %v2250 = vsel %vm806, %v2246, 0.0
      %v2251 = vsel %vm807, %v2247, 0.0
      %s2252 = scalar_lea.vmem %s5, 64
      %v2253 = vld [vmem:[%s2252] sm:$0xff]
      %v2255 = vsel %vm1555, %v2253, 0
      %2257 = vmatprep.subr.mxu0 %v2251
      %2258 = vmatpush1.msra.mxu0 %v2250
      %2259 = vmatprep.subr.mxu0 0.0
      %2260 = vmatpush1.msra.mxu0 0.0
      %2261 = vmatprep.subr.mxu0 0.0
      %2262 = vmatpush1.msra.mxu0 0.0
      %2263 = vmatprep.subr.mxu0 0.0
      %2264 = vmatpush1.msra.mxu0 0.0
      %2265 = vmatprep.subr.mxu0 0.0
      %2266 = vmatpush1.msra.mxu0 0.0
      %2267 = vmatprep.subr.mxu0 0.0
      %2268 = vmatpush1.msra.mxu0 0.0
      %2269 = vmatprep.subr.mxu0 0.0
      %2270 = vmatpush1.msra.mxu0 0.0
      %2271 = vmatprep.subr.mxu0 0.0
      %2272 = vmatpush1.msra.mxu0 0.0
      %2273 = vmatprep.subr.mxu0 0.0
      %2274 = vmatpush1.msra.mxu0 0.0
      %2275 = vmatprep.subr.mxu0 0.0
      %2276 = vmatpush1.msra.mxu0 0.0
      %2277 = vmatprep.subr.mxu0 0.0
      %2278 = vmatpush1.msra.mxu0 0.0
      %2279 = vmatprep.subr.mxu0 0.0
      %2280 = vmatpush1.msra.mxu0 0.0
      %2281 = vmatprep.subr.mxu0 0.0
      %2282 = vmatpush1.msra.mxu0 0.0
      %2283 = vmatprep.subr.mxu0 0.0
      %2284 = vmatpush1.msra.mxu0 0.0
      %2285 = vmatprep.subr.mxu0 0.0
      %2286 = vmatpush1.msra.mxu0 0.0
      %2287 = vmatprep.subr.mxu0 0.0
      %2288 = vmatpush1.msra.mxu0 0.0
      %2289 = vmatprep.subr.mxu0 0.0
      %2290 = vmatpush1.msra.mxu0 0.0
      %2291 = vmatprep.subr.mxu0 0.0
      %2292 = vmatpush1.msra.mxu0 0.0
      %2293 = vmatprep.subr.mxu0 0.0
      %2294 = vmatpush1.msra.mxu0 0.0
      %2295 = vmatprep.subr.mxu0 0.0
      %2296 = vmatpush1.msra.mxu0 0.0
      %2297 = vmatprep.subr.mxu0 0.0
      %2298 = vmatpush1.msra.mxu0 0.0
      %2299 = vmatprep.subr.mxu0 0.0
      %2300 = vmatpush1.msra.mxu0 0.0
      %2301 = vmatprep.subr.mxu0 0.0
      %2302 = vmatpush1.msra.mxu0 0.0
      %2303 = vmatprep.subr.mxu0 0.0
      %2304 = vmatpush1.msra.mxu0 0.0
      %2305 = vmatprep.subr.mxu0 0.0
      %2306 = vmatpush1.msra.mxu0 0.0
      %2307 = vmatprep.subr.mxu0 0.0
      %2308 = vmatpush1.msra.mxu0 0.0
      %2309 = vmatprep.subr.mxu0 0.0
      %2310 = vmatpush1.msra.mxu0 0.0
      %2311 = vmatprep.subr.mxu0 0.0
      %2312 = vmatpush1.msra.mxu0 0.0
      %2313 = vmatprep.subr.mxu0 0.0
      %2314 = vmatpush1.msra.mxu0 0.0
      %2315 = vmatprep.subr.mxu0 0.0
      %2316 = vmatpush1.msra.mxu0 0.0
      %2317 = vmatprep.subr.mxu0 0.0
      %2318 = vmatpush1.msra.mxu0 0.0
      %2319 = vmatprep.subr.mxu0 0.0
      %2320 = vmatpush1.msra.mxu0 0.0
      %2321 = vmatprep.mubr.f32.mxu0 0.0
      %2322 = vmatmul.mubr.f32.gmra.mrb[0].mxu0 %v2255
      %v2323 = vpop.f32.mrb[0].mxu0
      %v2324 = vadd.f32 0.0, %v2323
      %v2325 = vpop.f32.mrb[0].mxu0
      %v2326 = vadd.f32 0.0, %v2325
      %2327 = vdwg.mxu0
      %v2328 = vadd.f32 %v2238, %v2324
      %v2329 = vadd.f32 %v2239, %v2326
      %v2330 = vld [vmem:[%s6] sm:$0xff]
      %2332 = vset.pattern.permute.xlu0 0
      %2333 = vperm.xlu0 %2332, %v2330
      %v2334 = vpop.permute.xlu0 %2333
      %v2336 = vadd.f32 %v2328, %v2334
      %v2337 = vadd.f32 %v2329, %v2334
      %v2338 = vld [vmem:[%s7] sm:$0xff]
      %v2339 = vld [vmem:[%s8] sm:$0xff]
      %2341 = vset.pattern.permute.xlu0 0
      %2342 = vperm.xlu0 %2341, %v2339
      %v2343 = vpop.permute.xlu0 %2342
      %v2346 = vsel %vm645, %v2338, 0
      %v2348 = vsel %vm501, %v495, 0
      %v2350 = vsel %vm501, %v499, 0
      %2352 = vmatprep.subr.mxu0 %v2350
      %2353 = vmatpush1.msra.mxu0 %v2348
      %2354 = vmatprep.subr.mxu0 0.0
      %2355 = vmatpush1.msra.mxu0 0.0
      %2356 = vmatprep.subr.mxu0 0.0
      %2357 = vmatpush1.msra.mxu0 0.0
      %2358 = vmatprep.subr.mxu0 0.0
      %2359 = vmatpush1.msra.mxu0 0.0
      %2360 = vmatprep.subr.mxu0 0.0
      %2361 = vmatpush1.msra.mxu0 0.0
      %2362 = vmatprep.subr.mxu0 0.0
      %2363 = vmatpush1.msra.mxu0 0.0
      %2364 = vmatprep.subr.mxu0 0.0
      %2365 = vmatpush1.msra.mxu0 0.0
      %2366 = vmatprep.subr.mxu0 0.0
      %2367 = vmatpush1.msra.mxu0 0.0
      %2368 = vmatprep.subr.mxu0 0.0
      %2369 = vmatpush1.msra.mxu0 0.0
      %2370 = vmatprep.subr.mxu0 0.0
      %2371 = vmatpush1.msra.mxu0 0.0
      %2372 = vmatprep.subr.mxu0 0.0
      %2373 = vmatpush1.msra.mxu0 0.0
      %2374 = vmatprep.subr.mxu0 0.0
      %2375 = vmatpush1.msra.mxu0 0.0
      %2376 = vmatprep.subr.mxu0 0.0
      %2377 = vmatpush1.msra.mxu0 0.0
      %2378 = vmatprep.subr.mxu0 0.0
      %2379 = vmatpush1.msra.mxu0 0.0
      %2380 = vmatprep.subr.mxu0 0.0
      %2381 = vmatpush1.msra.mxu0 0.0
      %2382 = vmatprep.subr.mxu0 0.0
      %2383 = vmatpush1.msra.mxu0 0.0
      %2384 = vmatprep.subr.mxu0 0.0
      %2385 = vmatpush1.msra.mxu0 0.0
      %2386 = vmatprep.subr.mxu0 0.0
      %2387 = vmatpush1.msra.mxu0 0.0
      %2388 = vmatprep.subr.mxu0 0.0
      %2389 = vmatpush1.msra.mxu0 0.0
      %2390 = vmatprep.subr.mxu0 0.0
      %2391 = vmatpush1.msra.mxu0 0.0
      %2392 = vmatprep.subr.mxu0 0.0
      %2393 = vmatpush1.msra.mxu0 0.0
      %2394 = vmatprep.subr.mxu0 0.0
      %2395 = vmatpush1.msra.mxu0 0.0
      %2396 = vmatprep.subr.mxu0 0.0
      %2397 = vmatpush1.msra.mxu0 0.0
      %2398 = vmatprep.subr.mxu0 0.0
      %2399 = vmatpush1.msra.mxu0 0.0
      %2400 = vmatprep.subr.mxu0 0.0
      %2401 = vmatpush1.msra.mxu0 0.0
      %2402 = vmatprep.subr.mxu0 0.0
      %2403 = vmatpush1.msra.mxu0 0.0
      %2404 = vmatprep.subr.mxu0 0.0
      %2405 = vmatpush1.msra.mxu0 0.0
      %2406 = vmatprep.subr.mxu0 0.0
      %2407 = vmatpush1.msra.mxu0 0.0
      %2408 = vmatprep.subr.mxu0 0.0
      %2409 = vmatpush1.msra.mxu0 0.0
      %2410 = vmatprep.subr.mxu0 0.0
      %2411 = vmatpush1.msra.mxu0 0.0
      %2412 = vmatprep.subr.mxu0 0.0
      %2413 = vmatpush1.msra.mxu0 0.0
      %2414 = vmatprep.subr.mxu0 0.0
      %2415 = vmatpush1.msra.mxu0 0.0
      %2416 = vmatprep.mubr.f32.mxu0 0.0
      %2417 = vmatmul.mubr.f32.gmra.mrb[0].mxu0 %v2346
      %v2418 = vpop.f32.mrb[0].mxu0
      %v2419 = vadd.f32 %v2343, %v2418
      %v2420 = vpop.f32.mrb[0].mxu0
      %v2421 = vadd.f32 %v2343, %v2420
      %2422 = vdwg.mxu0
      %v2423 = vadd.f32 %v2336, %v2419
      %v2424 = vadd.f32 %v2337, %v2421
      %v2425 = vmul.f32 %v2423, 0.70710677
      %v2426 = vmul.f32 %v2424, 0.70710677
      %2427 = vst [vmem:[#allocation4] sm:$0xff] %v2425
      %2428 = vst [vmem:[#allocation4 + $0x8] sm:$0xff] %v2426
      %v2429 = vld [vmem:[%s9] sm:$0xff]
      %v2430 = vld [vmem:[%s10] sm:$0xff]
      %v2431 = vlaneseq
      %v2432 = vshrl.u32 %v2431, 7
      %v2433 = vld [vmem:[#allocation4] sm:$0xf]
      %v2434 = vld [vmem:[#allocation4 + $0x8] sm:$0xf]
      %v2435 = vsel %vm501, %v2433, 0.0
      %v2436 = vsel %vm501, %v2434, 0.0
      %v2437 = vadd.f32 %v2435, %v2436
      %2438 = vadd.xlane.f32.xlu0 %v2437
      %v2439 = vpop.xlane.xlu0 %2438
      %v2440 = vrot.slane %v2439, 4
      %v2441 = vadd.f32 %v2439, %v2440
      %v2442 = vrot.slane %v2441, 2
      %v2443 = vadd.f32 %v2441, %v2442
      %v2444 = vrot.slane %v2443, 1
      %v2445 = vadd.f32 %v2443, %v2444
      %s2446 = vtos %v2445
      %v2447 = vrcp.pop 1024.0
      %s2448 = vtos %v2447
      %s2449 = smul.f32 %s2446, %s2448
      %v2450 = vmul.f32 %v2433, %v2433
      %v2451 = vmul.f32 %v2434, %v2434
      %v2452 = vsel %vm501, %v2450, 0.0
      %v2453 = vsel %vm501, %v2451, 0.0
      %v2454 = vadd.f32 %v2452, %v2453
      %2455 = vadd.xlane.f32.xlu0 %v2454
      %v2456 = vpop.xlane.xlu0 %2455
      %v2457 = vrot.slane %v2456, 4
      %v2458 = vadd.f32 %v2456, %v2457
      %v2459 = vrot.slane %v2458, 2
      %v2460 = vadd.f32 %v2458, %v2459
      %v2461 = vrot.slane %v2460, 1
      %v2462 = vadd.f32 %v2460, %v2461
      %s2463 = vtos %v2462
      %v2464 = vrcp.pop 1024.0
      %s2465 = vtos %v2464
      %s2466 = smul.f32 %s2463, %s2465
      %s2467 = smul.f32 %s2449, %s2449
      %s2468 = ssub.f32 %s2466, %s2467
      %vm2469 = vcmp.ge.s32.totalorder %v2432, 0
      %vm2470 = vcmp.lt.s32.totalorder %v2432, 4
      %vm2471 = vmand %vm2469, %vm2470
      %v2472 = vstv %s2449
      %v2473 = vsel %vm2471, %v2472, 0.0
      %s2474 = sadd.f32 %s2468, 1e-05
      %v2475 = vstv %s2474
      %v2476 = vrsqrt.pop %v2475
      %s2477 = vtos %v2476
      %v2478 = vstv %s2477
      %v2479 = vsel %vm2471, %v2478, 0.0
      %v2480 = vld [vmem:[#allocation4] sm:$0xf0]
      %v2481 = vld [vmem:[#allocation4 + $0x8] sm:$0xf0]
      %v2484 = vrot.slane %v2480, 4
      %v2485 = vrot.slane %v2481, 4
      %v2488 = vsel %vm501, %v2484, 0.0
      %v2489 = vsel %vm501, %v2485, 0.0
      %v2490 = vadd.f32 %v2488, %v2489
      %2491 = vadd.xlane.f32.xlu0 %v2490
      %v2492 = vpop.xlane.xlu0 %2491
      %v2493 = vrot.slane %v2492, 4
      %v2494 = vadd.f32 %v2492, %v2493
      %v2495 = vrot.slane %v2494, 2
      %v2496 = vadd.f32 %v2494, %v2495
      %v2497 = vrot.slane %v2496, 1
      %v2498 = vadd.f32 %v2496, %v2497
      %s2499 = vtos %v2498
      %v2500 = vrcp.pop 1024.0
      %s2501 = vtos %v2500
      %s2502 = smul.f32 %s2499, %s2501
      %v2503 = vmul.f32 %v2480, %v2480
      %v2504 = vmul.f32 %v2481, %v2481
      %v2507 = vrot.slane %v2503, 4
      %v2508 = vrot.slane %v2504, 4
      %v2511 = vsel %vm501, %v2507, 0.0
      %v2512 = vsel %vm501, %v2508, 0.0
      %v2513 = vadd.f32 %v2511, %v2512
      %2514 = vadd.xlane.f32.xlu0 %v2513
      %v2515 = vpop.xlane.xlu0 %2514
      %v2516 = vrot.slane %v2515, 4
      %v2517 = vadd.f32 %v2515, %v2516
      %v2518 = vrot.slane %v2517, 2
      %v2519 = vadd.f32 %v2517, %v2518
      %v2520 = vrot.slane %v2519, 1
      %v2521 = vadd.f32 %v2519, %v2520
      %s2522 = vtos %v2521
      %v2523 = vrcp.pop 1024.0
      %s2524 = vtos %v2523
      %s2525 = smul.f32 %s2522, %s2524
      %s2526 = smul.f32 %s2502, %s2502
      %s2527 = ssub.f32 %s2525, %s2526
      %vm2528 = vcmp.ge.s32.totalorder %v2432, 4
      %vm2529 = vcmp.lt.s32.totalorder %v2432, 8
      %vm2530 = vmand %vm2528, %vm2529
      %v2531 = vstv %s2502
      %v2532 = vsel %vm2530, %v2531, %v2473
      %s2533 = sadd.f32 %s2527, 1e-05
      %v2534 = vstv %s2533
      %v2535 = vrsqrt.pop %v2534
      %s2536 = vtos %v2535
      %v2537 = vstv %s2536
      %v2538 = vsel %vm2530, %v2537, %v2479
      %v2539 = vsub.f32 %v2425, %v2532
      %v2540 = vsub.f32 %v2426, %v2532
      %v2541 = vmul.f32 %v2539, %v2538
      %v2542 = vmul.f32 %v2540, %v2538
      %2544 = vset.pattern.permute.xlu0 0
      %2545 = vperm.xlu0 %2544, %v2429
      %v2546 = vpop.permute.xlu0 %2545
      %v2548 = vmul.f32 %v2541, %v2546
      %v2549 = vmul.f32 %v2542, %v2546
      %2551 = vset.pattern.permute.xlu0 0
      %2552 = vperm.xlu0 %2551, %v2430
      %v2553 = vpop.permute.xlu0 %2552
      %v2555 = vadd.f32 %v2548, %v2553
      %v2556 = vadd.f32 %v2549, %v2553
      %v2557 = vld [vmem:[%s11] sm:$0xff]
      %v2558 = vld [vmem:[%s11 + $0x8] sm:$0xff]
      %v2559 = vld [vmem:[%s11 + $0x10] sm:$0xff]
      %v2560 = vld [vmem:[%s12] sm:$0xff]
      %v2561 = vld [vmem:[%s12 + $0x8] sm:$0xff]
      %v2562 = vld [vmem:[%s12 + $0x10] sm:$0xff]
      %2564 = vset.pattern.permute.xlu0 0
      %2565 = vperm.xlu0 %2564, %v2560
      %v2566 = vpop.permute.xlu0 %2565
      %2569 = vset.pattern.permute.xlu0 0
      %2570 = vperm.xlu0 %2569, %v2561
      %v2571 = vpop.permute.xlu0 %2570
      %2574 = vset.pattern.permute.xlu0 0
      %2575 = vperm.xlu0 %2574, %v2562
      %v2576 = vpop.permute.xlu0 %2575
      %v2579 = vsel %vm1555, %v2557, 0
      %v2582 = vsel %vm1555, %v2558, 0
      %v2585 = vsel %vm1555, %v2559, 0
      %2587 = vmatprep.subr.mxu0 %v2556
      %2588 = vmatpush1.msra.mxu0 %v2555
      %2589 = vmatprep.subr.mxu0 0.0
      %2590 = vmatpush1.msra.mxu0 0.0
      %2591 = vmatprep.subr.mxu0 0.0
      %2592 = vmatpush1.msra.mxu0 0.0
      %2593 = vmatprep.subr.mxu0 0.0
      %2594 = vmatpush1.msra.mxu0 0.0
      %2595 = vmatprep.subr.mxu0 0.0
      %2596 = vmatpush1.msra.mxu0 0.0
      %2597 = vmatprep.subr.mxu0 0.0
      %2598 = vmatpush1.msra.mxu0 0.0
      %2599 = vmatprep.subr.mxu0 0.0
      %2600 = vmatpush1.msra.mxu0 0.0
      %2601 = vmatprep.subr.mxu0 0.0
      %2602 = vmatpush1.msra.mxu0 0.0
      %2603 = vmatprep.subr.mxu0 0.0
      %2604 = vmatpush1.msra.mxu0 0.0
      %2605 = vmatprep.subr.mxu0 0.0
      %2606 = vmatpush1.msra.mxu0 0.0
      %2607 = vmatprep.subr.mxu0 0.0
      %2608 = vmatpush1.msra.mxu0 0.0
      %2609 = vmatprep.subr.mxu0 0.0
      %2610 = vmatpush1.msra.mxu0 0.0
      %2611 = vmatprep.subr.mxu0 0.0
      %2612 = vmatpush1.msra.mxu0 0.0
      %2613 = vmatprep.subr.mxu0 0.0
      %2614 = vmatpush1.msra.mxu0 0.0
      %2615 = vmatprep.subr.mxu0 0.0
      %2616 = vmatpush1.msra.mxu0 0.0
      %2617 = vmatprep.subr.mxu0 0.0
      %2618 = vmatpush1.msra.mxu0 0.0
      %2619 = vmatprep.subr.mxu0 0.0
      %2620 = vmatpush1.msra.mxu0 0.0
      %2621 = vmatprep.subr.mxu0 0.0
      %2622 = vmatpush1.msra.mxu0 0.0
      %2623 = vmatprep.subr.mxu0 0.0
      %2624 = vmatpush1.msra.mxu0 0.0
      %2625 = vmatprep.subr.mxu0 0.0
      %2626 = vmatpush1.msra.mxu0 0.0
      %2627 = vmatprep.subr.mxu0 0.0
      %2628 = vmatpush1.msra.mxu0 0.0
      %2629 = vmatprep.subr.mxu0 0.0
      %2630 = vmatpush1.msra.mxu0 0.0
      %2631 = vmatprep.subr.mxu0 0.0
      %2632 = vmatpush1.msra.mxu0 0.0
      %2633 = vmatprep.subr.mxu0 0.0
      %2634 = vmatpush1.msra.mxu0 0.0
      %2635 = vmatprep.subr.mxu0 0.0
      %2636 = vmatpush1.msra.mxu0 0.0
      %2637 = vmatprep.subr.mxu0 0.0
      %2638 = vmatpush1.msra.mxu0 0.0
      %2639 = vmatprep.subr.mxu0 0.0
      %2640 = vmatpush1.msra.mxu0 0.0
      %2641 = vmatprep.subr.mxu0 0.0
      %2642 = vmatpush1.msra.mxu0 0.0
      %2643 = vmatprep.subr.mxu0 0.0
      %2644 = vmatpush1.msra.mxu0 0.0
      %2645 = vmatprep.subr.mxu0 0.0
      %2646 = vmatpush1.msra.mxu0 0.0
      %2647 = vmatprep.subr.mxu0 0.0
      %2648 = vmatpush1.msra.mxu0 0.0
      %2649 = vmatprep.subr.mxu0 0.0
      %2650 = vmatpush1.msra.mxu0 0.0
      %2651 = vmatprep.mubr.f32.mxu0 0.0
      %2652 = vmatmul.mubr.f32.gmra.mrb[0].mxu0 %v2579
      %v2653 = vpop.f32.mrb[0].mxu0
      %v2654 = vadd.f32 %v2566, %v2653
      %v2655 = vpop.f32.mrb[0].mxu0
      %v2656 = vadd.f32 %v2566, %v2655
      %2657 = vmatprep.mubr.f32.mxu0 0.0
      %2658 = vmatmul.mubr.f32.gmra.mrb[0].mxu0 %v2582
      %v2659 = vpop.f32.mrb[0].mxu0
      %v2660 = vadd.f32 %v2571, %v2659
      %v2661 = vpop.f32.mrb[0].mxu0
      %v2662 = vadd.f32 %v2571, %v2661
      %2663 = vmatprep.mubr.f32.mxu0 0.0
      %2664 = vmatmul.mubr.f32.gmra.mrb[0].mxu0 %v2585
      %v2665 = vpop.f32.mrb[0].mxu0
      %v2666 = vadd.f32 %v2576, %v2665
      %v2667 = vpop.f32.mrb[0].mxu0
      %v2668 = vadd.f32 %v2576, %v2667
      %2669 = vdwg.mxu0
      %2670 = vst [vmem:[#allocation5] sm:$0xff] %v2654
      %2671 = vst [vmem:[#allocation5 + $0x8] sm:$0xff] %v2656
      %2672 = vst [vmem:[#allocation5 + $0x10] sm:$0xff] %v2660
      %2673 = vst [vmem:[#allocation5 + $0x18] sm:$0xff] %v2662
      %2674 = vst [vmem:[#allocation5 + $0x20] sm:$0xff] %v2666
      %2675 = vst [vmem:[#allocation5 + $0x28] sm:$0xff] %v2668
      %v2676 = vld [vmem:[#allocation5] sm:$0xf]
      %v2677 = vld [vmem:[#allocation5 + $0x8] sm:$0xf]
      %v2678 = vld [vmem:[#allocation5] sm:$0xf0]
      %v2679 = vld [vmem:[#allocation5 + $0x8] sm:$0xf0]
      %v2680 = vld [vmem:[#allocation5 + $0x10] sm:$0xf]
      %v2681 = vld [vmem:[#allocation5 + $0x18] sm:$0xf]
      %v2682 = vmul.f32 %v2678, 0.5
      %v2683 = vmul.f32 %v2679, 0.5
      %2684 = vxpose.xlu0.b32.start [1/16] %v2676, 128
      %2685 = vxpose.xlu0.b32.cont [2/16] 0.0, 128
      %2686 = vxpose.xlu0.b32.cont [3/16] 0.0, 128
      %2687 = vxpose.xlu0.b32.cont [4/16] 0.0, 128
      %2688 = vxpose.xlu0.b32.cont [5/16] 0.0, 128
      %2689 = vxpose.xlu0.b32.cont [6/16] 0.0, 128
      %2690 = vxpose.xlu0.b32.cont [7/16] 0.0, 128
      %2691 = vxpose.xlu0.b32.cont [8/16] 0.0, 128
      %2692 = vxpose.xlu0.b32.cont [9/16] 0.0, 128
      %2693 = vxpose.xlu0.b32.cont [10/16] 0.0, 128
      %2694 = vxpose.xlu0.b32.cont [11/16] 0.0, 128
      %2695 = vxpose.xlu0.b32.cont [12/16] 0.0, 128
      %2696 = vxpose.xlu0.b32.cont [13/16] 0.0, 128
      %2697 = vxpose.xlu0.b32.cont [14/16] 0.0, 128
      %2698 = vxpose.xlu0.b32.cont [15/16] 0.0, 128
      %2699 = vxpose.xlu0.b32.end [16/16] 0.0, 128
      %v2700 = vpop.trf.xlu0
      %v2701 = vpop.trf.xlu0
      %v2702 = vpop.trf.xlu0
      %v2703 = vpop.trf.xlu0
      %v2704 = vpop.trf.xlu0
      %v2705 = vpop.trf.xlu0
      %v2706 = vpop.trf.xlu0
      %v2707 = vpop.trf.xlu0
      %v2708 = vpop.trf.xlu0
      %v2709 = vpop.trf.xlu0
      %v2710 = vpop.trf.xlu0
      %v2711 = vpop.trf.xlu0
      %v2712 = vpop.trf.xlu0
      %v2713 = vpop.trf.xlu0
      %v2714 = vpop.trf.xlu0
      %v2715 = vpop.trf.xlu0
      %2716 = vxpose.xlu0.b32.start [1/16] %v2677, 128
      %2717 = vxpose.xlu0.b32.cont [2/16] 0.0, 128
      %2718 = vxpose.xlu0.b32.cont [3/16] 0.0, 128
      %2719 = vxpose.xlu0.b32.cont [4/16] 0.0, 128
      %2720 = vxpose.xlu0.b32.cont [5/16] 0.0, 128
      %2721 = vxpose.xlu0.b32.cont [6/16] 0.0, 128
      %2722 = vxpose.xlu0.b32.cont [7/16] 0.0, 128
      %2723 = vxpose.xlu0.b32.cont [8/16] 0.0, 128
      %2724 = vxpose.xlu0.b32.cont [9/16] 0.0, 128
      %2725 = vxpose.xlu0.b32.cont [10/16] 0.0, 128
      %2726 = vxpose.xlu0.b32.cont [11/16] 0.0, 128
      %2727 = vxpose.xlu0.b32.cont [12/16] 0.0, 128
      %2728 = vxpose.xlu0.b32.cont [13/16] 0.0, 128
      %2729 = vxpose.xlu0.b32.cont [14/16] 0.0, 128
      %2730 = vxpose.xlu0.b32.cont [15/16] 0.0, 128
      %2731 = vxpose.xlu0.b32.end [16/16] 0.0, 128
      %v2732 = vpop.trf.xlu0
      %v2733 = vpop.trf.xlu0
      %v2734 = vpop.trf.xlu0
      %v2735 = vpop.trf.xlu0
      %v2736 = vpop.trf.xlu0
      %v2737 = vpop.trf.xlu0
      %v2738 = vpop.trf.xlu0
      %v2739 = vpop.trf.xlu0
      %v2740 = vpop.trf.xlu0
      %v2741 = vpop.trf.xlu0
      %v2742 = vpop.trf.xlu0
      %v2743 = vpop.trf.xlu0
      %v2744 = vpop.trf.xlu0
      %v2745 = vpop.trf.xlu0
      %v2746 = vpop.trf.xlu0
      %v2747 = vpop.trf.xlu0
      %v2750 = vrot.slane %v2682, 4
      %v2751 = vrot.slane %v2683, 4
      %v2753 = vsel %vm645, %v2700, 0
      %v2756 = vsel %vm645, %v2701, 0
      %v2759 = vsel %vm645, %v2702, 0
      %v2762 = vsel %vm645, %v2703, 0
      %v2765 = vsel %vm645, %v2704, 0
      %v2768 = vsel %vm645, %v2705, 0
      %v2771 = vsel %vm645, %v2706, 0
      %v2774 = vsel %vm645, %v2707, 0
      %v2777 = vsel %vm645, %v2708, 0
      %v2780 = vsel %vm645, %v2709, 0
      %v2783 = vsel %vm645, %v2710, 0
      %v2786 = vsel %vm645, %v2711, 0
      %v2789 = vsel %vm645, %v2712, 0
      %v2792 = vsel %vm645, %v2713, 0
      %v2795 = vsel %vm645, %v2714, 0
      %v2798 = vsel %vm645, %v2715, 0
      %v2801 = vsel %vm645, %v2732, 0
      %v2804 = vsel %vm645, %v2733, 0
      %v2807 = vsel %vm645, %v2734, 0
      %v2810 = vsel %vm645, %v2735, 0
      %v2813 = vsel %vm645, %v2736, 0
      %v2816 = vsel %vm645, %v2737, 0
      %v2819 = vsel %vm645, %v2738, 0
      %v2822 = vsel %vm645, %v2739, 0
      %v2825 = vsel %vm645, %v2740, 0
      %v2828 = vsel %vm645, %v2741, 0
      %v2831 = vsel %vm645, %v2742, 0
      %v2834 = vsel %vm645, %v2743, 0
      %v2837 = vsel %vm645, %v2744, 0
      %v2840 = vsel %vm645, %v2745, 0
      %v2843 = vsel %vm645, %v2746, 0
      %v2846 = vsel %vm645, %v2747, 0
      %v2848 = vsel %vm501, %v2750, 0
      %v2850 = vsel %vm501, %v2751, 0
      %2852 = vmatprep.subr.mxu0 %v2850
      %2853 = vmatpush1.msra.mxu0 %v2848
      %2854 = vmatprep.subr.mxu0 0.0
      %2855 = vmatpush1.msra.mxu0 0.0
      %2856 = vmatprep.subr.mxu0 0.0
      %2857 = vmatpush1.msra.mxu0 0.0
      %2858 = vmatprep.subr.mxu0 0.0
      %2859 = vmatpush1.msra.mxu0 0.0
      %2860 = vmatprep.subr.mxu0 0.0
      %2861 = vmatpush1.msra.mxu0 0.0
      %2862 = vmatprep.subr.mxu0 0.0
      %2863 = vmatpush1.msra.mxu0 0.0
      %2864 = vmatprep.subr.mxu0 0.0
      %2865 = vmatpush1.msra.mxu0 0.0
      %2866 = vmatprep.subr.mxu0 0.0
      %2867 = vmatpush1.msra.mxu0 0.0
      %2868 = vmatprep.subr.mxu0 0.0
      %2869 = vmatpush1.msra.mxu0 0.0
      %2870 = vmatprep.subr.mxu0 0.0
      %2871 = vmatpush1.msra.mxu0 0.0
      %2872 = vmatprep.subr.mxu0 0.0
      %2873 = vmatpush1.msra.mxu0 0.0
      %2874 = vmatprep.subr.mxu0 0.0
      %2875 = vmatpush1.msra.mxu0 0.0
      %2876 = vmatprep.subr.mxu0 0.0
      %2877 = vmatpush1.msra.mxu0 0.0
      %2878 = vmatprep.subr.mxu0 0.0
      %2879 = vmatpush1.msra.mxu0 0.0
      %2880 = vmatprep.subr.mxu0 0.0
      %2881 = vmatpush1.msra.mxu0 0.0
      %2882 = vmatprep.subr.mxu0 0.0
      %2883 = vmatpush1.msra.mxu0 0.0
      %2884 = vmatprep.subr.mxu0 0.0
      %2885 = vmatpush1.msra.mxu0 0.0
      %2886 = vmatprep.subr.mxu0 0.0
      %2887 = vmatpush1.msra.mxu0 0.0
      %2888 = vmatprep.subr.mxu0 0.0
      %2889 = vmatpush1.msra.mxu0 0.0
      %2890 = vmatprep.subr.mxu0 0.0
      %2891 = vmatpush1.msra.mxu0 0.0
      %2892 = vmatprep.subr.mxu0 0.0
      %2893 = vmatpush1.msra.mxu0 0.0
      %2894 = vmatprep.subr.mxu0 0.0
      %2895 = vmatpush1.msra.mxu0 0.0
      %2896 = vmatprep.subr.mxu0 0.0
      %2897 = vmatpush1.msra.mxu0 0.0
      %2898 = vmatprep.subr.mxu0 0.0
      %2899 = vmatpush1.msra.mxu0 0.0
      %2900 = vmatprep.subr.mxu0 0.0
      %2901 = vmatpush1.msra.mxu0 0.0
      %2902 = vmatprep.subr.mxu0 0.0
      %2903 = vmatpush1.msra.mxu0 0.0
      %2904 = vmatprep.subr.mxu0 0.0
      %2905 = vmatpush1.msra.mxu0 0.0
      %2906 = vmatprep.subr.mxu0 0.0
      %2907 = vmatpush1.msra.mxu0 0.0
      %2908 = vmatprep.subr.mxu0 0.0
      %2909 = vmatpush1.msra.mxu0 0.0
      %2910 = vmatprep.subr.mxu0 0.0
      %2911 = vmatpush1.msra.mxu0 0.0
      %2912 = vmatprep.subr.mxu0 0.0
      %2913 = vmatpush1.msra.mxu0 0.0
      %2914 = vmatprep.subr.mxu0 0.0
      %2915 = vmatpush1.msra.mxu0 0.0
      %2916 = vmatprep.mubr.f32.mxu0 0.0
      %2917 = vmatmul.mubr.f32.gmra.mrb[0].mxu0 %v2753
      %v2918 = vpop.f32.mrb[0].mxu0
      %v2919 = vadd.f32 0.0, %v2918
      %v2920 = vpop.f32.mrb[0].mxu0
      %v2921 = vadd.f32 0.0, %v2920
      %2922 = vmatprep.mubr.f32.mxu0 0.0
      %2923 = vmatmul.mubr.f32.gmra.mrb[0].mxu0 %v2756
      %v2924 = vpop.f32.mrb[0].mxu0
      %v2925 = vadd.f32 0.0, %v2924
      %v2926 = vpop.f32.mrb[0].mxu0
      %v2927 = vadd.f32 0.0, %v2926
      %2928 = vmatprep.mubr.f32.mxu0 0.0
      %2929 = vmatmul.mubr.f32.gmra.mrb[0].mxu0 %v2759
      %v2930 = vpop.f32.mrb[0].mxu0
      %v2931 = vadd.f32 0.0, %v2930
      %v2932 = vpop.f32.mrb[0].mxu0
      %v2933 = vadd.f32 0.0, %v2932
      %2934 = vmatprep.mubr.f32.mxu0 0.0
      %2935 = vmatmul.mubr.f32.gmra.mrb[0].mxu0 %v2762
      %v2936 = vpop.f32.mrb[0].mxu0
      %v2937 = vadd.f32 0.0, %v2936
      %v2938 = vpop.f32.mrb[0].mxu0
      %v2939 = vadd.f32 0.0, %v2938
      %2940 = vmatprep.mubr.f32.mxu0 0.0
      %2941 = vmatmul.mubr.f32.gmra.mrb[0].mxu0 %v2765
      %v2942 = vpop.f32.mrb[0].mxu0
      %v2943 = vadd.f32 0.0, %v2942
      %v2944 = vpop.f32.mrb[0].mxu0
      %v2945 = vadd.f32 0.0, %v2944
      %2946 = vmatprep.mubr.f32.mxu0 0.0
      %2947 = vmatmul.mubr.f32.gmra.mrb[0].mxu0 %v2768
      %v2948 = vpop.f32.mrb[0].mxu0
      %v2949 = vadd.f32 0.0, %v2948
      %v2950 = vpop.f32.mrb[0].mxu0
      %v2951 = vadd.f32 0.0, %v2950
      %2952 = vmatprep.mubr.f32.mxu0 0.0
      %2953 = vmatmul.mubr.f32.gmra.mrb[0].mxu0 %v2771
      %v2954 = vpop.f32.mrb[0].mxu0
      %v2955 = vadd.f32 0.0, %v2954
      %v2956 = vpop.f32.mrb[0].mxu0
      %v2957 = vadd.f32 0.0, %v2956
      %2958 = vmatprep.mubr.f32.mxu0 0.0
      %2959 = vmatmul.mubr.f32.gmra.mrb[0].mxu0 %v2774
      %v2960 = vpop.f32.mrb[0].mxu0
      %v2961 = vadd.f32 0.0, %v2960
      %v2962 = vpop.f32.mrb[0].mxu0
      %v2963 = vadd.f32 0.0, %v2962
      %2964 = vmatprep.mubr.f32.mxu0 0.0
      %2965 = vmatmul.mubr.f32.gmra.mrb[0].mxu0 %v2777
      %v2966 = vpop.f32.mrb[0].mxu0
      %v2967 = vadd.f32 0.0, %v2966
      %v2968 = vpop.f32.mrb[0].mxu0
      %v2969 = vadd.f32 0.0, %v2968
      %2970 = vmatprep.mubr.f32.mxu0 0.0
      %2971 = vmatmul.mubr.f32.gmra.mrb[0].mxu0 %v2780
      %v2972 = vpop.f32.mrb[0].mxu0
      %v2973 = vadd.f32 0.0, %v2972
      %v2974 = vpop.f32.mrb[0].mxu0
      %v2975 = vadd.f32 0.0, %v2974
      %2976 = vmatprep.mubr.f32.mxu0 0.0
      %2977 = vmatmul.mubr.f32.gmra.mrb[0].mxu0 %v2783
      %v2978 = vpop.f32.mrb[0].mxu0
      %v2979 = vadd.f32 0.0, %v2978
      %v2980 = vpop.f32.mrb[0].mxu0
      %v2981 = vadd.f32 0.0, %v2980
      %2982 = vmatprep.mubr.f32.mxu0 0.0
      %2983 = vmatmul.mubr.f32.gmra.mrb[0].mxu0 %v2786
      %v2984 = vpop.f32.mrb[0].mxu0
      %v2985 = vadd.f32 0.0, %v2984
      %v2986 = vpop.f32.mrb[0].mxu0
      %v2987 = vadd.f32 0.0, %v2986
      %2988 = vmatprep.mubr.f32.mxu0 0.0
      %2989 = vmatmul.mubr.f32.gmra.mrb[0].mxu0 %v2789
      %v2990 = vpop.f32.mrb[0].mxu0
      %v2991 = vadd.f32 0.0, %v2990
      %v2992 = vpop.f32.mrb[0].mxu0
      %v2993 = vadd.f32 0.0, %v2992
      %2994 = vmatprep.mubr.f32.mxu0 0.0
      %2995 = vmatmul.mubr.f32.gmra.mrb[0].mxu0 %v2792
      %v2996 = vpop.f32.mrb[0].mxu0
      %v2997 = vadd.f32 0.0, %v2996
      %v2998 = vpop.f32.mrb[0].mxu0
      %v2999 = vadd.f32 0.0, %v2998
      %3000 = vmatprep.mubr.f32.mxu0 0.0
      %3001 = vmatmul.mubr.f32.gmra.mrb[0].mxu0 %v2795
      %v3002 = vpop.f32.mrb[0].mxu0
      %v3003 = vadd.f32 0.0, %v3002
      %v3004 = vpop.f32.mrb[0].mxu0
      %v3005 = vadd.f32 0.0, %v3004
      %3006 = vmatprep.mubr.f32.mxu0 0.0
      %3007 = vmatmul.mubr.f32.gmra.mrb[0].mxu0 %v2798
      %v3008 = vpop.f32.mrb[0].mxu0
      %v3009 = vadd.f32 0.0, %v3008
      %v3010 = vpop.f32.mrb[0].mxu0
      %v3011 = vadd.f32 0.0, %v3010
      %3012 = vmatprep.mubr.f32.mxu0 0.0
      %3013 = vmatmul.mubr.f32.gmra.mrb[0].mxu0 %v2801
      %v3014 = vpop.f32.mrb[0].mxu0
      %v3015 = vadd.f32 0.0, %v3014
      %v3016 = vpop.f32.mrb[0].mxu0
      %v3017 = vadd.f32 0.0, %v3016
      %3018 = vmatprep.mubr.f32.mxu0 0.0
      %3019 = vmatmul.mubr.f32.gmra.mrb[0].mxu0 %v2804
      %v3020 = vpop.f32.mrb[0].mxu0
      %v3021 = vadd.f32 0.0, %v3020
      %v3022 = vpop.f32.mrb[0].mxu0
      %v3023 = vadd.f32 0.0, %v3022
      %3024 = vmatprep.mubr.f32.mxu0 0.0
      %3025 = vmatmul.mubr.f32.gmra.mrb[0].mxu0 %v2807
      %v3026 = vpop.f32.mrb[0].mxu0
      %v3027 = vadd.f32 0.0, %v3026
      %v3028 = vpop.f32.mrb[0].mxu0
      %v3029 = vadd.f32 0.0, %v3028
      %3030 = vmatprep.mubr.f32.mxu0 0.0
      %3031 = vmatmul.mubr.f32.gmra.mrb[0].mxu0 %v2810
      %v3032 = vpop.f32.mrb[0].mxu0
      %v3033 = vadd.f32 0.0, %v3032
      %v3034 = vpop.f32.mrb[0].mxu0
      %v3035 = vadd.f32 0.0, %v3034
      %3036 = vmatprep.mubr.f32.mxu0 0.0
      %3037 = vmatmul.mubr.f32.gmra.mrb[0].mxu0 %v2813
      %v3038 = vpop.f32.mrb[0].mxu0
      %v3039 = vadd.f32 0.0, %v3038
      %v3040 = vpop.f32.mrb[0].mxu0
      %v3041 = vadd.f32 0.0, %v3040
      %3042 = vmatprep.mubr.f32.mxu0 0.0
      %3043 = vmatmul.mubr.f32.gmra.mrb[0].mxu0 %v2816
      %v3044 = vpop.f32.mrb[0].mxu0
      %v3045 = vadd.f32 0.0, %v3044
      %v3046 = vpop.f32.mrb[0].mxu0
      %v3047 = vadd.f32 0.0, %v3046
      %3048 = vmatprep.mubr.f32.mxu0 0.0
      %3049 = vmatmul.mubr.f32.gmra.mrb[0].mxu0 %v2819
      %v3050 = vpop.f32.mrb[0].mxu0
      %v3051 = vadd.f32 0.0, %v3050
      %v3052 = vpop.f32.mrb[0].mxu0
      %v3053 = vadd.f32 0.0, %v3052
      %3054 = vmatprep.mubr.f32.mxu0 0.0
      %3055 = vmatmul.mubr.f32.gmra.mrb[0].mxu0 %v2822
      %v3056 = vpop.f32.mrb[0].mxu0
      %v3057 = vadd.f32 0.0, %v3056
      %v3058 = vpop.f32.mrb[0].mxu0
      %v3059 = vadd.f32 0.0, %v3058
      %3060 = vmatprep.mubr.f32.mxu0 0.0
      %3061 = vmatmul.mubr.f32.gmra.mrb[0].mxu0 %v2825
      %v3062 = vpop.f32.mrb[0].mxu0
      %v3063 = vadd.f32 0.0, %v3062
      %v3064 = vpop.f32.mrb[0].mxu0
      %v3065 = vadd.f32 0.0, %v3064
      %3066 = vmatprep.mubr.f32.mxu0 0.0
      %3067 = vmatmul.mubr.f32.gmra.mrb[0].mxu0 %v2828
      %v3068 = vpop.f32.mrb[0].mxu0
      %v3069 = vadd.f32 0.0, %v3068
      %v3070 = vpop.f32.mrb[0].mxu0
      %v3071 = vadd.f32 0.0, %v3070
      %3072 = vmatprep.mubr.f32.mxu0 0.0
      %3073 = vmatmul.mubr.f32.gmra.mrb[0].mxu0 %v2831
      %v3074 = vpop.f32.mrb[0].mxu0
      %v3075 = vadd.f32 0.0, %v3074
      %v3076 = vpop.f32.mrb[0].mxu0
      %v3077 = vadd.f32 0.0, %v3076
      %3078 = vmatprep.mubr.f32.mxu0 0.0
      %3079 = vmatmul.mubr.f32.gmra.mrb[0].mxu0 %v2834
      %v3080 = vpop.f32.mrb[0].mxu0
      %v3081 = vadd.f32 0.0, %v3080
      %v3082 = vpop.f32.mrb[0].mxu0
      %v3083 = vadd.f32 0.0, %v3082
      %3084 = vmatprep.mubr.f32.mxu0 0.0
      %3085 = vmatmul.mubr.f32.gmra.mrb[0].mxu0 %v2837
      %v3086 = vpop.f32.mrb[0].mxu0
      %v3087 = vadd.f32 0.0, %v3086
      %v3088 = vpop.f32.mrb[0].mxu0
      %v3089 = vadd.f32 0.0, %v3088
      %3090 = vmatprep.mubr.f32.mxu0 0.0
      %3091 = vmatmul.mubr.f32.gmra.mrb[0].mxu0 %v2840
      %v3092 = vpop.f32.mrb[0].mxu0
      %v3093 = vadd.f32 0.0, %v3092
      %v3094 = vpop.f32.mrb[0].mxu0
      %v3095 = vadd.f32 0.0, %v3094
      %3096 = vmatprep.mubr.f32.mxu0 0.0
      %3097 = vmatmul.mubr.f32.gmra.mrb[0].mxu0 %v2843
      %v3098 = vpop.f32.mrb[0].mxu0
      %v3099 = vadd.f32 0.0, %v3098
      %v3100 = vpop.f32.mrb[0].mxu0
      %v3101 = vadd.f32 0.0, %v3100
      %3102 = vmatprep.mubr.f32.mxu0 0.0
      %3103 = vmatmul.mubr.f32.gmra.mrb[0].mxu0 %v2846
      %v3104 = vpop.f32.mrb[0].mxu0
      %v3105 = vadd.f32 0.0, %v3104
      %v3106 = vpop.f32.mrb[0].mxu0
      %v3107 = vadd.f32 0.0, %v3106
      %3108 = vdwg.mxu0
      %v3109 = vmax.f32 %v2919, %v2921
      %3110 = vmax.xlane.f32.xlu0 %v3109
      %v3111 = vpop.xlane.xlu0 %3110
      %v3112 = vmax.f32 %v2925, %v2927
      %3113 = vmax.xlane.f32.xlu0 %v3112
      %v3114 = vpop.xlane.xlu0 %3113
      %v3115 = vmax.f32 %v2931, %v2933
      %3116 = vmax.xlane.f32.xlu0 %v3115
      %v3117 = vpop.xlane.xlu0 %3116
      %v3118 = vmax.f32 %v2937, %v2939
      %3119 = vmax.xlane.f32.xlu0 %v3118
      %v3120 = vpop.xlane.xlu0 %3119
      %v3121 = vmax.f32 %v2943, %v2945
      %3122 = vmax.xlane.f32.xlu0 %v3121
      %v3123 = vpop.xlane.xlu0 %3122
      %v3124 = vmax.f32 %v2949, %v2951
      %3125 = vmax.xlane.f32.xlu0 %v3124
      %v3126 = vpop.xlane.xlu0 %3125
      %v3127 = vmax.f32 %v2955, %v2957
      %3128 = vmax.xlane.f32.xlu0 %v3127
      %v3129 = vpop.xlane.xlu0 %3128
      %v3130 = vmax.f32 %v2961, %v2963
      %3131 = vmax.xlane.f32.xlu0 %v3130
      %v3132 = vpop.xlane.xlu0 %3131
      %v3133 = vmax.f32 %v2967, %v2969
      %3134 = vmax.xlane.f32.xlu0 %v3133
      %v3135 = vpop.xlane.xlu0 %3134
      %v3136 = vmax.f32 %v2973, %v2975
      %3137 = vmax.xlane.f32.xlu0 %v3136
      %v3138 = vpop.xlane.xlu0 %3137
      %v3139 = vmax.f32 %v2979, %v2981
      %3140 = vmax.xlane.f32.xlu0 %v3139
      %v3141 = vpop.xlane.xlu0 %3140
      %v3142 = vmax.f32 %v2985, %v2987
      %3143 = vmax.xlane.f32.xlu0 %v3142
      %v3144 = vpop.xlane.xlu0 %3143
      %v3145 = vmax.f32 %v2991, %v2993
      %3146 = vmax.xlane.f32.xlu0 %v3145
      %v3147 = vpop.xlane.xlu0 %3146
      %v3148 = vmax.f32 %v2997, %v2999
      %3149 = vmax.xlane.f32.xlu0 %v3148
      %v3150 = vpop.xlane.xlu0 %3149
      %v3151 = vmax.f32 %v3003, %v3005
      %3152 = vmax.xlane.f32.xlu0 %v3151
      %v3153 = vpop.xlane.xlu0 %3152
      %v3154 = vmax.f32 %v3009, %v3011
      %3155 = vmax.xlane.f32.xlu0 %v3154
      %v3156 = vpop.xlane.xlu0 %3155
      %v3157 = vmax.f32 %v3015, %v3017
      %3158 = vmax.xlane.f32.xlu0 %v3157
      %v3159 = vpop.xlane.xlu0 %3158
      %v3160 = vmax.f32 %v3021, %v3023
      %3161 = vmax.xlane.f32.xlu0 %v3160
      %v3162 = vpop.xlane.xlu0 %3161
      %v3163 = vmax.f32 %v3027, %v3029
      %3164 = vmax.xlane.f32.xlu0 %v3163
      %v3165 = vpop.xlane.xlu0 %3164
      %v3166 = vmax.f32 %v3033, %v3035
      %3167 = vmax.xlane.f32.xlu0 %v3166
      %v3168 = vpop.xlane.xlu0 %3167
      %v3169 = vmax.f32 %v3039, %v3041
      %3170 = vmax.xlane.f32.xlu0 %v3169
      %v3171 = vpop.xlane.xlu0 %3170
      %v3172 = vmax.f32 %v3045, %v3047
      %3173 = vmax.xlane.f32.xlu0 %v3172
      %v3174 = vpop.xlane.xlu0 %3173
      %v3175 = vmax.f32 %v3051, %v3053
      %3176 = vmax.xlane.f32.xlu0 %v3175
      %v3177 = vpop.xlane.xlu0 %3176
      %v3178 = vmax.f32 %v3057, %v3059
      %3179 = vmax.xlane.f32.xlu0 %v3178
      %v3180 = vpop.xlane.xlu0 %3179
      %v3181 = vmax.f32 %v3063, %v3065
      %3182 = vmax.xlane.f32.xlu0 %v3181
      %v3183 = vpop.xlane.xlu0 %3182
      %v3184 = vmax.f32 %v3069, %v3071
      %3185 = vmax.xlane.f32.xlu0 %v3184
      %v3186 = vpop.xlane.xlu0 %3185
      %v3187 = vmax.f32 %v3075, %v3077
      %3188 = vmax.xlane.f32.xlu0 %v3187
      %v3189 = vpop.xlane.xlu0 %3188
      %v3190 = vmax.f32 %v3081, %v3083
      %3191 = vmax.xlane.f32.xlu0 %v3190
      %v3192 = vpop.xlane.xlu0 %3191
      %v3193 = vmax.f32 %v3087, %v3089
      %3194 = vmax.xlane.f32.xlu0 %v3193
      %v3195 = vpop.xlane.xlu0 %3194
      %v3196 = vmax.f32 %v3093, %v3095
      %3197 = vmax.xlane.f32.xlu0 %v3196
      %v3198 = vpop.xlane.xlu0 %3197
      %v3199 = vmax.f32 %v3099, %v3101
      %3200 = vmax.xlane.f32.xlu0 %v3199
      %v3201 = vpop.xlane.xlu0 %3200
      %v3202 = vmax.f32 %v3105, %v3107
      %3203 = vmax.xlane.f32.xlu0 %v3202
      %v3204 = vpop.xlane.xlu0 %3203
      %v3205 = vsub.f32 %v2919, %v3111
      %v3206 = vsub.f32 %v2921, %v3111
      %v3207 = vsub.f32 %v2925, %v3114
      %v3208 = vsub.f32 %v2927, %v3114
      %v3209 = vsub.f32 %v2931, %v3117
      %v3210 = vsub.f32 %v2933, %v3117
      %v3211 = vsub.f32 %v2937, %v3120
      %v3212 = vsub.f32 %v2939, %v3120
      %v3213 = vsub.f32 %v2943, %v3123
      %v3214 = vsub.f32 %v2945, %v3123
      %v3215 = vsub.f32 %v2949, %v3126
      %v3216 = vsub.f32 %v2951, %v3126
      %v3217 = vsub.f32 %v2955, %v3129
      %v3218 = vsub.f32 %v2957, %v3129
      %v3219 = vsub.f32 %v2961, %v3132
      %v3220 = vsub.f32 %v2963, %v3132
      %v3221 = vsub.f32 %v2967, %v3135
      %v3222 = vsub.f32 %v2969, %v3135
      %v3223 = vsub.f32 %v2973, %v3138
      %v3224 = vsub.f32 %v2975, %v3138
      %v3225 = vsub.f32 %v2979, %v3141
      %v3226 = vsub.f32 %v2981, %v3141
      %v3227 = vsub.f32 %v2985, %v3144
      %v3228 = vsub.f32 %v2987, %v3144
      %v3229 = vsub.f32 %v2991, %v3147
      %v3230 = vsub.f32 %v2993, %v3147
      %v3231 = vsub.f32 %v2997, %v3150
      %v3232 = vsub.f32 %v2999, %v3150
      %v3233 = vsub.f32 %v3003, %v3153
      %v3234 = vsub.f32 %v3005, %v3153
      %v3235 = vsub.f32 %v3009, %v3156
      %v3236 = vsub.f32 %v3011, %v3156
      %v3237 = vsub.f32 %v3015, %v3159
      %v3238 = vsub.f32 %v3017, %v3159
      %v3239 = vsub.f32 %v3021, %v3162
      %v3240 = vsub.f32 %v3023, %v3162
      %v3241 = vsub.f32 %v3027, %v3165
      %v3242 = vsub.f32 %v3029, %v3165
      %v3243 = vsub.f32 %v3033, %v3168
      %v3244 = vsub.f32 %v3035, %v3168
      %v3245 = vsub.f32 %v3039, %v3171
      %v3246 = vsub.f32 %v3041, %v3171
      %v3247 = vsub.f32 %v3045, %v3174
      %v3248 = vsub.f32 %v3047, %v3174
      %v3249 = vsub.f32 %v3051, %v3177
      %v3250 = vsub.f32 %v3053, %v3177
      %v3251 = vsub.f32 %v3057, %v3180
      %v3252 = vsub.f32 %v3059, %v3180
      %v3253 = vsub.f32 %v3063, %v3183
      %v3254 = vsub.f32 %v3065, %v3183
      %v3255 = vsub.f32 %v3069, %v3186
      %v3256 = vsub.f32 %v3071, %v3186
      %v3257 = vsub.f32 %v3075, %v3189
      %v3258 = vsub.f32 %v3077, %v3189
      %v3259 = vsub.f32 %v3081, %v3192
      %v3260 = vsub.f32 %v3083, %v3192
      %v3261 = vsub.f32 %v3087, %v3195
      %v3262 = vsub.f32 %v3089, %v3195
      %v3263 = vsub.f32 %v3093, %v3198
      %v3264 = vsub.f32 %v3095, %v3198
      %v3265 = vsub.f32 %v3099, %v3201
      %v3266 = vsub.f32 %v3101, %v3201
      %v3267 = vsub.f32 %v3105, %v3204
      %v3268 = vsub.f32 %v3107, %v3204
      %v3269 = vmul.f32 %v3205, 1.442695
      %v3270 = vpow.pop %v3269
      %v3271 = vmul.f32 %v3206, 1.442695
      %v3272 = vpow.pop %v3271
      %v3273 = vmul.f32 %v3207, 1.442695
      %v3274 = vpow.pop %v3273
      %v3275 = vmul.f32 %v3208, 1.442695
      %v3276 = vpow.pop %v3275
      %v3277 = vmul.f32 %v3209, 1.442695
      %v3278 = vpow.pop %v3277
      %v3279 = vmul.f32 %v3210, 1.442695
      %v3280 = vpow.pop %v3279
      %v3281 = vmul.f32 %v3211, 1.442695
      %v3282 = vpow.pop %v3281
      %v3283 = vmul.f32 %v3212, 1.442695
      %v3284 = vpow.pop %v3283
      %v3285 = vmul.f32 %v3213, 1.442695
      %v3286 = vpow.pop %v3285
      %v3287 = vmul.f32 %v3214, 1.442695
      %v3288 = vpow.pop %v3287
      %v3289 = vmul.f32 %v3215, 1.442695
      %v3290 = vpow.pop %v3289
      %v3291 = vmul.f32 %v3216, 1.442695
      %v3292 = vpow.pop %v3291
      %v3293 = vmul.f32 %v3217, 1.442695
      %v3294 = vpow.pop %v3293
      %v3295 = vmul.f32 %v3218, 1.442695
      %v3296 = vpow.pop %v3295
      %v3297 = vmul.f32 %v3219, 1.442695
      %v3298 = vpow.pop %v3297
      %v3299 = vmul.f32 %v3220, 1.442695
      %v3300 = vpow.pop %v3299
      %v3301 = vmul.f32 %v3221, 1.442695
      %v3302 = vpow.pop %v3301
      %v3303 = vmul.f32 %v3222, 1.442695
      %v3304 = vpow.pop %v3303
      %v3305 = vmul.f32 %v3223, 1.442695
      %v3306 = vpow.pop %v3305
      %v3307 = vmul.f32 %v3224, 1.442695
      %v3308 = vpow.pop %v3307
      %v3309 = vmul.f32 %v3225, 1.442695
      %v3310 = vpow.pop %v3309
      %v3311 = vmul.f32 %v3226, 1.442695
      %v3312 = vpow.pop %v3311
      %v3313 = vmul.f32 %v3227, 1.442695
      %v3314 = vpow.pop %v3313
      %v3315 = vmul.f32 %v3228, 1.442695
      %v3316 = vpow.pop %v3315
      %v3317 = vmul.f32 %v3229, 1.442695
      %v3318 = vpow.pop %v3317
      %v3319 = vmul.f32 %v3230, 1.442695
      %v3320 = vpow.pop %v3319
      %v3321 = vmul.f32 %v3231, 1.442695
      %v3322 = vpow.pop %v3321
      %v3323 = vmul.f32 %v3232, 1.442695
      %v3324 = vpow.pop %v3323
      %v3325 = vmul.f32 %v3233, 1.442695
      %v3326 = vpow.pop %v3325
      %v3327 = vmul.f32 %v3234, 1.442695
      %v3328 = vpow.pop %v3327
      %v3329 = vmul.f32 %v3235, 1.442695
      %v3330 = vpow.pop %v3329
      %v3331 = vmul.f32 %v3236, 1.442695
      %v3332 = vpow.pop %v3331
      %v3333 = vmul.f32 %v3237, 1.442695
      %v3334 = vpow.pop %v3333
      %v3335 = vmul.f32 %v3238, 1.442695
      %v3336 = vpow.pop %v3335
      %v3337 = vmul.f32 %v3239, 1.442695
      %v3338 = vpow.pop %v3337
      %v3339 = vmul.f32 %v3240, 1.442695
      %v3340 = vpow.pop %v3339
      %v3341 = vmul.f32 %v3241, 1.442695
      %v3342 = vpow.pop %v3341
      %v3343 = vmul.f32 %v3242, 1.442695
      %v3344 = vpow.pop %v3343
      %v3345 = vmul.f32 %v3243, 1.442695
      %v3346 = vpow.pop %v3345
      %v3347 = vmul.f32 %v3244, 1.442695
      %v3348 = vpow.pop %v3347
      %v3349 = vmul.f32 %v3245, 1.442695
      %v3350 = vpow.pop %v3349
      %v3351 = vmul.f32 %v3246, 1.442695
      %v3352 = vpow.pop %v3351
      %v3353 = vmul.f32 %v3247, 1.442695
      %v3354 = vpow.pop %v3353
      %v3355 = vmul.f32 %v3248, 1.442695
      %v3356 = vpow.pop %v3355
      %v3357 = vmul.f32 %v3249, 1.442695
      %v3358 = vpow.pop %v3357
      %v3359 = vmul.f32 %v3250, 1.442695
      %v3360 = vpow.pop %v3359
      %v3361 = vmul.f32 %v3251, 1.442695
      %v3362 = vpow.pop %v3361
      %v3363 = vmul.f32 %v3252, 1.442695
      %v3364 = vpow.pop %v3363
      %v3365 = vmul.f32 %v3253, 1.442695
      %v3366 = vpow.pop %v3365
      %v3367 = vmul.f32 %v3254, 1.442695
      %v3368 = vpow.pop %v3367
      %v3369 = vmul.f32 %v3255, 1.442695
      %v3370 = vpow.pop %v3369
      %v3371 = vmul.f32 %v3256, 1.442695
      %v3372 = vpow.pop %v3371
      %v3373 = vmul.f32 %v3257, 1.442695
      %v3374 = vpow.pop %v3373
      %v3375 = vmul.f32 %v3258, 1.442695
      %v3376 = vpow.pop %v3375
      %v3377 = vmul.f32 %v3259, 1.442695
      %v3378 = vpow.pop %v3377
      %v3379 = vmul.f32 %v3260, 1.442695
      %v3380 = vpow.pop %v3379
      %v3381 = vmul.f32 %v3261, 1.442695
      %v3382 = vpow.pop %v3381
      %v3383 = vmul.f32 %v3262, 1.442695
      %v3384 = vpow.pop %v3383
      %v3385 = vmul.f32 %v3263, 1.442695
      %v3386 = vpow.pop %v3385
      %v3387 = vmul.f32 %v3264, 1.442695
      %v3388 = vpow.pop %v3387
      %v3389 = vmul.f32 %v3265, 1.442695
      %v3390 = vpow.pop %v3389
      %v3391 = vmul.f32 %v3266, 1.442695
      %v3392 = vpow.pop %v3391
      %v3393 = vmul.f32 %v3267, 1.442695
      %v3394 = vpow.pop %v3393
      %v3395 = vmul.f32 %v3268, 1.442695
      %v3396 = vpow.pop %v3395
      %v3397 = vadd.f32 %v3270, %v3272
      %3398 = vadd.xlane.f32.xlu0 %v3397
      %v3399 = vpop.xlane.xlu0 %3398
      %v3400 = vadd.f32 %v3274, %v3276
      %3401 = vadd.xlane.f32.xlu0 %v3400
      %v3402 = vpop.xlane.xlu0 %3401
      %v3403 = vadd.f32 %v3278, %v3280
      %3404 = vadd.xlane.f32.xlu0 %v3403
      %v3405 = vpop.xlane.xlu0 %3404
      %v3406 = vadd.f32 %v3282, %v3284
      %3407 = vadd.xlane.f32.xlu0 %v3406
      %v3408 = vpop.xlane.xlu0 %3407
      %v3409 = vadd.f32 %v3286, %v3288
      %3410 = vadd.xlane.f32.xlu0 %v3409
      %v3411 = vpop.xlane.xlu0 %3410
      %v3412 = vadd.f32 %v3290, %v3292
      %3413 = vadd.xlane.f32.xlu0 %v3412
      %v3414 = vpop.xlane.xlu0 %3413
      %v3415 = vadd.f32 %v3294, %v3296
      %3416 = vadd.xlane.f32.xlu0 %v3415
      %v3417 = vpop.xlane.xlu0 %3416
      %v3418 = vadd.f32 %v3298, %v3300
      %3419 = vadd.xlane.f32.xlu0 %v3418
      %v3420 = vpop.xlane.xlu0 %3419
      %v3421 = vadd.f32 %v3302, %v3304
      %3422 = vadd.xlane.f32.xlu0 %v3421
      %v3423 = vpop.xlane.xlu0 %3422
      %v3424 = vadd.f32 %v3306, %v3308
      %3425 = vadd.xlane.f32.xlu0 %v3424
      %v3426 = vpop.xlane.xlu0 %3425
      %v3427 = vadd.f32 %v3310, %v3312
      %3428 = vadd.xlane.f32.xlu0 %v3427
      %v3429 = vpop.xlane.xlu0 %3428
      %v3430 = vadd.f32 %v3314, %v3316
      %3431 = vadd.xlane.f32.xlu0 %v3430
      %v3432 = vpop.xlane.xlu0 %3431
      %v3433 = vadd.f32 %v3318, %v3320
      %3434 = vadd.xlane.f32.xlu0 %v3433
      %v3435 = vpop.xlane.xlu0 %3434
      %v3436 = vadd.f32 %v3322, %v3324
      %3437 = vadd.xlane.f32.xlu0 %v3436
      %v3438 = vpop.xlane.xlu0 %3437
      %v3439 = vadd.f32 %v3326, %v3328
      %3440 = vadd.xlane.f32.xlu0 %v3439
      %v3441 = vpop.xlane.xlu0 %3440
      %v3442 = vadd.f32 %v3330, %v3332
      %3443 = vadd.xlane.f32.xlu0 %v3442
      %v3444 = vpop.xlane.xlu0 %3443
      %v3445 = vadd.f32 %v3334, %v3336
      %3446 = vadd.xlane.f32.xlu0 %v3445
      %v3447 = vpop.xlane.xlu0 %3446
      %v3448 = vadd.f32 %v3338, %v3340
      %3449 = vadd.xlane.f32.xlu0 %v3448
      %v3450 = vpop.xlane.xlu0 %3449
      %v3451 = vadd.f32 %v3342, %v3344
      %3452 = vadd.xlane.f32.xlu0 %v3451
      %v3453 = vpop.xlane.xlu0 %3452
      %v3454 = vadd.f32 %v3346, %v3348
      %3455 = vadd.xlane.f32.xlu0 %v3454
      %v3456 = vpop.xlane.xlu0 %3455
      %v3457 = vadd.f32 %v3350, %v3352
      %3458 = vadd.xlane.f32.xlu0 %v3457
      %v3459 = vpop.xlane.xlu0 %3458
      %v3460 = vadd.f32 %v3354, %v3356
      %3461 = vadd.xlane.f32.xlu0 %v3460
      %v3462 = vpop.xlane.xlu0 %3461
      %v3463 = vadd.f32 %v3358, %v3360
      %3464 = vadd.xlane.f32.xlu0 %v3463
      %v3465 = vpop.xlane.xlu0 %3464
      %v3466 = vadd.f32 %v3362, %v3364
      %3467 = vadd.xlane.f32.xlu0 %v3466
      %v3468 = vpop.xlane.xlu0 %3467
      %v3469 = vadd.f32 %v3366, %v3368
      %3470 = vadd.xlane.f32.xlu0 %v3469
      %v3471 = vpop.xlane.xlu0 %3470
      %v3472 = vadd.f32 %v3370, %v3372
      %3473 = vadd.xlane.f32.xlu0 %v3472
      %v3474 = vpop.xlane.xlu0 %3473
      %v3475 = vadd.f32 %v3374, %v3376
      %3476 = vadd.xlane.f32.xlu0 %v3475
      %v3477 = vpop.xlane.xlu0 %3476
      %v3478 = vadd.f32 %v3378, %v3380
      %3479 = vadd.xlane.f32.xlu0 %v3478
      %v3480 = vpop.xlane.xlu0 %3479
      %v3481 = vadd.f32 %v3382, %v3384
      %3482 = vadd.xlane.f32.xlu0 %v3481
      %v3483 = vpop.xlane.xlu0 %3482
      %v3484 = vadd.f32 %v3386, %v3388
      %3485 = vadd.xlane.f32.xlu0 %v3484
      %v3486 = vpop.xlane.xlu0 %3485
      %v3487 = vadd.f32 %v3390, %v3392
      %3488 = vadd.xlane.f32.xlu0 %v3487
      %v3489 = vpop.xlane.xlu0 %3488
      %v3490 = vadd.f32 %v3394, %v3396
      %3491 = vadd.xlane.f32.xlu0 %v3490
      %v3492 = vpop.xlane.xlu0 %3491
      %v3493 = vrcp.pop %v3399
      %v3494 = vrcp.pop %v3402
      %v3495 = vrcp.pop %v3405
      %v3496 = vrcp.pop %v3408
      %v3497 = vrcp.pop %v3411
      %v3498 = vrcp.pop %v3414
      %v3499 = vrcp.pop %v3417
      %v3500 = vrcp.pop %v3420
      %v3501 = vrcp.pop %v3423
      %v3502 = vrcp.pop %v3426
      %v3503 = vrcp.pop %v3429
      %v3504 = vrcp.pop %v3432
      %v3505 = vrcp.pop %v3435
      %v3506 = vrcp.pop %v3438
      %v3507 = vrcp.pop %v3441
      %v3508 = vrcp.pop %v3444
      %v3509 = vrcp.pop %v3447
      %v3510 = vrcp.pop %v3450
      %v3511 = vrcp.pop %v3453
      %v3512 = vrcp.pop %v3456
      %v3513 = vrcp.pop %v3459
      %v3514 = vrcp.pop %v3462
      %v3515 = vrcp.pop %v3465
      %v3516 = vrcp.pop %v3468
      %v3517 = vrcp.pop %v3471
      %v3518 = vrcp.pop %v3474
      %v3519 = vrcp.pop %v3477
      %v3520 = vrcp.pop %v3480
      %v3521 = vrcp.pop %v3483
      %v3522 = vrcp.pop %v3486
      %v3523 = vrcp.pop %v3489
      %v3524 = vrcp.pop %v3492
      %v3525 = vmul.f32 %v3270, %v3493
      %v3526 = vmul.f32 %v3272, %v3493
      %v3527 = vmul.f32 %v3274, %v3494
      %v3528 = vmul.f32 %v3276, %v3494
      %v3529 = vmul.f32 %v3278, %v3495
      %v3530 = vmul.f32 %v3280, %v3495
      %v3531 = vmul.f32 %v3282, %v3496
      %v3532 = vmul.f32 %v3284, %v3496
      %v3533 = vmul.f32 %v3286, %v3497
      %v3534 = vmul.f32 %v3288, %v3497
      %v3535 = vmul.f32 %v3290, %v3498
      %v3536 = vmul.f32 %v3292, %v3498
      %v3537 = vmul.f32 %v3294, %v3499
      %v3538 = vmul.f32 %v3296, %v3499
      %v3539 = vmul.f32 %v3298, %v3500
      %v3540 = vmul.f32 %v3300, %v3500
      %v3541 = vmul.f32 %v3302, %v3501
      %v3542 = vmul.f32 %v3304, %v3501
      %v3543 = vmul.f32 %v3306, %v3502
      %v3544 = vmul.f32 %v3308, %v3502
      %v3545 = vmul.f32 %v3310, %v3503
      %v3546 = vmul.f32 %v3312, %v3503
      %v3547 = vmul.f32 %v3314, %v3504
      %v3548 = vmul.f32 %v3316, %v3504
      %v3549 = vmul.f32 %v3318, %v3505
      %v3550 = vmul.f32 %v3320, %v3505
      %v3551 = vmul.f32 %v3322, %v3506
      %v3552 = vmul.f32 %v3324, %v3506
      %v3553 = vmul.f32 %v3326, %v3507
      %v3554 = vmul.f32 %v3328, %v3507
      %v3555 = vmul.f32 %v3330, %v3508
      %v3556 = vmul.f32 %v3332, %v3508
      %v3557 = vmul.f32 %v3334, %v3509
      %v3558 = vmul.f32 %v3336, %v3509
      %v3559 = vmul.f32 %v3338, %v3510
      %v3560 = vmul.f32 %v3340, %v3510
      %v3561 = vmul.f32 %v3342, %v3511
      %v3562 = vmul.f32 %v3344, %v3511
      %v3563 = vmul.f32 %v3346, %v3512
      %v3564 = vmul.f32 %v3348, %v3512
      %v3565 = vmul.f32 %v3350, %v3513
      %v3566 = vmul.f32 %v3352, %v3513
      %v3567 = vmul.f32 %v3354, %v3514
      %v3568 = vmul.f32 %v3356, %v3514
      %v3569 = vmul.f32 %v3358, %v3515
      %v3570 = vmul.f32 %v3360, %v3515
      %v3571 = vmul.f32 %v3362, %v3516
      %v3572 = vmul.f32 %v3364, %v3516
      %v3573 = vmul.f32 %v3366, %v3517
      %v3574 = vmul.f32 %v3368, %v3517
      %v3575 = vmul.f32 %v3370, %v3518
      %v3576 = vmul.f32 %v3372, %v3518
      %v3577 = vmul.f32 %v3374, %v3519
      %v3578 = vmul.f32 %v3376, %v3519
      %v3579 = vmul.f32 %v3378, %v3520
      %v3580 = vmul.f32 %v3380, %v3520
      %v3581 = vmul.f32 %v3382, %v3521
      %v3582 = vmul.f32 %v3384, %v3521
      %v3583 = vmul.f32 %v3386, %v3522
      %v3584 = vmul.f32 %v3388, %v3522
      %v3585 = vmul.f32 %v3390, %v3523
      %v3586 = vmul.f32 %v3392, %v3523
      %v3587 = vmul.f32 %v3394, %v3524
      %v3588 = vmul.f32 %v3396, %v3524
      %3589 = vmatprep.subr.mxu0 %v3526
      %3590 = vmatpush1.xpose.msra.mxu0 %v3525
      %3591 = vmatprep.subr.mxu0 %v3528
      %3592 = vmatpush1.xpose.msra.mxu0 %v3527
      %3593 = vmatprep.subr.mxu0 %v3530
      %3594 = vmatpush1.xpose.msra.mxu0 %v3529
      %3595 = vmatprep.subr.mxu0 %v3532
      %3596 = vmatpush1.xpose.msra.mxu0 %v3531
      %3597 = vmatprep.subr.mxu0 %v3534
      %3598 = vmatpush1.xpose.msra.mxu0 %v3533
      %3599 = vmatprep.subr.mxu0 %v3536
      %3600 = vmatpush1.xpose.msra.mxu0 %v3535
      %3601 = vmatprep.subr.mxu0 %v3538
      %3602 = vmatpush1.xpose.msra.mxu0 %v3537
      %3603 = vmatprep.subr.mxu0 %v3540
      %3604 = vmatpush1.xpose.msra.mxu0 %v3539
      %3605 = vmatprep.subr.mxu0 %v3542
      %3606 = vmatpush1.xpose.msra.mxu0 %v3541
      %3607 = vmatprep.subr.mxu0 %v3544
      %3608 = vmatpush1.xpose.msra.mxu0 %v3543
      %3609 = vmatprep.subr.mxu0 %v3546
      %3610 = vmatpush1.xpose.msra.mxu0 %v3545
      %3611 = vmatprep.subr.mxu0 %v3548
      %3612 = vmatpush1.xpose.msra.mxu0 %v3547
      %3613 = vmatprep.subr.mxu0 %v3550
      %3614 = vmatpush1.xpose.msra.mxu0 %v3549
      %3615 = vmatprep.subr.mxu0 %v3552
      %3616 = vmatpush1.xpose.msra.mxu0 %v3551
      %3617 = vmatprep.subr.mxu0 %v3554
      %3618 = vmatpush1.xpose.msra.mxu0 %v3553
      %3619 = vmatprep.subr.mxu0 %v3556
      %3620 = vmatpush1.xpose.msra.mxu0 %v3555
      %3621 = vmatprep.subr.mxu0 %v3558
      %3622 = vmatpush1.xpose.msra.mxu0 %v3557
      %3623 = vmatprep.subr.mxu0 %v3560
      %3624 = vmatpush1.xpose.msra.mxu0 %v3559
      %3625 = vmatprep.subr.mxu0 %v3562
      %3626 = vmatpush1.xpose.msra.mxu0 %v3561
      %3627 = vmatprep.subr.mxu0 %v3564
      %3628 = vmatpush1.xpose.msra.mxu0 %v3563
      %3629 = vmatprep.subr.mxu0 %v3566
      %3630 = vmatpush1.xpose.msra.mxu0 %v3565
      %3631 = vmatprep.subr.mxu0 %v3568
      %3632 = vmatpush1.xpose.msra.mxu0 %v3567
      %3633 = vmatprep.subr.mxu0 %v3570
      %3634 = vmatpush1.xpose.msra.mxu0 %v3569
      %3635 = vmatprep.subr.mxu0 %v3572
      %3636 = vmatpush1.xpose.msra.mxu0 %v3571
      %3637 = vmatprep.subr.mxu0 %v3574
      %3638 = vmatpush1.xpose.msra.mxu0 %v3573
      %3639 = vmatprep.subr.mxu0 %v3576
      %3640 = vmatpush1.xpose.msra.mxu0 %v3575
      %3641 = vmatprep.subr.mxu0 %v3578
      %3642 = vmatpush1.xpose.msra.mxu0 %v3577
      %3643 = vmatprep.subr.mxu0 %v3580
      %3644 = vmatpush1.xpose.msra.mxu0 %v3579
      %3645 = vmatprep.subr.mxu0 %v3582
      %3646 = vmatpush1.xpose.msra.mxu0 %v3581
      %3647 = vmatprep.subr.mxu0 %v3584
      %3648 = vmatpush1.xpose.msra.mxu0 %v3583
      %3649 = vmatprep.subr.mxu0 %v3586
      %3650 = vmatpush1.xpose.msra.mxu0 %v3585
      %3651 = vmatprep.subr.mxu0 %v3588
      %3652 = vmatpush1.xpose.msra.mxu0 %v3587
      %3653 = vmatprep.mubr.f32.mxu0 %v2681
      %3654 = vmatmul.mubr.f32.gmra.mrb[0].mxu0 %v2680
      %v3655 = vpop.f32.mrb[0].mxu0
      %v3656 = vadd.f32 0.0, %v3655
      %v3657 = vpop.f32.mrb[0].mxu0
      %v3658 = vadd.f32 0.0, %v3657
      %3659 = vdwg.mxu0
      %v3660 = vld [vmem:[%s13] sm:$0xff]
      %v3661 = vld [vmem:[#allocation5 + $0x10] sm:$0xf0]
      %v3662 = vld [vmem:[#allocation5 + $0x18] sm:$0xf0]
      %v3663 = vld [vmem:[#allocation5 + $0x20] sm:$0xf]
      %v3664 = vld [vmem:[#allocation5 + $0x28] sm:$0xf]
      %v3665 = vld [vmem:[#allocation5 + $0x20] sm:$0xf0]
      %v3666 = vld [vmem:[#allocation5 + $0x28] sm:$0xf0]
      %v3667 = vmul.f32 %v3663, 0.5
      %v3668 = vmul.f32 %v3664, 0.5
      %v3671 = vrot.slane %v3661, 4
      %v3672 = vrot.slane %v3662, 4
      %3675 = vxpose.xlu0.b32.start [1/16] %v3671, 128
      %3676 = vxpose.xlu0.b32.cont [2/16] 0.0, 128
      %3677 = vxpose.xlu0.b32.cont [3/16] 0.0, 128
      %3678 = vxpose.xlu0.b32.cont [4/16] 0.0, 128
      %3679 = vxpose.xlu0.b32.cont [5/16] 0.0, 128
      %3680 = vxpose.xlu0.b32.cont [6/16] 0.0, 128
      %3681 = vxpose.xlu0.b32.cont [7/16] 0.0, 128
      %3682 = vxpose.xlu0.b32.cont [8/16] 0.0, 128
      %3683 = vxpose.xlu0.b32.cont [9/16] 0.0, 128
      %3684 = vxpose.xlu0.b32.cont [10/16] 0.0, 128
      %3685 = vxpose.xlu0.b32.cont [11/16] 0.0, 128
      %3686 = vxpose.xlu0.b32.cont [12/16] 0.0, 128
      %3687 = vxpose.xlu0.b32.cont [13/16] 0.0, 128
      %3688 = vxpose.xlu0.b32.cont [14/16] 0.0, 128
      %3689 = vxpose.xlu0.b32.cont [15/16] 0.0, 128
      %3690 = vxpose.xlu0.b32.end [16/16] 0.0, 128
      %v3691 = vpop.trf.xlu0
      %v3692 = vpop.trf.xlu0
      %v3693 = vpop.trf.xlu0
      %v3694 = vpop.trf.xlu0
      %v3695 = vpop.trf.xlu0
      %v3696 = vpop.trf.xlu0
      %v3697 = vpop.trf.xlu0
      %v3698 = vpop.trf.xlu0
      %v3699 = vpop.trf.xlu0
      %v3700 = vpop.trf.xlu0
      %v3701 = vpop.trf.xlu0
      %v3702 = vpop.trf.xlu0
      %v3703 = vpop.trf.xlu0
      %v3704 = vpop.trf.xlu0
      %v3705 = vpop.trf.xlu0
      %v3706 = vpop.trf.xlu0
      %3707 = vxpose.xlu0.b32.start [1/16] %v3672, 128
      %3708 = vxpose.xlu0.b32.cont [2/16] 0.0, 128
      %3709 = vxpose.xlu0.b32.cont [3/16] 0.0, 128
      %3710 = vxpose.xlu0.b32.cont [4/16] 0.0, 128
      %3711 = vxpose.xlu0.b32.cont [5/16] 0.0, 128
      %3712 = vxpose.xlu0.b32.cont [6/16] 0.0, 128
      %3713 = vxpose.xlu0.b32.cont [7/16] 0.0, 128
      %3714 = vxpose.xlu0.b32.cont [8/16] 0.0, 128
      %3715 = vxpose.xlu0.b32.cont [9/16] 0.0, 128
      %3716 = vxpose.xlu0.b32.cont [10/16] 0.0, 128
      %3717 = vxpose.xlu0.b32.cont [11/16] 0.0, 128
      %3718 = vxpose.xlu0.b32.cont [12/16] 0.0, 128
      %3719 = vxpose.xlu0.b32.cont [13/16] 0.0, 128
      %3720 = vxpose.xlu0.b32.cont [14/16] 0.0, 128
      %3721 = vxpose.xlu0.b32.cont [15/16] 0.0, 128
      %3722 = vxpose.xlu0.b32.end [16/16] 0.0, 128
      %v3723 = vpop.trf.xlu0
      %v3724 = vpop.trf.xlu0
      %v3725 = vpop.trf.xlu0
      %v3726 = vpop.trf.xlu0
      %v3727 = vpop.trf.xlu0
      %v3728 = vpop.trf.xlu0
      %v3729 = vpop.trf.xlu0
      %v3730 = vpop.trf.xlu0
      %v3731 = vpop.trf.xlu0
      %v3732 = vpop.trf.xlu0
      %v3733 = vpop.trf.xlu0
      %v3734 = vpop.trf.xlu0
      %v3735 = vpop.trf.xlu0
      %v3736 = vpop.trf.xlu0
      %v3737 = vpop.trf.xlu0
      %v3738 = vpop.trf.xlu0
      %v3740 = vsel %vm645, %v3691, 0
      %v3743 = vsel %vm645, %v3692, 0
      %v3746 = vsel %vm645, %v3693, 0
      %v3749 = vsel %vm645, %v3694, 0
      %v3752 = vsel %vm645, %v3695, 0
      %v3755 = vsel %vm645, %v3696, 0
      %v3758 = vsel %vm645, %v3697, 0
      %v3761 = vsel %vm645, %v3698, 0
      %v3764 = vsel %vm645, %v3699, 0
      %v3767 = vsel %vm645, %v3700, 0
      %v3770 = vsel %vm645, %v3701, 0
      %v3773 = vsel %vm645, %v3702, 0
      %v3776 = vsel %vm645, %v3703, 0
      %v3779 = vsel %vm645, %v3704, 0
      %v3782 = vsel %vm645, %v3705, 0
      %v3785 = vsel %vm645, %v3706, 0
      %v3788 = vsel %vm645, %v3723, 0
      %v3791 = vsel %vm645, %v3724, 0
      %v3794 = vsel %vm645, %v3725, 0
      %v3797 = vsel %vm645, %v3726, 0
      %v3800 = vsel %vm645, %v3727, 0
      %v3803 = vsel %vm645, %v3728, 0
      %v3806 = vsel %vm645, %v3729, 0
      %v3809 = vsel %vm645, %v3730, 0
      %v3812 = vsel %vm645, %v3731, 0
      %v3815 = vsel %vm645, %v3732, 0
      %v3818 = vsel %vm645, %v3733, 0
      %v3821 = vsel %vm645, %v3734, 0
      %v3824 = vsel %vm645, %v3735, 0
      %v3827 = vsel %vm645, %v3736, 0
      %v3830 = vsel %vm645, %v3737, 0
      %v3833 = vsel %vm645, %v3738, 0
      %v3836 = vsel %vm501, %v3667, 0
      %v3839 = vsel %vm501, %v3668, 0
      %3841 = vmatprep.subr.mxu0 %v3839
      %3842 = vmatpush1.msra.mxu0 %v3836
      %3843 = vmatprep.subr.mxu0 0.0
      %3844 = vmatpush1.msra.mxu0 0.0
      %3845 = vmatprep.subr.mxu0 0.0
      %3846 = vmatpush1.msra.mxu0 0.0
      %3847 = vmatprep.subr.mxu0 0.0
      %3848 = vmatpush1.msra.mxu0 0.0
      %3849 = vmatprep.subr.mxu0 0.0
      %3850 = vmatpush1.msra.mxu0 0.0
      %3851 = vmatprep.subr.mxu0 0.0
      %3852 = vmatpush1.msra.mxu0 0.0
      %3853 = vmatprep.subr.mxu0 0.0
      %3854 = vmatpush1.msra.mxu0 0.0
      %3855 = vmatprep.subr.mxu0 0.0
      %3856 = vmatpush1.msra.mxu0 0.0
      %3857 = vmatprep.subr.mxu0 0.0
      %3858 = vmatpush1.msra.mxu0 0.0
      %3859 = vmatprep.subr.mxu0 0.0
      %3860 = vmatpush1.msra.mxu0 0.0
      %3861 = vmatprep.subr.mxu0 0.0
      %3862 = vmatpush1.msra.mxu0 0.0
      %3863 = vmatprep.subr.mxu0 0.0
      %3864 = vmatpush1.msra.mxu0 0.0
      %3865 = vmatprep.subr.mxu0 0.0
      %3866 = vmatpush1.msra.mxu0 0.0
      %3867 = vmatprep.subr.mxu0 0.0
      %3868 = vmatpush1.msra.mxu0 0.0
      %3869 = vmatprep.subr.mxu0 0.0
      %3870 = vmatpush1.msra.mxu0 0.0
      %3871 = vmatprep.subr.mxu0 0.0
      %3872 = vmatpush1.msra.mxu0 0.0
      %3873 = vmatprep.subr.mxu0 0.0
      %3874 = vmatpush1.msra.mxu0 0.0
      %3875 = vmatprep.subr.mxu0 0.0
      %3876 = vmatpush1.msra.mxu0 0.0
      %3877 = vmatprep.subr.mxu0 0.0
      %3878 = vmatpush1.msra.mxu0 0.0
      %3879 = vmatprep.subr.mxu0 0.0
      %3880 = vmatpush1.msra.mxu0 0.0
      %3881 = vmatprep.subr.mxu0 0.0
      %3882 = vmatpush1.msra.mxu0 0.0
      %3883 = vmatprep.subr.mxu0 0.0
      %3884 = vmatpush1.msra.mxu0 0.0
      %3885 = vmatprep.subr.mxu0 0.0
      %3886 = vmatpush1.msra.mxu0 0.0
      %3887 = vmatprep.subr.mxu0 0.0
      %3888 = vmatpush1.msra.mxu0 0.0
      %3889 = vmatprep.subr.mxu0 0.0
      %3890 = vmatpush1.msra.mxu0 0.0
      %3891 = vmatprep.subr.mxu0 0.0
      %3892 = vmatpush1.msra.mxu0 0.0
      %3893 = vmatprep.subr.mxu0 0.0
      %3894 = vmatpush1.msra.mxu0 0.0
      %3895 = vmatprep.subr.mxu0 0.0
      %3896 = vmatpush1.msra.mxu0 0.0
      %3897 = vmatprep.subr.mxu0 0.0
      %3898 = vmatpush1.msra.mxu0 0.0
      %3899 = vmatprep.subr.mxu0 0.0
      %3900 = vmatpush1.msra.mxu0 0.0
      %3901 = vmatprep.subr.mxu0 0.0
      %3902 = vmatpush1.msra.mxu0 0.0
      %3903 = vmatprep.subr.mxu0 0.0
      %3904 = vmatpush1.msra.mxu0 0.0
      %3905 = vmatprep.mubr.f32.mxu0 0.0
      %3906 = vmatmul.mubr.f32.gmra.mrb[0].mxu0 %v3740
      %v3907 = vpop.f32.mrb[0].mxu0
      %v3908 = vadd.f32 0.0, %v3907
      %v3909 = vpop.f32.mrb[0].mxu0
      %v3910 = vadd.f32 0.0, %v3909
      %3911 = vmatprep.mubr.f32.mxu0 0.0
      %3912 = vmatmul.mubr.f32.gmra.mrb[0].mxu0 %v3743
      %v3913 = vpop.f32.mrb[0].mxu0
      %v3914 = vadd.f32 0.0, %v3913
      %v3915 = vpop.f32.mrb[0].mxu0
      %v3916 = vadd.f32 0.0, %v3915
      %3917 = vmatprep.mubr.f32.mxu0 0.0
      %3918 = vmatmul.mubr.f32.gmra.mrb[0].mxu0 %v3746
      %v3919 = vpop.f32.mrb[0].mxu0
      %v3920 = vadd.f32 0.0, %v3919
      %v3921 = vpop.f32.mrb[0].mxu0
      %v3922 = vadd.f32 0.0, %v3921
      %3923 = vmatprep.mubr.f32.mxu0 0.0
      %3924 = vmatmul.mubr.f32.gmra.mrb[0].mxu0 %v3749
      %v3925 = vpop.f32.mrb[0].mxu0
      %v3926 = vadd.f32 0.0, %v3925
      %v3927 = vpop.f32.mrb[0].mxu0
      %v3928 = vadd.f32 0.0, %v3927
      %3929 = vmatprep.mubr.f32.mxu0 0.0
      %3930 = vmatmul.mubr.f32.gmra.mrb[0].mxu0 %v3752
      %v3931 = vpop.f32.mrb[0].mxu0
      %v3932 = vadd.f32 0.0, %v3931
      %v3933 = vpop.f32.mrb[0].mxu0
      %v3934 = vadd.f32 0.0, %v3933
      %3935 = vmatprep.mubr.f32.mxu0 0.0
      %3936 = vmatmul.mubr.f32.gmra.mrb[0].mxu0 %v3755
      %v3937 = vpop.f32.mrb[0].mxu0
      %v3938 = vadd.f32 0.0, %v3937
      %v3939 = vpop.f32.mrb[0].mxu0
      %v3940 = vadd.f32 0.0, %v3939
      %3941 = vmatprep.mubr.f32.mxu0 0.0
      %3942 = vmatmul.mubr.f32.gmra.mrb[0].mxu0 %v3758
      %v3943 = vpop.f32.mrb[0].mxu0
      %v3944 = vadd.f32 0.0, %v3943
      %v3945 = vpop.f32.mrb[0].mxu0
      %v3946 = vadd.f32 0.0, %v3945
      %3947 = vmatprep.mubr.f32.mxu0 0.0
      %3948 = vmatmul.mubr.f32.gmra.mrb[0].mxu0 %v3761
      %v3949 = vpop.f32.mrb[0].mxu0
      %v3950 = vadd.f32 0.0, %v3949
      %v3951 = vpop.f32.mrb[0].mxu0
      %v3952 = vadd.f32 0.0, %v3951
      %3953 = vmatprep.mubr.f32.mxu0 0.0
      %3954 = vmatmul.mubr.f32.gmra.mrb[0].mxu0 %v3764
      %v3955 = vpop.f32.mrb[0].mxu0
      %v3956 = vadd.f32 0.0, %v3955
      %v3957 = vpop.f32.mrb[0].mxu0
      %v3958 = vadd.f32 0.0, %v3957
      %3959 = vmatprep.mubr.f32.mxu0 0.0
      %3960 = vmatmul.mubr.f32.gmra.mrb[0].mxu0 %v3767
      %v3961 = vpop.f32.mrb[0].mxu0
      %v3962 = vadd.f32 0.0, %v3961
      %v3963 = vpop.f32.mrb[0].mxu0
      %v3964 = vadd.f32 0.0, %v3963
      %3965 = vmatprep.mubr.f32.mxu0 0.0
      %3966 = vmatmul.mubr.f32.gmra.mrb[0].mxu0 %v3770
      %v3967 = vpop.f32.mrb[0].mxu0
      %v3968 = vadd.f32 0.0, %v3967
      %v3969 = vpop.f32.mrb[0].mxu0
      %v3970 = vadd.f32 0.0, %v3969
      %3971 = vmatprep.mubr.f32.mxu0 0.0
      %3972 = vmatmul.mubr.f32.gmra.mrb[0].mxu0 %v3773
      %v3973 = vpop.f32.mrb[0].mxu0
      %v3974 = vadd.f32 0.0, %v3973
      %v3975 = vpop.f32.mrb[0].mxu0
      %v3976 = vadd.f32 0.0, %v3975
      %3977 = vmatprep.mubr.f32.mxu0 0.0
      %3978 = vmatmul.mubr.f32.gmra.mrb[0].mxu0 %v3776
      %v3979 = vpop.f32.mrb[0].mxu0
      %v3980 = vadd.f32 0.0, %v3979
      %v3981 = vpop.f32.mrb[0].mxu0
      %v3982 = vadd.f32 0.0, %v3981
      %3983 = vmatprep.mubr.f32.mxu0 0.0
      %3984 = vmatmul.mubr.f32.gmra.mrb[0].mxu0 %v3779
      %v3985 = vpop.f32.mrb[0].mxu0
      %v3986 = vadd.f32 0.0, %v3985
      %v3987 = vpop.f32.mrb[0].mxu0
      %v3988 = vadd.f32 0.0, %v3987
      %3989 = vmatprep.mubr.f32.mxu0 0.0
      %3990 = vmatmul.mubr.f32.gmra.mrb[0].mxu0 %v3782
      %v3991 = vpop.f32.mrb[0].mxu0
      %v3992 = vadd.f32 0.0, %v3991
      %v3993 = vpop.f32.mrb[0].mxu0
      %v3994 = vadd.f32 0.0, %v3993
      %3995 = vmatprep.mubr.f32.mxu0 0.0
      %3996 = vmatmul.mubr.f32.gmra.mrb[0].mxu0 %v3785
      %v3997 = vpop.f32.mrb[0].mxu0
      %v3998 = vadd.f32 0.0, %v3997
      %v3999 = vpop.f32.mrb[0].mxu0
      %v4000 = vadd.f32 0.0, %v3999
      %4001 = vmatprep.mubr.f32.mxu0 0.0
      %4002 = vmatmul.mubr.f32.gmra.mrb[0].mxu0 %v3788
      %v4003 = vpop.f32.mrb[0].mxu0
      %v4004 = vadd.f32 0.0, %v4003
      %v4005 = vpop.f32.mrb[0].mxu0
      %v4006 = vadd.f32 0.0, %v4005
      %4007 = vmatprep.mubr.f32.mxu0 0.0
      %4008 = vmatmul.mubr.f32.gmra.mrb[0].mxu0 %v3791
      %v4009 = vpop.f32.mrb[0].mxu0
      %v4010 = vadd.f32 0.0, %v4009
      %v4011 = vpop.f32.mrb[0].mxu0
      %v4012 = vadd.f32 0.0, %v4011
      %4013 = vmatprep.mubr.f32.mxu0 0.0
      %4014 = vmatmul.mubr.f32.gmra.mrb[0].mxu0 %v3794
      %v4015 = vpop.f32.mrb[0].mxu0
      %v4016 = vadd.f32 0.0, %v4015
      %v4017 = vpop.f32.mrb[0].mxu0
      %v4018 = vadd.f32 0.0, %v4017
      %4019 = vmatprep.mubr.f32.mxu0 0.0
      %4020 = vmatmul.mubr.f32.gmra.mrb[0].mxu0 %v3797
      %v4021 = vpop.f32.mrb[0].mxu0
      %v4022 = vadd.f32 0.0, %v4021
      %v4023 = vpop.f32.mrb[0].mxu0
      %v4024 = vadd.f32 0.0, %v4023
      %4025 = vmatprep.mubr.f32.mxu0 0.0
      %4026 = vmatmul.mubr.f32.gmra.mrb[0].mxu0 %v3800
      %v4027 = vpop.f32.mrb[0].mxu0
      %v4028 = vadd.f32 0.0, %v4027
      %v4029 = vpop.f32.mrb[0].mxu0
      %v4030 = vadd.f32 0.0, %v4029
      %4031 = vmatprep.mubr.f32.mxu0 0.0
      %4032 = vmatmul.mubr.f32.gmra.mrb[0].mxu0 %v3803
      %v4033 = vpop.f32.mrb[0].mxu0
      %v4034 = vadd.f32 0.0, %v4033
      %v4035 = vpop.f32.mrb[0].mxu0
      %v4036 = vadd.f32 0.0, %v4035
      %4037 = vmatprep.mubr.f32.mxu0 0.0
      %4038 = vmatmul.mubr.f32.gmra.mrb[0].mxu0 %v3806
      %v4039 = vpop.f32.mrb[0].mxu0
      %v4040 = vadd.f32 0.0, %v4039
      %v4041 = vpop.f32.mrb[0].mxu0
      %v4042 = vadd.f32 0.0, %v4041
      %4043 = vmatprep.mubr.f32.mxu0 0.0
      %4044 = vmatmul.mubr.f32.gmra.mrb[0].mxu0 %v3809
      %v4045 = vpop.f32.mrb[0].mxu0
      %v4046 = vadd.f32 0.0, %v4045
      %v4047 = vpop.f32.mrb[0].mxu0
      %v4048 = vadd.f32 0.0, %v4047
      %4049 = vmatprep.mubr.f32.mxu0 0.0
      %4050 = vmatmul.mubr.f32.gmra.mrb[0].mxu0 %v3812
      %v4051 = vpop.f32.mrb[0].mxu0
      %v4052 = vadd.f32 0.0, %v4051
      %v4053 = vpop.f32.mrb[0].mxu0
      %v4054 = vadd.f32 0.0, %v4053
      %4055 = vmatprep.mubr.f32.mxu0 0.0
      %4056 = vmatmul.mubr.f32.gmra.mrb[0].mxu0 %v3815
      %v4057 = vpop.f32.mrb[0].mxu0
      %v4058 = vadd.f32 0.0, %v4057
      %v4059 = vpop.f32.mrb[0].mxu0
      %v4060 = vadd.f32 0.0, %v4059
      %4061 = vmatprep.mubr.f32.mxu0 0.0
      %4062 = vmatmul.mubr.f32.gmra.mrb[0].mxu0 %v3818
      %v4063 = vpop.f32.mrb[0].mxu0
      %v4064 = vadd.f32 0.0, %v4063
      %v4065 = vpop.f32.mrb[0].mxu0
      %v4066 = vadd.f32 0.0, %v4065
      %4067 = vmatprep.mubr.f32.mxu0 0.0
      %4068 = vmatmul.mubr.f32.gmra.mrb[0].mxu0 %v3821
      %v4069 = vpop.f32.mrb[0].mxu0
      %v4070 = vadd.f32 0.0, %v4069
      %v4071 = vpop.f32.mrb[0].mxu0
      %v4072 = vadd.f32 0.0, %v4071
      %4073 = vmatprep.mubr.f32.mxu0 0.0
      %4074 = vmatmul.mubr.f32.gmra.mrb[0].mxu0 %v3824
      %v4075 = vpop.f32.mrb[0].mxu0
      %v4076 = vadd.f32 0.0, %v4075
      %v4077 = vpop.f32.mrb[0].mxu0
      %v4078 = vadd.f32 0.0, %v4077
      %4079 = vmatprep.mubr.f32.mxu0 0.0
      %4080 = vmatmul.mubr.f32.gmra.mrb[0].mxu0 %v3827
      %v4081 = vpop.f32.mrb[0].mxu0
      %v4082 = vadd.f32 0.0, %v4081
      %v4083 = vpop.f32.mrb[0].mxu0
      %v4084 = vadd.f32 0.0, %v4083
      %4085 = vmatprep.mubr.f32.mxu0 0.0
      %4086 = vmatmul.mubr.f32.gmra.mrb[0].mxu0 %v3830
      %v4087 = vpop.f32.mrb[0].mxu0
      %v4088 = vadd.f32 0.0, %v4087
      %v4089 = vpop.f32.mrb[0].mxu0
      %v4090 = vadd.f32 0.0, %v4089
      %4091 = vmatprep.mubr.f32.mxu0 0.0
      %4092 = vmatmul.mubr.f32.gmra.mrb[0].mxu0 %v3833
      %v4093 = vpop.f32.mrb[0].mxu0
      %v4094 = vadd.f32 0.0, %v4093
      %v4095 = vpop.f32.mrb[0].mxu0
      %v4096 = vadd.f32 0.0, %v4095
      %4097 = vdwg.mxu0
      %v4098 = vmax.f32 %v3908, %v3910
      %4099 = vmax.xlane.f32.xlu0 %v4098
      %v4100 = vpop.xlane.xlu0 %4099
      %v4101 = vmax.f32 %v3914, %v3916
      %4102 = vmax.xlane.f32.xlu0 %v4101
      %v4103 = vpop.xlane.xlu0 %4102
      %v4104 = vmax.f32 %v3920, %v3922
      %4105 = vmax.xlane.f32.xlu0 %v4104
      %v4106 = vpop.xlane.xlu0 %4105
      %v4107 = vmax.f32 %v3926, %v3928
      %4108 = vmax.xlane.f32.xlu0 %v4107
      %v4109 = vpop.xlane.xlu0 %4108
      %v4110 = vmax.f32 %v3932, %v3934
      %4111 = vmax.xlane.f32.xlu0 %v4110
      %v4112 = vpop.xlane.xlu0 %4111
      %v4113 = vmax.f32 %v3938, %v3940
      %4114 = vmax.xlane.f32.xlu0 %v4113
      %v4115 = vpop.xlane.xlu0 %4114
      %v4116 = vmax.f32 %v3944, %v3946
      %4117 = vmax.xlane.f32.xlu0 %v4116
      %v4118 = vpop.xlane.xlu0 %4117
      %v4119 = vmax.f32 %v3950, %v3952
      %4120 = vmax.xlane.f32.xlu0 %v4119
      %v4121 = vpop.xlane.xlu0 %4120
      %v4122 = vmax.f32 %v3956, %v3958
      %4123 = vmax.xlane.f32.xlu0 %v4122
      %v4124 = vpop.xlane.xlu0 %4123
      %v4125 = vmax.f32 %v3962, %v3964
      %4126 = vmax.xlane.f32.xlu0 %v4125
      %v4127 = vpop.xlane.xlu0 %4126
      %v4128 = vmax.f32 %v3968, %v3970
      %4129 = vmax.xlane.f32.xlu0 %v4128
      %v4130 = vpop.xlane.xlu0 %4129
      %v4131 = vmax.f32 %v3974, %v3976
      %4132 = vmax.xlane.f32.xlu0 %v4131
      %v4133 = vpop.xlane.xlu0 %4132
      %v4134 = vmax.f32 %v3980, %v3982
      %4135 = vmax.xlane.f32.xlu0 %v4134
      %v4136 = vpop.xlane.xlu0 %4135
      %v4137 = vmax.f32 %v3986, %v3988
      %4138 = vmax.xlane.f32.xlu0 %v4137
      %v4139 = vpop.xlane.xlu0 %4138
      %v4140 = vmax.f32 %v3992, %v3994
      %4141 = vmax.xlane.f32.xlu0 %v4140
      %v4142 = vpop.xlane.xlu0 %4141
      %v4143 = vmax.f32 %v3998, %v4000
      %4144 = vmax.xlane.f32.xlu0 %v4143
      %v4145 = vpop.xlane.xlu0 %4144
      %v4146 = vmax.f32 %v4004, %v4006
      %4147 = vmax.xlane.f32.xlu0 %v4146
      %v4148 = vpop.xlane.xlu0 %4147
      %v4149 = vmax.f32 %v4010, %v4012
      %4150 = vmax.xlane.f32.xlu0 %v4149
      %v4151 = vpop.xlane.xlu0 %4150
      %v4152 = vmax.f32 %v4016, %v4018
      %4153 = vmax.xlane.f32.xlu0 %v4152
      %v4154 = vpop.xlane.xlu0 %4153
      %v4155 = vmax.f32 %v4022, %v4024
      %4156 = vmax.xlane.f32.xlu0 %v4155
      %v4157 = vpop.xlane.xlu0 %4156
      %v4158 = vmax.f32 %v4028, %v4030
      %4159 = vmax.xlane.f32.xlu0 %v4158
      %v4160 = vpop.xlane.xlu0 %4159
      %v4161 = vmax.f32 %v4034, %v4036
      %4162 = vmax.xlane.f32.xlu0 %v4161
      %v4163 = vpop.xlane.xlu0 %4162
      %v4164 = vmax.f32 %v4040, %v4042
      %4165 = vmax.xlane.f32.xlu0 %v4164
      %v4166 = vpop.xlane.xlu0 %4165
      %v4167 = vmax.f32 %v4046, %v4048
      %4168 = vmax.xlane.f32.xlu0 %v4167
      %v4169 = vpop.xlane.xlu0 %4168
      %v4170 = vmax.f32 %v4052, %v4054
      %4171 = vmax.xlane.f32.xlu0 %v4170
      %v4172 = vpop.xlane.xlu0 %4171
      %v4173 = vmax.f32 %v4058, %v4060
      %4174 = vmax.xlane.f32.xlu0 %v4173
      %v4175 = vpop.xlane.xlu0 %4174
      %v4176 = vmax.f32 %v4064, %v4066
      %4177 = vmax.xlane.f32.xlu0 %v4176
      %v4178 = vpop.xlane.xlu0 %4177
      %v4179 = vmax.f32 %v4070, %v4072
      %4180 = vmax.xlane.f32.xlu0 %v4179
      %v4181 = vpop.xlane.xlu0 %4180
      %v4182 = vmax.f32 %v4076, %v4078
      %4183 = vmax.xlane.f32.xlu0 %v4182
      %v4184 = vpop.xlane.xlu0 %4183
      %v4185 = vmax.f32 %v4082, %v4084
      %4186 = vmax.xlane.f32.xlu0 %v4185
      %v4187 = vpop.xlane.xlu0 %4186
      %v4188 = vmax.f32 %v4088, %v4090
      %4189 = vmax.xlane.f32.xlu0 %v4188
      %v4190 = vpop.xlane.xlu0 %4189
      %v4191 = vmax.f32 %v4094, %v4096
      %4192 = vmax.xlane.f32.xlu0 %v4191
      %v4193 = vpop.xlane.xlu0 %4192
      %v4194 = vsub.f32 %v3908, %v4100
      %v4195 = vsub.f32 %v3910, %v4100
      %v4196 = vsub.f32 %v3914, %v4103
      %v4197 = vsub.f32 %v3916, %v4103
      %v4198 = vsub.f32 %v3920, %v4106
      %v4199 = vsub.f32 %v3922, %v4106
      %v4200 = vsub.f32 %v3926, %v4109
      %v4201 = vsub.f32 %v3928, %v4109
      %v4202 = vsub.f32 %v3932, %v4112
      %v4203 = vsub.f32 %v3934, %v4112
      %v4204 = vsub.f32 %v3938, %v4115
      %v4205 = vsub.f32 %v3940, %v4115
      %v4206 = vsub.f32 %v3944, %v4118
      %v4207 = vsub.f32 %v3946, %v4118
      %v4208 = vsub.f32 %v3950, %v4121
      %v4209 = vsub.f32 %v3952, %v4121
      %v4210 = vsub.f32 %v3956, %v4124
      %v4211 = vsub.f32 %v3958, %v4124
      %v4212 = vsub.f32 %v3962, %v4127
      %v4213 = vsub.f32 %v3964, %v4127
      %v4214 = vsub.f32 %v3968, %v4130
      %v4215 = vsub.f32 %v3970, %v4130
      %v4216 = vsub.f32 %v3974, %v4133
      %v4217 = vsub.f32 %v3976, %v4133
      %v4218 = vsub.f32 %v3980, %v4136
      %v4219 = vsub.f32 %v3982, %v4136
      %v4220 = vsub.f32 %v3986, %v4139
      %v4221 = vsub.f32 %v3988, %v4139
      %v4222 = vsub.f32 %v3992, %v4142
      %v4223 = vsub.f32 %v3994, %v4142
      %v4224 = vsub.f32 %v3998, %v4145
      %v4225 = vsub.f32 %v4000, %v4145
      %v4226 = vsub.f32 %v4004, %v4148
      %v4227 = vsub.f32 %v4006, %v4148
      %v4228 = vsub.f32 %v4010, %v4151
      %v4229 = vsub.f32 %v4012, %v4151
      %v4230 = vsub.f32 %v4016, %v4154
      %v4231 = vsub.f32 %v4018, %v4154
      %v4232 = vsub.f32 %v4022, %v4157
      %v4233 = vsub.f32 %v4024, %v4157
      %v4234 = vsub.f32 %v4028, %v4160
      %v4235 = vsub.f32 %v4030, %v4160
      %v4236 = vsub.f32 %v4034, %v4163
      %v4237 = vsub.f32 %v4036, %v4163
      %v4238 = vsub.f32 %v4040, %v4166
      %v4239 = vsub.f32 %v4042, %v4166
      %v4240 = vsub.f32 %v4046, %v4169
      %v4241 = vsub.f32 %v4048, %v4169
      %v4242 = vsub.f32 %v4052, %v4172
      %v4243 = vsub.f32 %v4054, %v4172
      %v4244 = vsub.f32 %v4058, %v4175
      %v4245 = vsub.f32 %v4060, %v4175
      %v4246 = vsub.f32 %v4064, %v4178
      %v4247 = vsub.f32 %v4066, %v4178
      %v4248 = vsub.f32 %v4070, %v4181
      %v4249 = vsub.f32 %v4072, %v4181
      %v4250 = vsub.f32 %v4076, %v4184
      %v4251 = vsub.f32 %v4078, %v4184
      %v4252 = vsub.f32 %v4082, %v4187
      %v4253 = vsub.f32 %v4084, %v4187
      %v4254 = vsub.f32 %v4088, %v4190
      %v4255 = vsub.f32 %v4090, %v4190
      %v4256 = vsub.f32 %v4094, %v4193
      %v4257 = vsub.f32 %v4096, %v4193
      %v4258 = vmul.f32 %v4194, 1.442695
      %v4259 = vpow.pop %v4258
      %v4260 = vmul.f32 %v4195, 1.442695
      %v4261 = vpow.pop %v4260
      %v4262 = vmul.f32 %v4196, 1.442695
      %v4263 = vpow.pop %v4262
      %v4264 = vmul.f32 %v4197, 1.442695
      %v4265 = vpow.pop %v4264
      %v4266 = vmul.f32 %v4198, 1.442695
      %v4267 = vpow.pop %v4266
      %v4268 = vmul.f32 %v4199, 1.442695
      %v4269 = vpow.pop %v4268
      %v4270 = vmul.f32 %v4200, 1.442695
      %v4271 = vpow.pop %v4270
      %v4272 = vmul.f32 %v4201, 1.442695
      %v4273 = vpow.pop %v4272
      %v4274 = vmul.f32 %v4202, 1.442695
      %v4275 = vpow.pop %v4274
      %v4276 = vmul.f32 %v4203, 1.442695
      %v4277 = vpow.pop %v4276
      %v4278 = vmul.f32 %v4204, 1.442695
      %v4279 = vpow.pop %v4278
      %v4280 = vmul.f32 %v4205, 1.442695
      %v4281 = vpow.pop %v4280
      %v4282 = vmul.f32 %v4206, 1.442695
      %v4283 = vpow.pop %v4282
      %v4284 = vmul.f32 %v4207, 1.442695
      %v4285 = vpow.pop %v4284
      %v4286 = vmul.f32 %v4208, 1.442695
      %v4287 = vpow.pop %v4286
      %v4288 = vmul.f32 %v4209, 1.442695
      %v4289 = vpow.pop %v4288
      %v4290 = vmul.f32 %v4210, 1.442695
      %v4291 = vpow.pop %v4290
      %v4292 = vmul.f32 %v4211, 1.442695
      %v4293 = vpow.pop %v4292
      %v4294 = vmul.f32 %v4212, 1.442695
      %v4295 = vpow.pop %v4294
      %v4296 = vmul.f32 %v4213, 1.442695
      %v4297 = vpow.pop %v4296
      %v4298 = vmul.f32 %v4214, 1.442695
      %v4299 = vpow.pop %v4298
      %v4300 = vmul.f32 %v4215, 1.442695
      %v4301 = vpow.pop %v4300
      %v4302 = vmul.f32 %v4216, 1.442695
      %v4303 = vpow.pop %v4302
      %v4304 = vmul.f32 %v4217, 1.442695
      %v4305 = vpow.pop %v4304
      %v4306 = vmul.f32 %v4218, 1.442695
      %v4307 = vpow.pop %v4306
      %v4308 = vmul.f32 %v4219, 1.442695
      %v4309 = vpow.pop %v4308
      %v4310 = vmul.f32 %v4220, 1.442695
      %v4311 = vpow.pop %v4310
      %v4312 = vmul.f32 %v4221, 1.442695
      %v4313 = vpow.pop %v4312
      %v4314 = vmul.f32 %v4222, 1.442695
      %v4315 = vpow.pop %v4314
      %v4316 = vmul.f32 %v4223, 1.442695
      %v4317 = vpow.pop %v4316
      %v4318 = vmul.f32 %v4224, 1.442695
      %v4319 = vpow.pop %v4318
      %v4320 = vmul.f32 %v4225, 1.442695
      %v4321 = vpow.pop %v4320
      %v4322 = vmul.f32 %v4226, 1.442695
      %v4323 = vpow.pop %v4322
      %v4324 = vmul.f32 %v4227, 1.442695
      %v4325 = vpow.pop %v4324
      %v4326 = vmul.f32 %v4228, 1.442695
      %v4327 = vpow.pop %v4326
      %v4328 = vmul.f32 %v4229, 1.442695
      %v4329 = vpow.pop %v4328
      %v4330 = vmul.f32 %v4230, 1.442695
      %v4331 = vpow.pop %v4330
      %v4332 = vmul.f32 %v4231, 1.442695
      %v4333 = vpow.pop %v4332
      %v4334 = vmul.f32 %v4232, 1.442695
      %v4335 = vpow.pop %v4334
      %v4336 = vmul.f32 %v4233, 1.442695
      %v4337 = vpow.pop %v4336
      %v4338 = vmul.f32 %v4234, 1.442695
      %v4339 = vpow.pop %v4338
      %v4340 = vmul.f32 %v4235, 1.442695
      %v4341 = vpow.pop %v4340
      %v4342 = vmul.f32 %v4236, 1.442695
      %v4343 = vpow.pop %v4342
      %v4344 = vmul.f32 %v4237, 1.442695
      %v4345 = vpow.pop %v4344
      %v4346 = vmul.f32 %v4238, 1.442695
      %v4347 = vpow.pop %v4346
      %v4348 = vmul.f32 %v4239, 1.442695
      %v4349 = vpow.pop %v4348
      %v4350 = vmul.f32 %v4240, 1.442695
      %v4351 = vpow.pop %v4350
      %v4352 = vmul.f32 %v4241, 1.442695
      %v4353 = vpow.pop %v4352
      %v4354 = vmul.f32 %v4242, 1.442695
      %v4355 = vpow.pop %v4354
      %v4356 = vmul.f32 %v4243, 1.442695
      %v4357 = vpow.pop %v4356
      %v4358 = vmul.f32 %v4244, 1.442695
      %v4359 = vpow.pop %v4358
      %v4360 = vmul.f32 %v4245, 1.442695
      %v4361 = vpow.pop %v4360
      %v4362 = vmul.f32 %v4246, 1.442695
      %v4363 = vpow.pop %v4362
      %v4364 = vmul.f32 %v4247, 1.442695
      %v4365 = vpow.pop %v4364
      %v4366 = vmul.f32 %v4248, 1.442695
      %v4367 = vpow.pop %v4366
      %v4368 = vmul.f32 %v4249, 1.442695
      %v4369 = vpow.pop %v4368
      %v4370 = vmul.f32 %v4250, 1.442695
      %v4371 = vpow.pop %v4370
      %v4372 = vmul.f32 %v4251, 1.442695
      %v4373 = vpow.pop %v4372
      %v4374 = vmul.f32 %v4252, 1.442695
      %v4375 = vpow.pop %v4374
      %v4376 = vmul.f32 %v4253, 1.442695
      %v4377 = vpow.pop %v4376
      %v4378 = vmul.f32 %v4254, 1.442695
      %v4379 = vpow.pop %v4378
      %v4380 = vmul.f32 %v4255, 1.442695
      %v4381 = vpow.pop %v4380
      %v4382 = vmul.f32 %v4256, 1.442695
      %v4383 = vpow.pop %v4382
      %v4384 = vmul.f32 %v4257, 1.442695
      %v4385 = vpow.pop %v4384
      %v4386 = vadd.f32 %v4259, %v4261
      %4387 = vadd.xlane.f32.xlu0 %v4386
      %v4388 = vpop.xlane.xlu0 %4387
      %v4389 = vadd.f32 %v4263, %v4265
      %4390 = vadd.xlane.f32.xlu0 %v4389
      %v4391 = vpop.xlane.xlu0 %4390
      %v4392 = vadd.f32 %v4267, %v4269
      %4393 = vadd.xlane.f32.xlu0 %v4392
      %v4394 = vpop.xlane.xlu0 %4393
      %v4395 = vadd.f32 %v4271, %v4273
      %4396 = vadd.xlane.f32.xlu0 %v4395
      %v4397 = vpop.xlane.xlu0 %4396
      %v4398 = vadd.f32 %v4275, %v4277
      %4399 = vadd.xlane.f32.xlu0 %v4398
      %v4400 = vpop.xlane.xlu0 %4399
      %v4401 = vadd.f32 %v4279, %v4281
      %4402 = vadd.xlane.f32.xlu0 %v4401
      %v4403 = vpop.xlane.xlu0 %4402
      %v4404 = vadd.f32 %v4283, %v4285
      %4405 = vadd.xlane.f32.xlu0 %v4404
      %v4406 = vpop.xlane.xlu0 %4405
      %v4407 = vadd.f32 %v4287, %v4289
      %4408 = vadd.xlane.f32.xlu0 %v4407
      %v4409 = vpop.xlane.xlu0 %4408
      %v4410 = vadd.f32 %v4291, %v4293
      %4411 = vadd.xlane.f32.xlu0 %v4410
      %v4412 = vpop.xlane.xlu0 %4411
      %v4413 = vadd.f32 %v4295, %v4297
      %4414 = vadd.xlane.f32.xlu0 %v4413
      %v4415 = vpop.xlane.xlu0 %4414
      %v4416 = vadd.f32 %v4299, %v4301
      %4417 = vadd.xlane.f32.xlu0 %v4416
      %v4418 = vpop.xlane.xlu0 %4417
      %v4419 = vadd.f32 %v4303, %v4305
      %4420 = vadd.xlane.f32.xlu0 %v4419
      %v4421 = vpop.xlane.xlu0 %4420
      %v4422 = vadd.f32 %v4307, %v4309
      %4423 = vadd.xlane.f32.xlu0 %v4422
      %v4424 = vpop.xlane.xlu0 %4423
      %v4425 = vadd.f32 %v4311, %v4313
      %4426 = vadd.xlane.f32.xlu0 %v4425
      %v4427 = vpop.xlane.xlu0 %4426
      %v4428 = vadd.f32 %v4315, %v4317
      %4429 = vadd.xlane.f32.xlu0 %v4428
      %v4430 = vpop.xlane.xlu0 %4429
      %v4431 = vadd.f32 %v4319, %v4321
      %4432 = vadd.xlane.f32.xlu0 %v4431
      %v4433 = vpop.xlane.xlu0 %4432
      %v4434 = vadd.f32 %v4323, %v4325
      %4435 = vadd.xlane.f32.xlu0 %v4434
      %v4436 = vpop.xlane.xlu0 %4435
      %v4437 = vadd.f32 %v4327, %v4329
      %4438 = vadd.xlane.f32.xlu0 %v4437
      %v4439 = vpop.xlane.xlu0 %4438
      %v4440 = vadd.f32 %v4331, %v4333
      %4441 = vadd.xlane.f32.xlu0 %v4440
      %v4442 = vpop.xlane.xlu0 %4441
      %v4443 = vadd.f32 %v4335, %v4337
      %4444 = vadd.xlane.f32.xlu0 %v4443
      %v4445 = vpop.xlane.xlu0 %4444
      %v4446 = vadd.f32 %v4339, %v4341
      %4447 = vadd.xlane.f32.xlu0 %v4446
      %v4448 = vpop.xlane.xlu0 %4447
      %v4449 = vadd.f32 %v4343, %v4345
      %4450 = vadd.xlane.f32.xlu0 %v4449
      %v4451 = vpop.xlane.xlu0 %4450
      %v4452 = vadd.f32 %v4347, %v4349
      %4453 = vadd.xlane.f32.xlu0 %v4452
      %v4454 = vpop.xlane.xlu0 %4453
      %v4455 = vadd.f32 %v4351, %v4353
      %4456 = vadd.xlane.f32.xlu0 %v4455
      %v4457 = vpop.xlane.xlu0 %4456
      %v4458 = vadd.f32 %v4355, %v4357
      %4459 = vadd.xlane.f32.xlu0 %v4458
      %v4460 = vpop.xlane.xlu0 %4459
      %v4461 = vadd.f32 %v4359, %v4361
      %4462 = vadd.xlane.f32.xlu0 %v4461
      %v4463 = vpop.xlane.xlu0 %4462
      %v4464 = vadd.f32 %v4363, %v4365
      %4465 = vadd.xlane.f32.xlu0 %v4464
      %v4466 = vpop.xlane.xlu0 %4465
      %v4467 = vadd.f32 %v4367, %v4369
      %4468 = vadd.xlane.f32.xlu0 %v4467
      %v4469 = vpop.xlane.xlu0 %4468
      %v4470 = vadd.f32 %v4371, %v4373
      %4471 = vadd.xlane.f32.xlu0 %v4470
      %v4472 = vpop.xlane.xlu0 %4471
      %v4473 = vadd.f32 %v4375, %v4377
      %4474 = vadd.xlane.f32.xlu0 %v4473
      %v4475 = vpop.xlane.xlu0 %4474
      %v4476 = vadd.f32 %v4379, %v4381
      %4477 = vadd.xlane.f32.xlu0 %v4476
      %v4478 = vpop.xlane.xlu0 %4477
      %v4479 = vadd.f32 %v4383, %v4385
      %4480 = vadd.xlane.f32.xlu0 %v4479
      %v4481 = vpop.xlane.xlu0 %4480
      %v4482 = vrcp.pop %v4388
      %v4483 = vrcp.pop %v4391
      %v4484 = vrcp.pop %v4394
      %v4485 = vrcp.pop %v4397
      %v4486 = vrcp.pop %v4400
      %v4487 = vrcp.pop %v4403
      %v4488 = vrcp.pop %v4406
      %v4489 = vrcp.pop %v4409
      %v4490 = vrcp.pop %v4412
      %v4491 = vrcp.pop %v4415
      %v4492 = vrcp.pop %v4418
      %v4493 = vrcp.pop %v4421
      %v4494 = vrcp.pop %v4424
      %v4495 = vrcp.pop %v4427
      %v4496 = vrcp.pop %v4430
      %v4497 = vrcp.pop %v4433
      %v4498 = vrcp.pop %v4436
      %v4499 = vrcp.pop %v4439
      %v4500 = vrcp.pop %v4442
      %v4501 = vrcp.pop %v4445
      %v4502 = vrcp.pop %v4448
      %v4503 = vrcp.pop %v4451
      %v4504 = vrcp.pop %v4454
      %v4505 = vrcp.pop %v4457
      %v4506 = vrcp.pop %v4460
      %v4507 = vrcp.pop %v4463
      %v4508 = vrcp.pop %v4466
      %v4509 = vrcp.pop %v4469
      %v4510 = vrcp.pop %v4472
      %v4511 = vrcp.pop %v4475
      %v4512 = vrcp.pop %v4478
      %v4513 = vrcp.pop %v4481
      %v4514 = vmul.f32 %v4259, %v4482
      %v4515 = vmul.f32 %v4261, %v4482
      %v4516 = vmul.f32 %v4263, %v4483
      %v4517 = vmul.f32 %v4265, %v4483
      %v4518 = vmul.f32 %v4267, %v4484
      %v4519 = vmul.f32 %v4269, %v4484
      %v4520 = vmul.f32 %v4271, %v4485
      %v4521 = vmul.f32 %v4273, %v4485
      %v4522 = vmul.f32 %v4275, %v4486
      %v4523 = vmul.f32 %v4277, %v4486
      %v4524 = vmul.f32 %v4279, %v4487
      %v4525 = vmul.f32 %v4281, %v4487
      %v4526 = vmul.f32 %v4283, %v4488
      %v4527 = vmul.f32 %v4285, %v4488
      %v4528 = vmul.f32 %v4287, %v4489
      %v4529 = vmul.f32 %v4289, %v4489
      %v4530 = vmul.f32 %v4291, %v4490
      %v4531 = vmul.f32 %v4293, %v4490
      %v4532 = vmul.f32 %v4295, %v4491
      %v4533 = vmul.f32 %v4297, %v4491
      %v4534 = vmul.f32 %v4299, %v4492
      %v4535 = vmul.f32 %v4301, %v4492
      %v4536 = vmul.f32 %v4303, %v4493
      %v4537 = vmul.f32 %v4305, %v4493
      %v4538 = vmul.f32 %v4307, %v4494
      %v4539 = vmul.f32 %v4309, %v4494
      %v4540 = vmul.f32 %v4311, %v4495
      %v4541 = vmul.f32 %v4313, %v4495
      %v4542 = vmul.f32 %v4315, %v4496
      %v4543 = vmul.f32 %v4317, %v4496
      %v4544 = vmul.f32 %v4319, %v4497
      %v4545 = vmul.f32 %v4321, %v4497
      %v4546 = vmul.f32 %v4323, %v4498
      %v4547 = vmul.f32 %v4325, %v4498
      %v4548 = vmul.f32 %v4327, %v4499
      %v4549 = vmul.f32 %v4329, %v4499
      %v4550 = vmul.f32 %v4331, %v4500
      %v4551 = vmul.f32 %v4333, %v4500
      %v4552 = vmul.f32 %v4335, %v4501
      %v4553 = vmul.f32 %v4337, %v4501
      %v4554 = vmul.f32 %v4339, %v4502
      %v4555 = vmul.f32 %v4341, %v4502
      %v4556 = vmul.f32 %v4343, %v4503
      %v4557 = vmul.f32 %v4345, %v4503
      %v4558 = vmul.f32 %v4347, %v4504
      %v4559 = vmul.f32 %v4349, %v4504
      %v4560 = vmul.f32 %v4351, %v4505
      %v4561 = vmul.f32 %v4353, %v4505
      %v4562 = vmul.f32 %v4355, %v4506
      %v4563 = vmul.f32 %v4357, %v4506
      %v4564 = vmul.f32 %v4359, %v4507
      %v4565 = vmul.f32 %v4361, %v4507
      %v4566 = vmul.f32 %v4363, %v4508
      %v4567 = vmul.f32 %v4365, %v4508
      %v4568 = vmul.f32 %v4367, %v4509
      %v4569 = vmul.f32 %v4369, %v4509
      %v4570 = vmul.f32 %v4371, %v4510
      %v4571 = vmul.f32 %v4373, %v4510
      %v4572 = vmul.f32 %v4375, %v4511
      %v4573 = vmul.f32 %v4377, %v4511
      %v4574 = vmul.f32 %v4379, %v4512
      %v4575 = vmul.f32 %v4381, %v4512
      %v4576 = vmul.f32 %v4383, %v4513
      %v4577 = vmul.f32 %v4385, %v4513
      %v4580 = vrot.slane %v3665, 4
      %v4581 = vrot.slane %v3666, 4
      %4584 = vmatprep.subr.mxu0 %v4515
      %4585 = vmatpush1.xpose.msra.mxu0 %v4514
      %4586 = vmatprep.subr.mxu0 %v4517
      %4587 = vmatpush1.xpose.msra.mxu0 %v4516
      %4588 = vmatprep.subr.mxu0 %v4519
      %4589 = vmatpush1.xpose.msra.mxu0 %v4518
      %4590 = vmatprep.subr.mxu0 %v4521
      %4591 = vmatpush1.xpose.msra.mxu0 %v4520
      %4592 = vmatprep.subr.mxu0 %v4523
      %4593 = vmatpush1.xpose.msra.mxu0 %v4522
      %4594 = vmatprep.subr.mxu0 %v4525
      %4595 = vmatpush1.xpose.msra.mxu0 %v4524
      %4596 = vmatprep.subr.mxu0 %v4527
      %4597 = vmatpush1.xpose.msra.mxu0 %v4526
      %4598 = vmatprep.subr.mxu0 %v4529
      %4599 = vmatpush1.xpose.msra.mxu0 %v4528
      %4600 = vmatprep.subr.mxu0 %v4531
      %4601 = vmatpush1.xpose.msra.mxu0 %v4530
      %4602 = vmatprep.subr.mxu0 %v4533
      %4603 = vmatpush1.xpose.msra.mxu0 %v4532
      %4604 = vmatprep.subr.mxu0 %v4535
      %4605 = vmatpush1.xpose.msra.mxu0 %v4534
      %4606 = vmatprep.subr.mxu0 %v4537
      %4607 = vmatpush1.xpose.msra.mxu0 %v4536
      %4608 = vmatprep.subr.mxu0 %v4539
      %4609 = vmatpush1.xpose.msra.mxu0 %v4538
      %4610 = vmatprep.subr.mxu0 %v4541
      %4611 = vmatpush1.xpose.msra.mxu0 %v4540
      %4612 = vmatprep.subr.mxu0 %v4543
      %4613 = vmatpush1.xpose.msra.mxu0 %v4542
      %4614 = vmatprep.subr.mxu0 %v4545
      %4615 = vmatpush1.xpose.msra.mxu0 %v4544
      %4616 = vmatprep.subr.mxu0 %v4547
      %4617 = vmatpush1.xpose.msra.mxu0 %v4546
      %4618 = vmatprep.subr.mxu0 %v4549
      %4619 = vmatpush1.xpose.msra.mxu0 %v4548
      %4620 = vmatprep.subr.mxu0 %v4551
      %4621 = vmatpush1.xpose.msra.mxu0 %v4550
      %4622 = vmatprep.subr.mxu0 %v4553
      %4623 = vmatpush1.xpose.msra.mxu0 %v4552
      %4624 = vmatprep.subr.mxu0 %v4555
      %4625 = vmatpush1.xpose.msra.mxu0 %v4554
      %4626 = vmatprep.subr.mxu0 %v4557
      %4627 = vmatpush1.xpose.msra.mxu0 %v4556
      %4628 = vmatprep.subr.mxu0 %v4559
      %4629 = vmatpush1.xpose.msra.mxu0 %v4558
      %4630 = vmatprep.subr.mxu0 %v4561
      %4631 = vmatpush1.xpose.msra.mxu0 %v4560
      %4632 = vmatprep.subr.mxu0 %v4563
      %4633 = vmatpush1.xpose.msra.mxu0 %v4562
      %4634 = vmatprep.subr.mxu0 %v4565
      %4635 = vmatpush1.xpose.msra.mxu0 %v4564
      %4636 = vmatprep.subr.mxu0 %v4567
      %4637 = vmatpush1.xpose.msra.mxu0 %v4566
      %4638 = vmatprep.subr.mxu0 %v4569
      %4639 = vmatpush1.xpose.msra.mxu0 %v4568
      %4640 = vmatprep.subr.mxu0 %v4571
      %4641 = vmatpush1.xpose.msra.mxu0 %v4570
      %4642 = vmatprep.subr.mxu0 %v4573
      %4643 = vmatpush1.xpose.msra.mxu0 %v4572
      %4644 = vmatprep.subr.mxu0 %v4575
      %4645 = vmatpush1.xpose.msra.mxu0 %v4574
      %4646 = vmatprep.subr.mxu0 %v4577
      %4647 = vmatpush1.xpose.msra.mxu0 %v4576
      %4648 = vmatprep.mubr.f32.mxu0 %v4581
      %4649 = vmatmul.mubr.f32.gmra.mrb[0].mxu0 %v4580
      %v4650 = vpop.f32.mrb[0].mxu0
      %v4651 = vadd.f32 0.0, %v4650
      %v4652 = vpop.f32.mrb[0].mxu0
      %v4653 = vadd.f32 0.0, %v4652
      %4654 = vdwg.mxu0
      %4656 = vrot.lane.b32.xlu0 %v3660, 124
      %v4657 = vpop.permute.xlu0 %4656
      %v4658 = vsel %vm645, %v4657, 0
      %v4661 = vsel %vm501, %v4651, 0
      %v4664 = vsel %vm501, %v4653, 0
      %4666 = vmatprep.subr.mxu0 %v4664
      %4667 = vmatpush1.msra.mxu0 %v4661
      %4668 = vmatprep.subr.mxu0 0.0
      %4669 = vmatpush1.msra.mxu0 0.0
      %4670 = vmatprep.subr.mxu0 0.0
      %4671 = vmatpush1.msra.mxu0 0.0
      %4672 = vmatprep.subr.mxu0 0.0
      %4673 = vmatpush1.msra.mxu0 0.0
      %4674 = vmatprep.subr.mxu0 0.0
      %4675 = vmatpush1.msra.mxu0 0.0
      %4676 = vmatprep.subr.mxu0 0.0
      %4677 = vmatpush1.msra.mxu0 0.0
      %4678 = vmatprep.subr.mxu0 0.0
      %4679 = vmatpush1.msra.mxu0 0.0
      %4680 = vmatprep.subr.mxu0 0.0
      %4681 = vmatpush1.msra.mxu0 0.0
      %4682 = vmatprep.subr.mxu0 0.0
      %4683 = vmatpush1.msra.mxu0 0.0
      %4684 = vmatprep.subr.mxu0 0.0
      %4685 = vmatpush1.msra.mxu0 0.0
      %4686 = vmatprep.subr.mxu0 0.0
      %4687 = vmatpush1.msra.mxu0 0.0
      %4688 = vmatprep.subr.mxu0 0.0
      %4689 = vmatpush1.msra.mxu0 0.0
      %4690 = vmatprep.subr.mxu0 0.0
      %4691 = vmatpush1.msra.mxu0 0.0
      %4692 = vmatprep.subr.mxu0 0.0
      %4693 = vmatpush1.msra.mxu0 0.0
      %4694 = vmatprep.subr.mxu0 0.0
      %4695 = vmatpush1.msra.mxu0 0.0
      %4696 = vmatprep.subr.mxu0 0.0
      %4697 = vmatpush1.msra.mxu0 0.0
      %4698 = vmatprep.subr.mxu0 0.0
      %4699 = vmatpush1.msra.mxu0 0.0
      %4700 = vmatprep.subr.mxu0 0.0
      %4701 = vmatpush1.msra.mxu0 0.0
      %4702 = vmatprep.subr.mxu0 0.0
      %4703 = vmatpush1.msra.mxu0 0.0
      %4704 = vmatprep.subr.mxu0 0.0
      %4705 = vmatpush1.msra.mxu0 0.0
      %4706 = vmatprep.subr.mxu0 0.0
      %4707 = vmatpush1.msra.mxu0 0.0
      %4708 = vmatprep.subr.mxu0 0.0
      %4709 = vmatpush1.msra.mxu0 0.0
      %4710 = vmatprep.subr.mxu0 0.0
      %4711 = vmatpush1.msra.mxu0 0.0
      %4712 = vmatprep.subr.mxu0 0.0
      %4713 = vmatpush1.msra.mxu0 0.0
      %4714 = vmatprep.subr.mxu0 0.0
      %4715 = vmatpush1.msra.mxu0 0.0
      %4716 = vmatprep.subr.mxu0 0.0
      %4717 = vmatpush1.msra.mxu0 0.0
      %4718 = vmatprep.subr.mxu0 0.0
      %4719 = vmatpush1.msra.mxu0 0.0
      %4720 = vmatprep.subr.mxu0 0.0
      %4721 = vmatpush1.msra.mxu0 0.0
      %4722 = vmatprep.subr.mxu0 0.0
      %4723 = vmatpush1.msra.mxu0 0.0
      %4724 = vmatprep.subr.mxu0 0.0
      %4725 = vmatpush1.msra.mxu0 0.0
      %4726 = vmatprep.subr.mxu0 0.0
      %4727 = vmatpush1.msra.mxu0 0.0
      %4728 = vmatprep.subr.mxu0 0.0
      %4729 = vmatpush1.msra.mxu0 0.0
      %4730 = vmatprep.mubr.f32.mxu0 0.0
      %4731 = vmatmul.mubr.f32.gmra.mrb[0].mxu0 %v4658
      %v4732 = vpop.f32.mrb[0].mxu0
      %v4733 = vadd.f32 0.0, %v4732
      %v4734 = vpop.f32.mrb[0].mxu0
      %v4735 = vadd.f32 0.0, %v4734
      %4736 = vdwg.mxu0
      %v4737 = vsel %vm645, %v3660, 0
      %v4740 = vsel %vm501, %v3656, 0
      %v4743 = vsel %vm501, %v3658, 0
      %4745 = vmatprep.subr.mxu0 %v4743
      %4746 = vmatpush1.msra.mxu0 %v4740
      %4747 = vmatprep.subr.mxu0 0.0
      %4748 = vmatpush1.msra.mxu0 0.0
      %4749 = vmatprep.subr.mxu0 0.0
      %4750 = vmatpush1.msra.mxu0 0.0
      %4751 = vmatprep.subr.mxu0 0.0
      %4752 = vmatpush1.msra.mxu0 0.0
      %4753 = vmatprep.subr.mxu0 0.0
      %4754 = vmatpush1.msra.mxu0 0.0
      %4755 = vmatprep.subr.mxu0 0.0
      %4756 = vmatpush1.msra.mxu0 0.0
      %4757 = vmatprep.subr.mxu0 0.0
      %4758 = vmatpush1.msra.mxu0 0.0
      %4759 = vmatprep.subr.mxu0 0.0
      %4760 = vmatpush1.msra.mxu0 0.0
      %4761 = vmatprep.subr.mxu0 0.0
      %4762 = vmatpush1.msra.mxu0 0.0
      %4763 = vmatprep.subr.mxu0 0.0
      %4764 = vmatpush1.msra.mxu0 0.0
      %4765 = vmatprep.subr.mxu0 0.0
      %4766 = vmatpush1.msra.mxu0 0.0
      %4767 = vmatprep.subr.mxu0 0.0
      %4768 = vmatpush1.msra.mxu0 0.0
      %4769 = vmatprep.subr.mxu0 0.0
      %4770 = vmatpush1.msra.mxu0 0.0
      %4771 = vmatprep.subr.mxu0 0.0
      %4772 = vmatpush1.msra.mxu0 0.0
      %4773 = vmatprep.subr.mxu0 0.0
      %4774 = vmatpush1.msra.mxu0 0.0
      %4775 = vmatprep.subr.mxu0 0.0
      %4776 = vmatpush1.msra.mxu0 0.0
      %4777 = vmatprep.subr.mxu0 0.0
      %4778 = vmatpush1.msra.mxu0 0.0
      %4779 = vmatprep.subr.mxu0 0.0
      %4780 = vmatpush1.msra.mxu0 0.0
      %4781 = vmatprep.subr.mxu0 0.0
      %4782 = vmatpush1.msra.mxu0 0.0
      %4783 = vmatprep.subr.mxu0 0.0
      %4784 = vmatpush1.msra.mxu0 0.0
      %4785 = vmatprep.subr.mxu0 0.0
      %4786 = vmatpush1.msra.mxu0 0.0
      %4787 = vmatprep.subr.mxu0 0.0
      %4788 = vmatpush1.msra.mxu0 0.0
      %4789 = vmatprep.subr.mxu0 0.0
      %4790 = vmatpush1.msra.mxu0 0.0
      %4791 = vmatprep.subr.mxu0 0.0
      %4792 = vmatpush1.msra.mxu0 0.0
      %4793 = vmatprep.subr.mxu0 0.0
      %4794 = vmatpush1.msra.mxu0 0.0
      %4795 = vmatprep.subr.mxu0 0.0
      %4796 = vmatpush1.msra.mxu0 0.0
      %4797 = vmatprep.subr.mxu0 0.0
      %4798 = vmatpush1.msra.mxu0 0.0
      %4799 = vmatprep.subr.mxu0 0.0
      %4800 = vmatpush1.msra.mxu0 0.0
      %4801 = vmatprep.subr.mxu0 0.0
      %4802 = vmatpush1.msra.mxu0 0.0
      %4803 = vmatprep.subr.mxu0 0.0
      %4804 = vmatpush1.msra.mxu0 0.0
      %4805 = vmatprep.subr.mxu0 0.0
      %4806 = vmatpush1.msra.mxu0 0.0
      %4807 = vmatprep.subr.mxu0 0.0
      %4808 = vmatpush1.msra.mxu0 0.0
      %4809 = vmatprep.mubr.f32.mxu0 0.0
      %4810 = vmatmul.mubr.f32.gmra.mrb[0].mxu0 %v4737
      %v4811 = vpop.f32.mrb[0].mxu0
      %v4812 = vadd.f32 %v4733, %v4811
      %v4813 = vpop.f32.mrb[0].mxu0
      %v4814 = vadd.f32 %v4735, %v4813
      %4815 = vdwg.mxu0
      %v4816 = vld [vmem:[%s14] sm:$0xff]
      %4818 = vset.pattern.permute.xlu0 0
      %4819 = vperm.xlu0 %4818, %v4816
      %v4820 = vpop.permute.xlu0 %4819
      %v4822 = vadd.f32 %v4812, %v4820
      %v4823 = vadd.f32 %v4814, %v4820
      %v4824 = vadd.f32 %v4822, %v2425
      %v4825 = vadd.f32 %v4823, %v2426
      %v4826 = vmul.f32 %v4824, 0.70710677
      %v4827 = vmul.f32 %v4825, 0.70710677
      %4828 = vst [vmem:[%s494] sm:$0xff] %v4826
      %4829 = vst [vmem:[%s494 + $0x8] sm:$0xff] %v4827
      %p4830 = scmp.lt.s32.totalorder %s26, 1
      %s4831 = scalar_select %p4830, %s26, 1
      %s4832 = smul.addr %s4831, 2
      %s4833 = smul.addr %s4832, 8
      %s4834 = scalar_lea.vmem %s15, %s4833
      // Predicated region
      $region81: #{_lambda_.1} parent=79 // pred_check
        %p4835 = pneg %p364
      $region82: #{_lambda_.1} parent=79 // pred_check_branch
        %4837 = sbr.rel (%p4835) target = $region84
      $region83: #{_lambda_.1} parent=79 // pred_region
        _
      $region84: #{_lambda_.1} parent=79 // pred_fallthru
        _
    $region80: #{_lambda_.1} parent=5 // pred_fallthru
      _
    %p4838 = scmp.le.s32.totalorder 2, %s21
    // Predicated region
    $region85: #{_lambda_.1} parent=5 // pred_check
      %p4839 = pneg %p4838
    $region86: #{_lambda_.1} parent=5 // pred_check_branch
      %4841 = sbr.rel (%p4839) target = $region88
    $region87: #{_lambda_.1} parent=5 // pred_region
      %s4842 = ssub.s32 %s21, 2
      // Predicated region
      $region89: #{_lambda_.1} parent=87 // pred_check
        %p4843 = pneg %p370
      $region90: #{_lambda_.1} parent=87 // pred_check_branch
        %4845 = sbr.rel (%p4843) target = $region92
      $region91: #{_lambda_.1} parent=87 // pred_region
        %p4846 = scmp.lt.s32.totalorder %s27, 1
        %s4847 = scalar_select %p4846, %s27, 1
        %s4848 = smul.addr %s4847, 2
        %s4849 = smul.addr %s4848, 8
        %s4850 = scalar_lea.vmem %s15, %s4849
      $region92: #{_lambda_.1} parent=87 // pred_fallthru
        _
    $region88: #{_lambda_.1} parent=5 // pred_fallthru
      _
  $region6: #{_lambda_.1} parent=0 // loop_footer
    %s25 = sadd.s32 1, %s21
  $region7: #{_lambda_.1} parent=0 // loop_footer_branch
    %20 = sbr.rel target = $region3
  $region8: #{_lambda_.1} parent=0 // loop_exit
    _

</llo_original>
